<compile_context>
chip_gen: v7x
topology: tpu7x:2x2x1
jax: 0.10.0
libtpu: 0.0.40
codegen_flags: <defaults>
</compile_context>

<pallas_src>
import functools

import jax
import jax.numpy as jnp
from jax import lax
from jax.experimental import pallas as pl
from jax.experimental.pallas import tpu as pltpu


def _conv33_taps(src, w_ref, b_ref, d_out, h_out, w_dim):
    """3x3 (D,H)-window conv as 9 tap matmuls accumulated in f32.

    src   : (d_out+2, h_out+2, w_dim, C_in) padded activations (Ref or array).
    w_ref : (9, C_in, C_out) bf16 weights, rows ordered (kd, kh).
    b_ref : (1, C_out) f32 bias.
    Returns relu(conv + bias) as f32 of shape (d_out*h_out*w_dim, C_out).
    """
    rows = d_out * h_out * w_dim
    acc = None
    for kd in range(3):
        for kh in range(3):
            tap = src[kd:kd + d_out, kh:kh + h_out, :, :]
            tap = tap.reshape(rows, tap.shape[-1]).astype(jnp.bfloat16)
            p = jnp.dot(tap, w_ref[kd * 3 + kh],
                        preferred_element_type=jnp.float32)
            acc = p if acc is None else acc + p
    return jnp.maximum(acc + b_ref[...], 0.0)


def downblock_kernel(x_ref, w1_ref, b1_ref, w2_ref, b2_ref, w3_ref, b3_ref,
                     out_ref, y1p_ref, *, H):
    Dp2, THe, W, _Cin = x_ref.shape          # (D+2, TH+4, W, Cin), f32
    D, TH = Dp2 - 2, THe - 4
    Cout = w1_ref.shape[-1]
    Wp, THp = W // 2, TH // 2
    f32 = jnp.float32

    t = pl.program_id(1)
    h0 = t * TH                              # first output row of this H tile

    # ---- conv1 (3,3,1) + ReLU, computed on a 1-row H halo ------------------
    y1 = _conv33_taps(x_ref, w1_ref, b1_ref, D, TH + 2, W)
    y1 = y1.reshape(D, TH + 2, W, Cout)
    # conv2's H zero-padding must come from the true volume boundary only;
    # interior tile edges keep the computed y1 halo rows.
    g = h0 - 1 + lax.broadcasted_iota(jnp.int32, y1.shape, 1)
    y1 = jnp.where((g >= 0) & (g < H), y1, 0.0)

    # ---- stash y1 in a zero-D-bordered VMEM scratch for conv2 --------------
    zslab = jnp.zeros((1, TH + 2, W, Cout), f32)
    y1p_ref[0:1, :, :, :] = zslab
    y1p_ref[D + 1:D + 2, :, :, :] = zslab
    y1p_ref[1:D + 1, :, :, :] = y1

    # ---- conv2 (3,3,1) + ReLU ----------------------------------------------
    y2 = _conv33_taps(y1p_ref, w2_ref, b2_ref, D, TH, W)
    R2 = D * TH * W
    y2 = y2.reshape(D, TH, W, Cout)

    # ---- conv3 (1,1,3) + ReLU: 3 W-tap matmuls ------------------------------
    zcol = jnp.zeros((D, TH, 1, Cout), f32)
    x_m = jnp.concatenate([zcol, y2[:, :, :W - 1, :]], axis=2)    # in[w-1]
    x_p = jnp.concatenate([y2[:, :, 1:, :], zcol], axis=2)        # in[w+1]

    def _wtap(v, k):
        return jnp.dot(v.reshape(R2, Cout).astype(jnp.bfloat16), w3_ref[k],
                       preferred_element_type=jnp.float32)

    y3 = jnp.maximum(_wtap(x_m, 0) + _wtap(y2, 1) + _wtap(x_p, 2)
                     + b3_ref[...], 0.0)                          # (R2, Cout)

    # ---- MaxPool3d kernel (1,2,2), stride (2,2,2) — all in-register ---------
    yw = jnp.max(y3.reshape(D, TH, Wp, 2, Cout), axis=3)          # W pairs
    yh = jnp.max(yw.reshape(D, THp, 2, Wp, Cout), axis=2)         # H pairs
    if D % 2 == 1:             # D pool kernel is 1 -> plain stride-2 pick
        yh = jnp.concatenate([yh, yh[D - 1:D]], axis=0)
    yd = yh.reshape(-1, 2, THp, Wp, Cout)[:, 0]                   # (Dp,THp,Wp,C)

    # ---- lane-dense store: fold (Wp, Cout) onto the lane axis ---------------
    out_ref[...] = jnp.concatenate([yd[:, :, w, :] for w in range(Wp)],
                                   axis=-1)                       # (Dp,THp,Wp*C)


def _vmem_limit_bytes():
    """Per-generation scoped-VMEM limit (v7x has 64 MiB/TC vs 128 MiB)."""
    try:
        cap = pltpu.get_tpu_info().vmem_capacity_bytes
    except Exception:
        cap = 128 * 1024 * 1024
    return max(32 * 1024 * 1024, min(cap // 2, 96 * 1024 * 1024))


def downblock_forward(x_ncdhw, params, *, tile_h=None):
    """x_ncdhw: (N, Cin, D, H, W) float32.  Returns (N, Cout, Dp, Hp, Wp)."""
    w1, b1, w2, b2, w3, b3 = params
    N, Cin, D, H, W = x_ncdhw.shape
    Cout = w1.shape[-1]
    assert D > 1 and H % 2 == 0 and W % 2 == 0, "pooling path needs D>1, even H,W"
    if tile_h is None:                       # largest even divisor of H <= 16
        tile_h = next(th for th in (16, 8, 4, 2, H) if H % th == 0 and th <= H)
    assert H % tile_h == 0 and tile_h % 2 == 0
    nT = H // tile_h
    Dp, Hp, Wp, THp = (D - 1) // 2 + 1, H // 2, W // 2, tile_h // 2

    # NCDHW -> NDHWC; zero-pad D by 1 (conv1) and H by 2 (conv1 + conv2 halo);
    # cut overlapping H windows of tile_h+4 rows (stride tile_h).
    x = jnp.transpose(x_ncdhw, (0, 2, 3, 4, 1))
    xp = jnp.pad(x, ((0, 0), (1, 1), (2, 2), (0, 0), (0, 0)))
    xt = jnp.stack([xp[:, :, t * tile_h: t * tile_h + tile_h + 4]
                    for t in range(nT)], axis=1)     # (N,nT,D+2,tile_h+4,W,Cin)

    # bf16 weights for the MXU (f32 accumulation in-kernel); tap-major rows.
    w1p = w1.reshape(9, Cin, Cout).astype(jnp.bfloat16)      # rows = (kd, kh)
    w2p = w2.reshape(9, Cout, Cout).astype(jnp.bfloat16)
    w3p = w3.astype(jnp.bfloat16)                            # (kw, Cin, Cout)

    out = pl.pallas_call(
        functools.partial(downblock_kernel, H=H),
        out_shape=jax.ShapeDtypeStruct((N, nT, Dp, THp, Wp * Cout), jnp.float32),
        grid_spec=pltpu.PrefetchScalarGridSpec(
            num_scalar_prefetch=0,
            grid=(N, nT),
            in_specs=[
                pl.BlockSpec((None, None, D + 2, tile_h + 4, W, Cin),
                             lambda n, t: (n, t, 0, 0, 0, 0)),
                pl.BlockSpec((9, Cin, Cout), lambda n, t: (0, 0, 0)),
                pl.BlockSpec((1, Cout), lambda n, t: (0, 0)),
                pl.BlockSpec((9, Cout, Cout), lambda n, t: (0, 0, 0)),
                pl.BlockSpec((1, Cout), lambda n, t: (0, 0)),
                pl.BlockSpec((3, Cout, Cout), lambda n, t: (0, 0, 0)),
                pl.BlockSpec((1, Cout), lambda n, t: (0, 0)),
            ],
            out_specs=pl.BlockSpec((None, None, Dp, THp, Wp * Cout),
                                   lambda n, t: (n, t, 0, 0, 0)),
            scratch_shapes=[
                pltpu.VMEM((D + 2, tile_h + 2, W, Cout), jnp.float32)],
        ),
        compiler_params=pltpu.CompilerParams(
            dimension_semantics=("parallel", "parallel"),
            vmem_limit_bytes=_vmem_limit_bytes(),
        ),
    )(xt, w1p, b1, w2p, b2, w3p, b3)

    # Unfold the lane-dense output and stitch the H tiles back together.
    out = out.reshape(N, nT, Dp, THp, Wp, Cout)
    out = jnp.transpose(out, (0, 2, 1, 3, 4, 5)).reshape(N, Dp, Hp, Wp, Cout)
    return jnp.transpose(out, (0, 4, 1, 2, 3))               # back to NCDHW


def ref_forward(x, params):
    """Pure-JAX reference mirroring the PyTorch module (for validation)."""
    w1, b1, w2, b2, w3, b3 = params
    dn = ('NCDHW', 'OIDHW', 'NCDHW')
    hp = lax.Precision.HIGHEST
    w1t = jnp.transpose(w1, (3, 2, 0, 1))[..., None]              # (Cout,Cin,3,3,1)
    w2t = jnp.transpose(w2, (3, 2, 0, 1))[..., None]
    w3t = jnp.transpose(w3, (2, 1, 0))[:, :, None, None, :]       # (Cout,Cout,1,1,3)

    y = lax.conv_general_dilated(x, w1t, (1, 1, 1), ((1, 1), (1, 1), (0, 0)),
                                 dimension_numbers=dn, precision=hp)
    y = jax.nn.relu(y + b1.reshape(1, -1, 1, 1, 1))
    y = lax.conv_general_dilated(y, w2t, (1, 1, 1), ((1, 1), (1, 1), (0, 0)),
                                 dimension_numbers=dn, precision=hp)
    y = jax.nn.relu(y + b2.reshape(1, -1, 1, 1, 1))
    y = lax.conv_general_dilated(y, w3t, (1, 1, 1), ((0, 0), (0, 0), (1, 1)),
                                 dimension_numbers=dn, precision=hp)
    y = jax.nn.relu(y + b3.reshape(1, -1, 1, 1, 1))
    y = lax.reduce_window(y, -jnp.inf, lax.max,
                          (1, 1, 1, 2, 2), (1, 1, 2, 2, 2), 'VALID')
    return y


if __name__ == "__main__":
    N, Cin, Cout, D, H, W = 2, 4, 8, 4, 8, 8
    key = jax.random.PRNGKey(0)
    kx, k1, k2, k3, k4, k5, k6 = jax.random.split(key, 7)

    x = jax.random.normal(kx, (N, Cin, D, H, W), jnp.float32)
    # deterministic synthetic parameters (shapes from DownBlock.__init__)
    w1 = 0.2 * jax.random.normal(k1, (3, 3, Cin, Cout), jnp.float32)   # (kD,kH,Cin,Cout)
    b1 = 0.1 * jax.random.normal(k2, (1, Cout), jnp.float32)
    w2 = 0.2 * jax.random.normal(k3, (3, 3, Cout, Cout), jnp.float32)
    b2 = 0.1 * jax.random.normal(k4, (1, Cout), jnp.float32)
    w3 = 0.2 * jax.random.normal(k5, (3, Cout, Cout), jnp.float32)     # (kW,Cin,Cout)
    b3 = 0.1 * jax.random.normal(k6, (1, Cout), jnp.float32)
    params = (w1, b1, w2, b2, w3, b3)

    y = downblock_forward(x, params, tile_h=4)    # 2 H-tiles -> grid (2, 2)
    y = jax.block_until_ready(y)

    y_ref = ref_forward(x, params)
    assert y.shape == y_ref.shape, (y.shape, y_ref.shape)
    max_err = float(jnp.max(jnp.abs(y - y_ref)))
    assert jnp.allclose(y, y_ref, atol=4e-2, rtol=4e-2), max_err
    print("KERNEL_OK")
</pallas_src>

<mosaic_0001>
module attributes {stable_mosaic.version = 11 : i64} {
  func.func @downblock_kernel(%arg0: i32, %arg1: i32, %arg2: memref<1x1x6x8x8x4xf32, #tpu.memory_space<vmem>>, %arg3: memref<9x4x8xbf16, #tpu.memory_space<vmem>>, %arg4: memref<1x8xf32, #tpu.memory_space<vmem>>, %arg5: memref<9x8x8xbf16, #tpu.memory_space<vmem>>, %arg6: memref<1x8xf32, #tpu.memory_space<vmem>>, %arg7: memref<3x8x8xbf16, #tpu.memory_space<vmem>>, %arg8: memref<1x8xf32, #tpu.memory_space<vmem>>, %arg9: memref<1x1x2x2x32xf32, #tpu.memory_space<vmem>>, %arg10: memref<6x6x8x8xf32, #tpu.memory_space<vmem>>) attributes {dimension_semantics = [#tpu.dimension_semantics<parallel>, #tpu.dimension_semantics<parallel>], iteration_bounds = array<i64: 2, 2>, scalar_prefetch = 0 : i64, scratch_operands = 1 : i64, tpu.core_type = #tpu.core_type<tc>, window_params = [{transform_indices = @transform_0, window_bounds = array<i64: 1, 1, 6, 8, 8, 4>}, {pipeline_mode = #tpu.pipeline_mode<synchronous>, transform_indices = @transform_1, window_bounds = array<i64: 9, 4, 8>}, {pipeline_mode = #tpu.pipeline_mode<synchronous>, transform_indices = @transform_2, window_bounds = array<i64: 1, 8>}, {pipeline_mode = #tpu.pipeline_mode<synchronous>, transform_indices = @transform_3, window_bounds = array<i64: 9, 8, 8>}, {pipeline_mode = #tpu.pipeline_mode<synchronous>, transform_indices = @transform_4, window_bounds = array<i64: 1, 8>}, {pipeline_mode = #tpu.pipeline_mode<synchronous>, transform_indices = @transform_5, window_bounds = array<i64: 3, 8, 8>}, {pipeline_mode = #tpu.pipeline_mode<synchronous>, transform_indices = @transform_6, window_bounds = array<i64: 1, 8>}, {transform_indices = @transform_7, window_bounds = array<i64: 1, 1, 2, 2, 32>}]} {
    %c4_i32 = arith.constant 4 : i32
    %0 = arith.muli %arg1, %c4_i32 : i32
    %c0 = arith.constant 0 : index
    %c0_0 = arith.constant 0 : index
    %c0_1 = arith.constant 0 : index
    %c0_2 = arith.constant 0 : index
    %c0_3 = arith.constant 0 : index
    %c0_4 = arith.constant 0 : index
    %1 = vector.load %arg2[%c0, %c0_0, %c0_1, %c0_2, %c0_3, %c0_4] : memref<1x1x6x8x8x4xf32, #tpu.memory_space<vmem>>, vector<1x1x4x6x8x4xf32>
    %2 = vector.shape_cast %1 : vector<1x1x4x6x8x4xf32> to vector<4x6x8x4xf32>
    %3 = vector.shape_cast %2 : vector<4x6x8x4xf32> to vector<192x4xf32>
    %4 = arith.truncf %3 : vector<192x4xf32> to vector<192x4xbf16>
    %c0_5 = arith.constant 0 : index
    %c0_6 = arith.constant 0 : index
    %c0_7 = arith.constant 0 : index
    %5 = vector.load %arg3[%c0_5, %c0_6, %c0_7] : memref<9x4x8xbf16, #tpu.memory_space<vmem>>, vector<1x4x8xbf16>
    %6 = vector.shape_cast %5 : vector<1x4x8xbf16> to vector<4x8xbf16>
    %cst = arith.constant dense<0.000000e+00> : vector<192x8xf32>
    %7 = tpu.matmul %4, %6, %cst {dimension_numbers = #tpu.dot_dimension_numbers<[1], [0], [0], [1], [0, 0, 1, 1], [], []>} : vector<192x4xbf16>, vector<4x8xbf16>, vector<192x8xf32> -> vector<192x8xf32>
    %c0_8 = arith.constant 0 : index
    %c0_9 = arith.constant 0 : index
    %c0_10 = arith.constant 0 : index
    %c1 = arith.constant 1 : index
    %c0_11 = arith.constant 0 : index
    %c0_12 = arith.constant 0 : index
    %8 = vector.load %arg2[%c0_8, %c0_9, %c0_10, %c1, %c0_11, %c0_12] : memref<1x1x6x8x8x4xf32, #tpu.memory_space<vmem>>, vector<1x1x4x6x8x4xf32>
    %9 = vector.shape_cast %8 : vector<1x1x4x6x8x4xf32> to vector<4x6x8x4xf32>
    %10 = vector.shape_cast %9 : vector<4x6x8x4xf32> to vector<192x4xf32>
    %11 = arith.truncf %10 : vector<192x4xf32> to vector<192x4xbf16>
    %c1_13 = arith.constant 1 : index
    %c0_14 = arith.constant 0 : index
    %c0_15 = arith.constant 0 : index
    %12 = vector.load %arg3[%c1_13, %c0_14, %c0_15] : memref<9x4x8xbf16, #tpu.memory_space<vmem>>, vector<1x4x8xbf16>
    %13 = vector.shape_cast %12 : vector<1x4x8xbf16> to vector<4x8xbf16>
    %cst_16 = arith.constant dense<0.000000e+00> : vector<192x8xf32>
    %14 = tpu.matmul %11, %13, %cst_16 {dimension_numbers = #tpu.dot_dimension_numbers<[1], [0], [0], [1], [0, 0, 1, 1], [], []>} : vector<192x4xbf16>, vector<4x8xbf16>, vector<192x8xf32> -> vector<192x8xf32>
    %15 = arith.addf %7, %14 : vector<192x8xf32>
    %c0_17 = arith.constant 0 : index
    %c0_18 = arith.constant 0 : index
    %c0_19 = arith.constant 0 : index
    %c2 = arith.constant 2 : index
    %c0_20 = arith.constant 0 : index
    %c0_21 = arith.constant 0 : index
    %16 = vector.load %arg2[%c0_17, %c0_18, %c0_19, %c2, %c0_20, %c0_21] : memref<1x1x6x8x8x4xf32, #tpu.memory_space<vmem>>, vector<1x1x4x6x8x4xf32>
    %17 = vector.shape_cast %16 : vector<1x1x4x6x8x4xf32> to vector<4x6x8x4xf32>
    %18 = vector.shape_cast %17 : vector<4x6x8x4xf32> to vector<192x4xf32>
    %19 = arith.truncf %18 : vector<192x4xf32> to vector<192x4xbf16>
    %c2_22 = arith.constant 2 : index
    %c0_23 = arith.constant 0 : index
    %c0_24 = arith.constant 0 : index
    %20 = vector.load %arg3[%c2_22, %c0_23, %c0_24] : memref<9x4x8xbf16, #tpu.memory_space<vmem>>, vector<1x4x8xbf16>
    %21 = vector.shape_cast %20 : vector<1x4x8xbf16> to vector<4x8xbf16>
    %cst_25 = arith.constant dense<0.000000e+00> : vector<192x8xf32>
    %22 = tpu.matmul %19, %21, %cst_25 {dimension_numbers = #tpu.dot_dimension_numbers<[1], [0], [0], [1], [0, 0, 1, 1], [], []>} : vector<192x4xbf16>, vector<4x8xbf16>, vector<192x8xf32> -> vector<192x8xf32>
    %23 = arith.addf %15, %22 : vector<192x8xf32>
    %c0_26 = arith.constant 0 : index
    %c0_27 = arith.constant 0 : index
    %c1_28 = arith.constant 1 : index
    %c0_29 = arith.constant 0 : index
    %c0_30 = arith.constant 0 : index
    %c0_31 = arith.constant 0 : index
    %24 = vector.load %arg2[%c0_26, %c0_27, %c1_28, %c0_29, %c0_30, %c0_31] : memref<1x1x6x8x8x4xf32, #tpu.memory_space<vmem>>, vector<1x1x4x6x8x4xf32>
    %25 = vector.shape_cast %24 : vector<1x1x4x6x8x4xf32> to vector<4x6x8x4xf32>
    %26 = vector.shape_cast %25 : vector<4x6x8x4xf32> to vector<192x4xf32>
    %27 = arith.truncf %26 : vector<192x4xf32> to vector<192x4xbf16>
    %c3 = arith.constant 3 : index
    %c0_32 = arith.constant 0 : index
    %c0_33 = arith.constant 0 : index
    %28 = vector.load %arg3[%c3, %c0_32, %c0_33] : memref<9x4x8xbf16, #tpu.memory_space<vmem>>, vector<1x4x8xbf16>
    %29 = vector.shape_cast %28 : vector<1x4x8xbf16> to vector<4x8xbf16>
    %cst_34 = arith.constant dense<0.000000e+00> : vector<192x8xf32>
    %30 = tpu.matmul %27, %29, %cst_34 {dimension_numbers = #tpu.dot_dimension_numbers<[1], [0], [0], [1], [0, 0, 1, 1], [], []>} : vector<192x4xbf16>, vector<4x8xbf16>, vector<192x8xf32> -> vector<192x8xf32>
    %31 = arith.addf %23, %30 : vector<192x8xf32>
    %c0_35 = arith.constant 0 : index
    %c0_36 = arith.constant 0 : index
    %c1_37 = arith.constant 1 : index
    %c1_38 = arith.constant 1 : index
    %c0_39 = arith.constant 0 : index
    %c0_40 = arith.constant 0 : index
    %32 = vector.load %arg2[%c0_35, %c0_36, %c1_37, %c1_38, %c0_39, %c0_40] : memref<1x1x6x8x8x4xf32, #tpu.memory_space<vmem>>, vector<1x1x4x6x8x4xf32>
    %33 = vector.shape_cast %32 : vector<1x1x4x6x8x4xf32> to vector<4x6x8x4xf32>
    %34 = vector.shape_cast %33 : vector<4x6x8x4xf32> to vector<192x4xf32>
    %35 = arith.truncf %34 : vector<192x4xf32> to vector<192x4xbf16>
    %c4 = arith.constant 4 : index
    %c0_41 = arith.constant 0 : index
    %c0_42 = arith.constant 0 : index
    %36 = vector.load %arg3[%c4, %c0_41, %c0_42] : memref<9x4x8xbf16, #tpu.memory_space<vmem>>, vector<1x4x8xbf16>
    %37 = vector.shape_cast %36 : vector<1x4x8xbf16> to vector<4x8xbf16>
    %cst_43 = arith.constant dense<0.000000e+00> : vector<192x8xf32>
    %38 = tpu.matmul %35, %37, %cst_43 {dimension_numbers = #tpu.dot_dimension_numbers<[1], [0], [0], [1], [0, 0, 1, 1], [], []>} : vector<192x4xbf16>, vector<4x8xbf16>, vector<192x8xf32> -> vector<192x8xf32>
    %39 = arith.addf %31, %38 : vector<192x8xf32>
    %c0_44 = arith.constant 0 : index
    %c0_45 = arith.constant 0 : index
    %c1_46 = arith.constant 1 : index
    %c2_47 = arith.constant 2 : index
    %c0_48 = arith.constant 0 : index
    %c0_49 = arith.constant 0 : index
    %40 = vector.load %arg2[%c0_44, %c0_45, %c1_46, %c2_47, %c0_48, %c0_49] : memref<1x1x6x8x8x4xf32, #tpu.memory_space<vmem>>, vector<1x1x4x6x8x4xf32>
    %41 = vector.shape_cast %40 : vector<1x1x4x6x8x4xf32> to vector<4x6x8x4xf32>
    %42 = vector.shape_cast %41 : vector<4x6x8x4xf32> to vector<192x4xf32>
    %43 = arith.truncf %42 : vector<192x4xf32> to vector<192x4xbf16>
    %c5 = arith.constant 5 : index
    %c0_50 = arith.constant 0 : index
    %c0_51 = arith.constant 0 : index
    %44 = vector.load %arg3[%c5, %c0_50, %c0_51] : memref<9x4x8xbf16, #tpu.memory_space<vmem>>, vector<1x4x8xbf16>
    %45 = vector.shape_cast %44 : vector<1x4x8xbf16> to vector<4x8xbf16>
    %cst_52 = arith.constant dense<0.000000e+00> : vector<192x8xf32>
    %46 = tpu.matmul %43, %45, %cst_52 {dimension_numbers = #tpu.dot_dimension_numbers<[1], [0], [0], [1], [0, 0, 1, 1], [], []>} : vector<192x4xbf16>, vector<4x8xbf16>, vector<192x8xf32> -> vector<192x8xf32>
    %47 = arith.addf %39, %46 : vector<192x8xf32>
    %c0_53 = arith.constant 0 : index
    %c0_54 = arith.constant 0 : index
    %c2_55 = arith.constant 2 : index
    %c0_56 = arith.constant 0 : index
    %c0_57 = arith.constant 0 : index
    %c0_58 = arith.constant 0 : index
    %48 = vector.load %arg2[%c0_53, %c0_54, %c2_55, %c0_56, %c0_57, %c0_58] : memref<1x1x6x8x8x4xf32, #tpu.memory_space<vmem>>, vector<1x1x4x6x8x4xf32>
    %49 = vector.shape_cast %48 : vector<1x1x4x6x8x4xf32> to vector<4x6x8x4xf32>
    %50 = vector.shape_cast %49 : vector<4x6x8x4xf32> to vector<192x4xf32>
    %51 = arith.truncf %50 : vector<192x4xf32> to vector<192x4xbf16>
    %c6 = arith.constant 6 : index
    %c0_59 = arith.constant 0 : index
    %c0_60 = arith.constant 0 : index
    %52 = vector.load %arg3[%c6, %c0_59, %c0_60] : memref<9x4x8xbf16, #tpu.memory_space<vmem>>, vector<1x4x8xbf16>
    %53 = vector.shape_cast %52 : vector<1x4x8xbf16> to vector<4x8xbf16>
    %cst_61 = arith.constant dense<0.000000e+00> : vector<192x8xf32>
    %54 = tpu.matmul %51, %53, %cst_61 {dimension_numbers = #tpu.dot_dimension_numbers<[1], [0], [0], [1], [0, 0, 1, 1], [], []>} : vector<192x4xbf16>, vector<4x8xbf16>, vector<192x8xf32> -> vector<192x8xf32>
    %55 = arith.addf %47, %54 : vector<192x8xf32>
    %c0_62 = arith.constant 0 : index
    %c0_63 = arith.constant 0 : index
    %c2_64 = arith.constant 2 : index
    %c1_65 = arith.constant 1 : index
    %c0_66 = arith.constant 0 : index
    %c0_67 = arith.constant 0 : index
    %56 = vector.load %arg2[%c0_62, %c0_63, %c2_64, %c1_65, %c0_66, %c0_67] : memref<1x1x6x8x8x4xf32, #tpu.memory_space<vmem>>, vector<1x1x4x6x8x4xf32>
    %57 = vector.shape_cast %56 : vector<1x1x4x6x8x4xf32> to vector<4x6x8x4xf32>
    %58 = vector.shape_cast %57 : vector<4x6x8x4xf32> to vector<192x4xf32>
    %59 = arith.truncf %58 : vector<192x4xf32> to vector<192x4xbf16>
    %c7 = arith.constant 7 : index
    %c0_68 = arith.constant 0 : index
    %c0_69 = arith.constant 0 : index
    %60 = vector.load %arg3[%c7, %c0_68, %c0_69] : memref<9x4x8xbf16, #tpu.memory_space<vmem>>, vector<1x4x8xbf16>
    %61 = vector.shape_cast %60 : vector<1x4x8xbf16> to vector<4x8xbf16>
    %cst_70 = arith.constant dense<0.000000e+00> : vector<192x8xf32>
    %62 = tpu.matmul %59, %61, %cst_70 {dimension_numbers = #tpu.dot_dimension_numbers<[1], [0], [0], [1], [0, 0, 1, 1], [], []>} : vector<192x4xbf16>, vector<4x8xbf16>, vector<192x8xf32> -> vector<192x8xf32>
    %63 = arith.addf %55, %62 : vector<192x8xf32>
    %c0_71 = arith.constant 0 : index
    %c0_72 = arith.constant 0 : index
    %c2_73 = arith.constant 2 : index
    %c2_74 = arith.constant 2 : index
    %c0_75 = arith.constant 0 : index
    %c0_76 = arith.constant 0 : index
    %64 = vector.load %arg2[%c0_71, %c0_72, %c2_73, %c2_74, %c0_75, %c0_76] : memref<1x1x6x8x8x4xf32, #tpu.memory_space<vmem>>, vector<1x1x4x6x8x4xf32>
    %65 = vector.shape_cast %64 : vector<1x1x4x6x8x4xf32> to vector<4x6x8x4xf32>
    %66 = vector.shape_cast %65 : vector<4x6x8x4xf32> to vector<192x4xf32>
    %67 = arith.truncf %66 : vector<192x4xf32> to vector<192x4xbf16>
    %c8 = arith.constant 8 : index
    %c0_77 = arith.constant 0 : index
    %c0_78 = arith.constant 0 : index
    %68 = vector.load %arg3[%c8, %c0_77, %c0_78] : memref<9x4x8xbf16, #tpu.memory_space<vmem>>, vector<1x4x8xbf16>
    %69 = vector.shape_cast %68 : vector<1x4x8xbf16> to vector<4x8xbf16>
    %cst_79 = arith.constant dense<0.000000e+00> : vector<192x8xf32>
    %70 = tpu.matmul %67, %69, %cst_79 {dimension_numbers = #tpu.dot_dimension_numbers<[1], [0], [0], [1], [0, 0, 1, 1], [], []>} : vector<192x4xbf16>, vector<4x8xbf16>, vector<192x8xf32> -> vector<192x8xf32>
    %71 = arith.addf %63, %70 : vector<192x8xf32>
    %c0_80 = arith.constant 0 : index
    %c0_81 = arith.constant 0 : index
    %72 = vector.load %arg4[%c0_80, %c0_81] : memref<1x8xf32, #tpu.memory_space<vmem>>, vector<1x8xf32>
    %73 = vector.broadcast %72 : vector<1x8xf32> to vector<192x8xf32>
    %74 = arith.addf %71, %73 : vector<192x8xf32>
    %cst_82 = arith.constant 0.000000e+00 : f32
    %75 = vector.broadcast %cst_82 : f32 to vector<192x8xf32>
    %76 = arith.maximumf %74, %75 : vector<192x8xf32>
    %77 = vector.shape_cast %76 : vector<192x8xf32> to vector<4x6x8x8xf32>
    %c1_i32 = arith.constant 1 : i32
    %78 = arith.subi %0, %c1_i32 : i32
    %79 = tpu.iota {dimensions = array<i32: 1>} : vector<4x6x8x8xi32>
    %80 = vector.broadcast %78 : i32 to vector<4x6x8x8xi32>
    %81 = arith.addi %80, %79 : vector<4x6x8x8xi32>
    %c0_i32 = arith.constant 0 : i32
    %82 = vector.broadcast %c0_i32 : i32 to vector<4x6x8x8xi32>
    %83 = arith.cmpi sge, %81, %82 : vector<4x6x8x8xi32>
    %c8_i32 = arith.constant 8 : i32
    %84 = vector.broadcast %c8_i32 : i32 to vector<4x6x8x8xi32>
    %85 = arith.cmpi slt, %81, %84 : vector<4x6x8x8xi32>
    %86 = arith.andi %83, %85 : vector<4x6x8x8xi1>
    %cst_83 = arith.constant 0.000000e+00 : f32
    %87 = vector.broadcast %cst_83 : f32 to vector<4x6x8x8xf32>
    %88 = arith.select %86, %77, %87 : vector<4x6x8x8xi1>, vector<4x6x8x8xf32>
    %cst_84 = arith.constant 0.000000e+00 : f32
    %89 = vector.broadcast %cst_84 : f32 to vector<1x6x8x8xf32>
    %c0_85 = arith.constant 0 : index
    %c0_86 = arith.constant 0 : index
    %c0_87 = arith.constant 0 : index
    %c0_88 = arith.constant 0 : index
    %90 = vector.load %arg10[%c0_85, %c0_86, %c0_87, %c0_88] : memref<6x6x8x8xf32, #tpu.memory_space<vmem>>, vector<1x6x8x8xf32>
    tpu.vector_store %arg10[%c0_85, %c0_86, %c0_87, %c0_88], %89 {strides = array<i32>} : memref<6x6x8x8xf32, #tpu.memory_space<vmem>>, vector<1x6x8x8xf32>,
    %c5_89 = arith.constant 5 : index
    %c0_90 = arith.constant 0 : index
    %c0_91 = arith.constant 0 : index
    %c0_92 = arith.constant 0 : index
    %91 = vector.load %arg10[%c5_89, %c0_90, %c0_91, %c0_92] : memref<6x6x8x8xf32, #tpu.memory_space<vmem>>, vector<1x6x8x8xf32>
    tpu.vector_store %arg10[%c5_89, %c0_90, %c0_91, %c0_92], %89 {strides = array<i32>} : memref<6x6x8x8xf32, #tpu.memory_space<vmem>>, vector<1x6x8x8xf32>,
    %c1_93 = arith.constant 1 : index
    %c0_94 = arith.constant 0 : index
    %c0_95 = arith.constant 0 : index
    %c0_96 = arith.constant 0 : index
    %92 = vector.load %arg10[%c1_93, %c0_94, %c0_95, %c0_96] : memref<6x6x8x8xf32, #tpu.memory_space<vmem>>, vector<4x6x8x8xf32>
    tpu.vector_store %arg10[%c1_93, %c0_94, %c0_95, %c0_96], %88 {strides = array<i32>} : memref<6x6x8x8xf32, #tpu.memory_space<vmem>>, vector<4x6x8x8xf32>,
    %c0_97 = arith.constant 0 : index
    %c0_98 = arith.constant 0 : index
    %c0_99 = arith.constant 0 : index
    %c0_100 = arith.constant 0 : index
    %93 = vector.load %arg10[%c0_97, %c0_98, %c0_99, %c0_100] : memref<6x6x8x8xf32, #tpu.memory_space<vmem>>, vector<4x4x8x8xf32>
    %94 = vector.shape_cast %93 : vector<4x4x8x8xf32> to vector<128x8xf32>
    %95 = arith.truncf %94 : vector<128x8xf32> to vector<128x8xbf16>
    %c0_101 = arith.constant 0 : index
    %c0_102 = arith.constant 0 : index
    %c0_103 = arith.constant 0 : index
    %96 = vector.load %arg5[%c0_101, %c0_102, %c0_103] : memref<9x8x8xbf16, #tpu.memory_space<vmem>>, vector<1x8x8xbf16>
    %97 = vector.shape_cast %96 : vector<1x8x8xbf16> to vector<8x8xbf16>
    %cst_104 = arith.constant dense<0.000000e+00> : vector<128x8xf32>
    %98 = tpu.matmul %95, %97, %cst_104 {dimension_numbers = #tpu.dot_dimension_numbers<[1], [0], [0], [1], [0, 0, 1, 1], [], []>} : vector<128x8xbf16>, vector<8x8xbf16>, vector<128x8xf32> -> vector<128x8xf32>
    %c0_105 = arith.constant 0 : index
    %c1_106 = arith.constant 1 : index
    %c0_107 = arith.constant 0 : index
    %c0_108 = arith.constant 0 : index
    %99 = vector.load %arg10[%c0_105, %c1_106, %c0_107, %c0_108] : memref<6x6x8x8xf32, #tpu.memory_space<vmem>>, vector<4x4x8x8xf32>
    %100 = vector.shape_cast %99 : vector<4x4x8x8xf32> to vector<128x8xf32>
    %101 = arith.truncf %100 : vector<128x8xf32> to vector<128x8xbf16>
    %c1_109 = arith.constant 1 : index
    %c0_110 = arith.constant 0 : index
    %c0_111 = arith.constant 0 : index
    %102 = vector.load %arg5[%c1_109, %c0_110, %c0_111] : memref<9x8x8xbf16, #tpu.memory_space<vmem>>, vector<1x8x8xbf16>
    %103 = vector.shape_cast %102 : vector<1x8x8xbf16> to vector<8x8xbf16>
    %cst_112 = arith.constant dense<0.000000e+00> : vector<128x8xf32>
    %104 = tpu.matmul %101, %103, %cst_112 {dimension_numbers = #tpu.dot_dimension_numbers<[1], [0], [0], [1], [0, 0, 1, 1], [], []>} : vector<128x8xbf16>, vector<8x8xbf16>, vector<128x8xf32> -> vector<128x8xf32>
    %105 = arith.addf %98, %104 : vector<128x8xf32>
    %c0_113 = arith.constant 0 : index
    %c2_114 = arith.constant 2 : index
    %c0_115 = arith.constant 0 : index
    %c0_116 = arith.constant 0 : index
    %106 = vector.load %arg10[%c0_113, %c2_114, %c0_115, %c0_116] : memref<6x6x8x8xf32, #tpu.memory_space<vmem>>, vector<4x4x8x8xf32>
    %107 = vector.shape_cast %106 : vector<4x4x8x8xf32> to vector<128x8xf32>
    %108 = arith.truncf %107 : vector<128x8xf32> to vector<128x8xbf16>
    %c2_117 = arith.constant 2 : index
    %c0_118 = arith.constant 0 : index
    %c0_119 = arith.constant 0 : index
    %109 = vector.load %arg5[%c2_117, %c0_118, %c0_119] : memref<9x8x8xbf16, #tpu.memory_space<vmem>>, vector<1x8x8xbf16>
    %110 = vector.shape_cast %109 : vector<1x8x8xbf16> to vector<8x8xbf16>
    %cst_120 = arith.constant dense<0.000000e+00> : vector<128x8xf32>
    %111 = tpu.matmul %108, %110, %cst_120 {dimension_numbers = #tpu.dot_dimension_numbers<[1], [0], [0], [1], [0, 0, 1, 1], [], []>} : vector<128x8xbf16>, vector<8x8xbf16>, vector<128x8xf32> -> vector<128x8xf32>
    %112 = arith.addf %105, %111 : vector<128x8xf32>
    %c1_121 = arith.constant 1 : index
    %c0_122 = arith.constant 0 : index
    %c0_123 = arith.constant 0 : index
    %c0_124 = arith.constant 0 : index
    %113 = vector.load %arg10[%c1_121, %c0_122, %c0_123, %c0_124] : memref<6x6x8x8xf32, #tpu.memory_space<vmem>>, vector<4x4x8x8xf32>
    %114 = vector.shape_cast %113 : vector<4x4x8x8xf32> to vector<128x8xf32>
    %115 = arith.truncf %114 : vector<128x8xf32> to vector<128x8xbf16>
    %c3_125 = arith.constant 3 : index
    %c0_126 = arith.constant 0 : index
    %c0_127 = arith.constant 0 : index
    %116 = vector.load %arg5[%c3_125, %c0_126, %c0_127] : memref<9x8x8xbf16, #tpu.memory_space<vmem>>, vector<1x8x8xbf16>
    %117 = vector.shape_cast %116 : vector<1x8x8xbf16> to vector<8x8xbf16>
    %cst_128 = arith.constant dense<0.000000e+00> : vector<128x8xf32>
    %118 = tpu.matmul %115, %117, %cst_128 {dimension_numbers = #tpu.dot_dimension_numbers<[1], [0], [0], [1], [0, 0, 1, 1], [], []>} : vector<128x8xbf16>, vector<8x8xbf16>, vector<128x8xf32> -> vector<128x8xf32>
    %119 = arith.addf %112, %118 : vector<128x8xf32>
    %c1_129 = arith.constant 1 : index
    %c1_130 = arith.constant 1 : index
    %c0_131 = arith.constant 0 : index
    %c0_132 = arith.constant 0 : index
    %120 = vector.load %arg10[%c1_129, %c1_130, %c0_131, %c0_132] : memref<6x6x8x8xf32, #tpu.memory_space<vmem>>, vector<4x4x8x8xf32>
    %121 = vector.shape_cast %120 : vector<4x4x8x8xf32> to vector<128x8xf32>
    %122 = arith.truncf %121 : vector<128x8xf32> to vector<128x8xbf16>
    %c4_133 = arith.constant 4 : index
    %c0_134 = arith.constant 0 : index
    %c0_135 = arith.constant 0 : index
    %123 = vector.load %arg5[%c4_133, %c0_134, %c0_135] : memref<9x8x8xbf16, #tpu.memory_space<vmem>>, vector<1x8x8xbf16>
    %124 = vector.shape_cast %123 : vector<1x8x8xbf16> to vector<8x8xbf16>
    %cst_136 = arith.constant dense<0.000000e+00> : vector<128x8xf32>
    %125 = tpu.matmul %122, %124, %cst_136 {dimension_numbers = #tpu.dot_dimension_numbers<[1], [0], [0], [1], [0, 0, 1, 1], [], []>} : vector<128x8xbf16>, vector<8x8xbf16>, vector<128x8xf32> -> vector<128x8xf32>
    %126 = arith.addf %119, %125 : vector<128x8xf32>
    %c1_137 = arith.constant 1 : index
    %c2_138 = arith.constant 2 : index
    %c0_139 = arith.constant 0 : index
    %c0_140 = arith.constant 0 : index
    %127 = vector.load %arg10[%c1_137, %c2_138, %c0_139, %c0_140] : memref<6x6x8x8xf32, #tpu.memory_space<vmem>>, vector<4x4x8x8xf32>
    %128 = vector.shape_cast %127 : vector<4x4x8x8xf32> to vector<128x8xf32>
    %129 = arith.truncf %128 : vector<128x8xf32> to vector<128x8xbf16>
    %c5_141 = arith.constant 5 : index
    %c0_142 = arith.constant 0 : index
    %c0_143 = arith.constant 0 : index
    %130 = vector.load %arg5[%c5_141, %c0_142, %c0_143] : memref<9x8x8xbf16, #tpu.memory_space<vmem>>, vector<1x8x8xbf16>
    %131 = vector.shape_cast %130 : vector<1x8x8xbf16> to vector<8x8xbf16>
    %cst_144 = arith.constant dense<0.000000e+00> : vector<128x8xf32>
    %132 = tpu.matmul %129, %131, %cst_144 {dimension_numbers = #tpu.dot_dimension_numbers<[1], [0], [0], [1], [0, 0, 1, 1], [], []>} : vector<128x8xbf16>, vector<8x8xbf16>, vector<128x8xf32> -> vector<128x8xf32>
    %133 = arith.addf %126, %132 : vector<128x8xf32>
    %c2_145 = arith.constant 2 : index
    %c0_146 = arith.constant 0 : index
    %c0_147 = arith.constant 0 : index
    %c0_148 = arith.constant 0 : index
    %134 = vector.load %arg10[%c2_145, %c0_146, %c0_147, %c0_148] : memref<6x6x8x8xf32, #tpu.memory_space<vmem>>, vector<4x4x8x8xf32>
    %135 = vector.shape_cast %134 : vector<4x4x8x8xf32> to vector<128x8xf32>
    %136 = arith.truncf %135 : vector<128x8xf32> to vector<128x8xbf16>
    %c6_149 = arith.constant 6 : index
    %c0_150 = arith.constant 0 : index
    %c0_151 = arith.constant 0 : index
    %137 = vector.load %arg5[%c6_149, %c0_150, %c0_151] : memref<9x8x8xbf16, #tpu.memory_space<vmem>>, vector<1x8x8xbf16>
    %138 = vector.shape_cast %137 : vector<1x8x8xbf16> to vector<8x8xbf16>
    %cst_152 = arith.constant dense<0.000000e+00> : vector<128x8xf32>
    %139 = tpu.matmul %136, %138, %cst_152 {dimension_numbers = #tpu.dot_dimension_numbers<[1], [0], [0], [1], [0, 0, 1, 1], [], []>} : vector<128x8xbf16>, vector<8x8xbf16>, vector<128x8xf32> -> vector<128x8xf32>
    %140 = arith.addf %133, %139 : vector<128x8xf32>
    %c2_153 = arith.constant 2 : index
    %c1_154 = arith.constant 1 : index
    %c0_155 = arith.constant 0 : index
    %c0_156 = arith.constant 0 : index
    %141 = vector.load %arg10[%c2_153, %c1_154, %c0_155, %c0_156] : memref<6x6x8x8xf32, #tpu.memory_space<vmem>>, vector<4x4x8x8xf32>
    %142 = vector.shape_cast %141 : vector<4x4x8x8xf32> to vector<128x8xf32>
    %143 = arith.truncf %142 : vector<128x8xf32> to vector<128x8xbf16>
    %c7_157 = arith.constant 7 : index
    %c0_158 = arith.constant 0 : index
    %c0_159 = arith.constant 0 : index
    %144 = vector.load %arg5[%c7_157, %c0_158, %c0_159] : memref<9x8x8xbf16, #tpu.memory_space<vmem>>, vector<1x8x8xbf16>
    %145 = vector.shape_cast %144 : vector<1x8x8xbf16> to vector<8x8xbf16>
    %cst_160 = arith.constant dense<0.000000e+00> : vector<128x8xf32>
    %146 = tpu.matmul %143, %145, %cst_160 {dimension_numbers = #tpu.dot_dimension_numbers<[1], [0], [0], [1], [0, 0, 1, 1], [], []>} : vector<128x8xbf16>, vector<8x8xbf16>, vector<128x8xf32> -> vector<128x8xf32>
    %147 = arith.addf %140, %146 : vector<128x8xf32>
    %c2_161 = arith.constant 2 : index
    %c2_162 = arith.constant 2 : index
    %c0_163 = arith.constant 0 : index
    %c0_164 = arith.constant 0 : index
    %148 = vector.load %arg10[%c2_161, %c2_162, %c0_163, %c0_164] : memref<6x6x8x8xf32, #tpu.memory_space<vmem>>, vector<4x4x8x8xf32>
    %149 = vector.shape_cast %148 : vector<4x4x8x8xf32> to vector<128x8xf32>
    %150 = arith.truncf %149 : vector<128x8xf32> to vector<128x8xbf16>
    %c8_165 = arith.constant 8 : index
    %c0_166 = arith.constant 0 : index
    %c0_167 = arith.constant 0 : index
    %151 = vector.load %arg5[%c8_165, %c0_166, %c0_167] : memref<9x8x8xbf16, #tpu.memory_space<vmem>>, vector<1x8x8xbf16>
    %152 = vector.shape_cast %151 : vector<1x8x8xbf16> to vector<8x8xbf16>
    %cst_168 = arith.constant dense<0.000000e+00> : vector<128x8xf32>
    %153 = tpu.matmul %150, %152, %cst_168 {dimension_numbers = #tpu.dot_dimension_numbers<[1], [0], [0], [1], [0, 0, 1, 1], [], []>} : vector<128x8xbf16>, vector<8x8xbf16>, vector<128x8xf32> -> vector<128x8xf32>
    %154 = arith.addf %147, %153 : vector<128x8xf32>
    %c0_169 = arith.constant 0 : index
    %c0_170 = arith.constant 0 : index
    %155 = vector.load %arg6[%c0_169, %c0_170] : memref<1x8xf32, #tpu.memory_space<vmem>>, vector<1x8xf32>
    %156 = vector.broadcast %155 : vector<1x8xf32> to vector<128x8xf32>
    %157 = arith.addf %154, %156 : vector<128x8xf32>
    %cst_171 = arith.constant 0.000000e+00 : f32
    %158 = vector.broadcast %cst_171 : f32 to vector<128x8xf32>
    %159 = arith.maximumf %157, %158 : vector<128x8xf32>
    %160 = vector.shape_cast %159 : vector<128x8xf32> to vector<4x4x8x8xf32>
    %cst_172 = arith.constant 0.000000e+00 : f32
    %161 = vector.broadcast %cst_172 : f32 to vector<4x4x1x8xf32>
    %162 = vector.extract_strided_slice %160 {offsets = [0, 0, 0, 0], sizes = [4, 4, 7, 8], strides = [1, 1, 1, 1]} : vector<4x4x8x8xf32> to vector<4x4x7x8xf32>
    %163 = tpu.concatenate %161, %162 in 2 : vector<4x4x1x8xf32>, vector<4x4x7x8xf32> -> vector<4x4x8x8xf32>
    %164 = vector.extract_strided_slice %160 {offsets = [0, 0, 1, 0], sizes = [4, 4, 7, 8], strides = [1, 1, 1, 1]} : vector<4x4x8x8xf32> to vector<4x4x7x8xf32>
    %165 = tpu.concatenate %164, %161 in 2 : vector<4x4x7x8xf32>, vector<4x4x1x8xf32> -> vector<4x4x8x8xf32>
    %166 = vector.shape_cast %163 : vector<4x4x8x8xf32> to vector<128x8xf32>
    %167 = arith.truncf %166 : vector<128x8xf32> to vector<128x8xbf16>
    %c0_173 = arith.constant 0 : index
    %c0_174 = arith.constant 0 : index
    %c0_175 = arith.constant 0 : index
    %168 = vector.load %arg7[%c0_173, %c0_174, %c0_175] : memref<3x8x8xbf16, #tpu.memory_space<vmem>>, vector<1x8x8xbf16>
    %169 = vector.shape_cast %168 : vector<1x8x8xbf16> to vector<8x8xbf16>
    %cst_176 = arith.constant dense<0.000000e+00> : vector<128x8xf32>
    %170 = tpu.matmul %167, %169, %cst_176 {dimension_numbers = #tpu.dot_dimension_numbers<[1], [0], [0], [1], [0, 0, 1, 1], [], []>} : vector<128x8xbf16>, vector<8x8xbf16>, vector<128x8xf32> -> vector<128x8xf32>
    %171 = vector.shape_cast %160 : vector<4x4x8x8xf32> to vector<128x8xf32>
    %172 = arith.truncf %171 : vector<128x8xf32> to vector<128x8xbf16>
    %c1_177 = arith.constant 1 : index
    %c0_178 = arith.constant 0 : index
    %c0_179 = arith.constant 0 : index
    %173 = vector.load %arg7[%c1_177, %c0_178, %c0_179] : memref<3x8x8xbf16, #tpu.memory_space<vmem>>, vector<1x8x8xbf16>
    %174 = vector.shape_cast %173 : vector<1x8x8xbf16> to vector<8x8xbf16>
    %cst_180 = arith.constant dense<0.000000e+00> : vector<128x8xf32>
    %175 = tpu.matmul %172, %174, %cst_180 {dimension_numbers = #tpu.dot_dimension_numbers<[1], [0], [0], [1], [0, 0, 1, 1], [], []>} : vector<128x8xbf16>, vector<8x8xbf16>, vector<128x8xf32> -> vector<128x8xf32>
    %176 = arith.addf %170, %175 : vector<128x8xf32>
    %177 = vector.shape_cast %165 : vector<4x4x8x8xf32> to vector<128x8xf32>
    %178 = arith.truncf %177 : vector<128x8xf32> to vector<128x8xbf16>
    %c2_181 = arith.constant 2 : index
    %c0_182 = arith.constant 0 : index
    %c0_183 = arith.constant 0 : index
    %179 = vector.load %arg7[%c2_181, %c0_182, %c0_183] : memref<3x8x8xbf16, #tpu.memory_space<vmem>>, vector<1x8x8xbf16>
    %180 = vector.shape_cast %179 : vector<1x8x8xbf16> to vector<8x8xbf16>
    %cst_184 = arith.constant dense<0.000000e+00> : vector<128x8xf32>
    %181 = tpu.matmul %178, %180, %cst_184 {dimension_numbers = #tpu.dot_dimension_numbers<[1], [0], [0], [1], [0, 0, 1, 1], [], []>} : vector<128x8xbf16>, vector<8x8xbf16>, vector<128x8xf32> -> vector<128x8xf32>
    %182 = arith.addf %176, %181 : vector<128x8xf32>
    %c0_185 = arith.constant 0 : index
    %c0_186 = arith.constant 0 : index
    %183 = vector.load %arg8[%c0_185, %c0_186] : memref<1x8xf32, #tpu.memory_space<vmem>>, vector<1x8xf32>
    %184 = vector.broadcast %183 : vector<1x8xf32> to vector<128x8xf32>
    %185 = arith.addf %182, %184 : vector<128x8xf32>
    %cst_187 = arith.constant 0.000000e+00 : f32
    %186 = vector.broadcast %cst_187 : f32 to vector<128x8xf32>
    %187 = arith.maximumf %185, %186 : vector<128x8xf32>
    %188 = vector.shape_cast %187 : vector<128x8xf32> to vector<4x4x4x2x8xf32>
    %cst_188 = arith.constant dense<0xFF800000> : vector<4x4x4x8xf32>
    %189 = vector.multi_reduction <maximumf>, %188, %cst_188 [3] : vector<4x4x4x2x8xf32> to vector<4x4x4x8xf32>
    %190 = vector.shape_cast %189 : vector<4x4x4x8xf32> to vector<4x2x2x4x8xf32>
    %cst_189 = arith.constant dense<0xFF800000> : vector<4x2x4x8xf32>
    %191 = vector.multi_reduction <maximumf>, %190, %cst_189 [2] : vector<4x2x2x4x8xf32> to vector<4x2x4x8xf32>
    %192 = vector.shape_cast %191 : vector<4x2x4x8xf32> to vector<2x2x2x4x8xf32>
    %193 = vector.extract_strided_slice %192 {offsets = [0, 0, 0, 0, 0], sizes = [2, 1, 2, 4, 8], strides = [1, 1, 1, 1, 1]} : vector<2x2x2x4x8xf32> to vector<2x1x2x4x8xf32>
    %194 = vector.shape_cast %193 : vector<2x1x2x4x8xf32> to vector<2x2x4x8xf32>
    %195 = vector.extract_strided_slice %194 {offsets = [0, 0, 0, 0], sizes = [2, 2, 1, 8], strides = [1, 1, 1, 1]} : vector<2x2x4x8xf32> to vector<2x2x1x8xf32>
    %196 = vector.shape_cast %195 : vector<2x2x1x8xf32> to vector<2x2x8xf32>
    %197 = vector.extract_strided_slice %194 {offsets = [0, 0, 1, 0], sizes = [2, 2, 1, 8], strides = [1, 1, 1, 1]} : vector<2x2x4x8xf32> to vector<2x2x1x8xf32>
    %198 = vector.shape_cast %197 : vector<2x2x1x8xf32> to vector<2x2x8xf32>
    %199 = vector.extract_strided_slice %194 {offsets = [0, 0, 2, 0], sizes = [2, 2, 1, 8], strides = [1, 1, 1, 1]} : vector<2x2x4x8xf32> to vector<2x2x1x8xf32>
    %200 = vector.shape_cast %199 : vector<2x2x1x8xf32> to vector<2x2x8xf32>
    %201 = vector.extract_strided_slice %194 {offsets = [0, 0, 3, 0], sizes = [2, 2, 1, 8], strides = [1, 1, 1, 1]} : vector<2x2x4x8xf32> to vector<2x2x1x8xf32>
    %202 = vector.shape_cast %201 : vector<2x2x1x8xf32> to vector<2x2x8xf32>
    %203 = tpu.concatenate %196, %198, %200, %202 in 2 : vector<2x2x8xf32>, vector<2x2x8xf32>, vector<2x2x8xf32>, vector<2x2x8xf32> -> vector<2x2x32xf32>
    %c0_190 = arith.constant 0 : index
    %c0_191 = arith.constant 0 : index
    %c0_192 = arith.constant 0 : index
    %c0_193 = arith.constant 0 : index
    %c0_194 = arith.constant 0 : index
    %204 = vector.load %arg9[%c0_190, %c0_191, %c0_192, %c0_193, %c0_194] : memref<1x1x2x2x32xf32, #tpu.memory_space<vmem>>, vector<1x1x2x2x32xf32>
    %205 = vector.shape_cast %204 : vector<1x1x2x2x32xf32> to vector<2x2x32xf32>
    %206 = vector.shape_cast %203 : vector<2x2x32xf32> to vector<1x1x2x2x32xf32>
    tpu.vector_store %arg9[%c0_190, %c0_191, %c0_192, %c0_193, %c0_194], %206 {strides = array<i32>} : memref<1x1x2x2x32xf32, #tpu.memory_space<vmem>>, vector<1x1x2x2x32xf32>,
    return
  }
  func.func @transform_0(%arg0: i32, %arg1: i32) -> (i32, i32, i32, i32, i32, i32) {
    %c0_i32 = arith.constant 0 : i32
    %c0_i32_0 = arith.constant 0 : i32
    %c0_i32_1 = arith.constant 0 : i32
    %c0_i32_2 = arith.constant 0 : i32
    %c0_i32_3 = arith.constant 0 : i32
    return %arg0, %arg1, %c0_i32, %c0_i32_0, %c0_i32_1, %c0_i32_2 : i32, i32, i32, i32, i32, i32
  }
  func.func @transform_1(%arg0: i32, %arg1: i32) -> (i32, i32, i32) {
    %c0_i32 = arith.constant 0 : i32
    %c0_i32_0 = arith.constant 0 : i32
    %c0_i32_1 = arith.constant 0 : i32
    %c0_i32_2 = arith.constant 0 : i32
    return %c0_i32, %c0_i32_0, %c0_i32_1 : i32, i32, i32
  }
  func.func @transform_2(%arg0: i32, %arg1: i32) -> (i32, i32) {
    %c0_i32 = arith.constant 0 : i32
    %c0_i32_0 = arith.constant 0 : i32
    %c0_i32_1 = arith.constant 0 : i32
    return %c0_i32, %c0_i32_0 : i32, i32
  }
  func.func @transform_3(%arg0: i32, %arg1: i32) -> (i32, i32, i32) {
    %c0_i32 = arith.constant 0 : i32
    %c0_i32_0 = arith.constant 0 : i32
    %c0_i32_1 = arith.constant 0 : i32
    %c0_i32_2 = arith.constant 0 : i32
    return %c0_i32, %c0_i32_0, %c0_i32_1 : i32, i32, i32
  }
  func.func @transform_4(%arg0: i32, %arg1: i32) -> (i32, i32) {
    %c0_i32 = arith.constant 0 : i32
    %c0_i32_0 = arith.constant 0 : i32
    %c0_i32_1 = arith.constant 0 : i32
    return %c0_i32, %c0_i32_0 : i32, i32
  }
  func.func @transform_5(%arg0: i32, %arg1: i32) -> (i32, i32, i32) {
    %c0_i32 = arith.constant 0 : i32
    %c0_i32_0 = arith.constant 0 : i32
    %c0_i32_1 = arith.constant 0 : i32
    %c0_i32_2 = arith.constant 0 : i32
    return %c0_i32, %c0_i32_0, %c0_i32_1 : i32, i32, i32
  }
  func.func @transform_6(%arg0: i32, %arg1: i32) -> (i32, i32) {
    %c0_i32 = arith.constant 0 : i32
    %c0_i32_0 = arith.constant 0 : i32
    %c0_i32_1 = arith.constant 0 : i32
    return %c0_i32, %c0_i32_0 : i32, i32
  }
  func.func @transform_7(%arg0: i32, %arg1: i32) -> (i32, i32, i32, i32, i32) {
    %c0_i32 = arith.constant 0 : i32
    %c0_i32_0 = arith.constant 0 : i32
    %c0_i32_1 = arith.constant 0 : i32
    %c0_i32_2 = arith.constant 0 : i32
    return %arg0, %arg1, %c0_i32, %c0_i32_0, %c0_i32_1 : i32, i32, i32, i32, i32
  }
}

</mosaic_0001>

<llo_original>
// kernel: tpu_custom_call.1
$region0: #{tpu_custom_call.1}
  #allocation0 [shape = 'u32[]', space=smem, size = 0x4, offset = 0x4, fixed_abs, tag = 'smem constant byte address 0x4 - core index']
  #allocation1 [shape = 'u32[144,128]{1,0:T(1,128)}', space=vmem, size = 0x12000, scoped, tag = 'internal scratch']
  #allocation2 [shape = 'f32[6,6,8,8]{3,2,1,0:T(8,128)}', space=vmem, size = 0x24000, scoped, tag = 'scratch operand']
  %s0 = inlined_call_operand.hbm [shape: f32[2,2,6,8,8,4], index: 0, kind: input, shape index: {}]
  %s1 = inlined_call_operand.hbm [shape: bf16[9,4,8], index: 1, kind: input, shape index: {}]
  %s2 = inlined_call_operand.hbm [shape: f32[1,8], index: 2, kind: input, shape index: {}]
  %s3 = inlined_call_operand.hbm [shape: bf16[9,8,8], index: 3, kind: input, shape index: {}]
  %s4 = inlined_call_operand.hbm [shape: f32[1,8], index: 4, kind: input, shape index: {}]
  %s5 = inlined_call_operand.hbm [shape: bf16[3,8,8], index: 5, kind: input, shape index: {}]
  %s6 = inlined_call_operand.hbm [shape: f32[1,8], index: 6, kind: input, shape index: {}]
  %s7 = inlined_call_operand.hbm [shape: f32[2,2,2,2,32], index: 7, kind: output, shape index: {}]
  %s8 = sld [smem:[#allocation0]]
  $region89: #{tpu_custom_call.1} parent=0
    _
  %s10 = ssub.s32 1, %s8
  %s11 = scalar_select 0, %s10, %s8
  $region1: #{tpu_custom_call.1} parent=0
    #allocation3 [shape = 'u8[393216]{0}', space=vmem, size = 0x60000, scoped, tag = 'input window, operand 0']
    #allocation4 [shape = 's32[2]{0}', space=sflag, size = 0x8, scoped, tag = 'scoped memory for tpu_custom_call.1']
    #allocation5 [shape = 's32[2]{0}', space=sflag, size = 0x8, scoped, tag = 'scoped memory for tpu_custom_call.1']
    #allocation6 [shape = 'u8[9216]{0}', space=vmem, size = 0x2400, scoped, tag = 'input window, operand 1, single buffered']
    #allocation7 [shape = 's32[1]{0}', space=sflag, size = 0x4, scoped, tag = 'scoped memory for tpu_custom_call.1']
    #allocation8 [shape = 'u8[512]{0}', space=vmem, size = 0x400, scoped, tag = 'input window, operand 2, single buffered']
    #allocation9 [shape = 'u8[18432]{0}', space=vmem, size = 0x4800, scoped, tag = 'input window, operand 3, single buffered']
    #allocation10 [shape = 's32[1]{0}', space=sflag, size = 0x4, scoped, tag = 'scoped memory for tpu_custom_call.1']
    #allocation11 [shape = 'u8[512]{0}', space=vmem, size = 0x400, scoped, tag = 'input window, operand 4, single buffered']
    #allocation12 [shape = 'u8[6144]{0}', space=vmem, size = 0x1800, scoped, tag = 'input window, operand 5, single buffered']
    #allocation13 [shape = 's32[1]{0}', space=sflag, size = 0x4, scoped, tag = 'scoped memory for tpu_custom_call.1']
    #allocation14 [shape = 'u8[512]{0}', space=vmem, size = 0x400, scoped, tag = 'input window, operand 6, single buffered']
    #allocation15 [shape = 'u8[4096]{0}', space=vmem, size = 0x1000, scoped, tag = 'output window, operand 0']
    %12 = vsyncpa [#allocation4], 0
    %s13 = scalar_lea.sflag [#allocation4], 1
    %14 = vsyncpa %s13, 0
    %15 = vsyncpa [#allocation7], 0
    %16 = vsyncpa [#allocation10], 0
    %17 = vsyncpa [#allocation13], 0
    %18 = vsyncpa [#allocation5], 0
    %s19 = scalar_lea.sflag [#allocation5], 1
    %20 = vsyncpa %s19, 0
    loop: start=0, step=1, limit=6
    $region2: #{tpu_custom_call.1} parent=1 // loop_pre_header
      _
    $region3: #{tpu_custom_call.1} parent=1 // loop_header
      %s22 = sphi 0, %s26
      %p23 = scmp.ge.s32.totalorder %s22, 6
      %s29 = sphi 0, %s41
      %s30 = sphi 0, %s37
      %s31 = sphi 0, %s29
      %s32 = sphi 0, %s30
      %s33 = sphi 0, %s31
      %s34 = sphi 0, %s32
      %s46 = sphi 0, %s48
      %s49 = sphi 0, %s46
      %s50 = sphi 0, %s49
      %s66 = sphi 0, %s50
      %s70 = sphi 0, %s70
      %s72 = sphi 0, %s70
      %s73 = sphi 0, %s72
      %s87 = sphi 0, %s73
      %s91 = sphi 0, %s91
      %s93 = sphi 0, %s91
      %s94 = sphi 0, %s93
      %s108 = sphi 0, %s94
      %s112 = sphi 0, %s112
      %s114 = sphi 0, %s112
      %s115 = sphi 0, %s114
      %s129 = sphi 0, %s115
      %s133 = sphi 0, %s133
      %s135 = sphi 0, %s133
      %s136 = sphi 0, %s135
      %s150 = sphi 0, %s136
      %s154 = sphi 0, %s154
      %s156 = sphi 0, %s154
      %s157 = sphi 0, %s156
      %s171 = sphi 0, %s157
      %s175 = sphi 0, %s175
      %s177 = sphi 0, %s175
      %s178 = sphi 0, %s177
      %s192 = sphi 0, %s178
      %s200 = sphi 0, %s202
      %s203 = sphi 0, %s200
      %s204 = sphi 0, %s203
      %s220 = sphi 0, %s204
    $region4: #{tpu_custom_call.1} parent=1 // loop_header_branch
      %25 = sbr.rel (%p23) target = $region8
    $region5: #{tpu_custom_call.1} parent=1 // loop_body
      %s27 = ssub.s32 %s22, 1
      %s28 = ssub.s32 %s22, 2
      %s35 = sadd.s32 1, %s30
      %p36 = scmp.ge.s32.totalorder %s35, 2
      %s37 = scalar_select %p36, 0, %s35
      %s38 = sadd.s32 1, %s29
      %s39 = scalar_select %p36, %s38, %s29
      %p40 = scmp.ge.s32.totalorder %s39, 2
      %s41 = scalar_select %p40, 0, %s39
      %s42 = ssub.s32 %s29, %s41
      %s43 = ssub.s32 %s30, %s37
      %s44 = sor.u32 %s42, %s43
      %p45 = scmp.eq.s32.totalorder %s44, 0
      %s47 = sadd.s32 %s46, 1
      %s48 = scalar_select %p45, %s46, %s47
      %p51 = pneg %p45
      %p52 = scmp.eq.s32.totalorder %s22, 3
      %p53 = por %p51, %p52
      %p54 = scmp.ne.s32.totalorder %s46, %s49
      %p55 = scmp.eq.s32.totalorder %s22, 0
      %p56 = por %p54, %p55
      %p57 = scmp.ne.s32.totalorder %s46, %s49
      %p58 = scmp.eq.s32.totalorder %s27, 3
      %p59 = por %p57, %p58
      %p60 = scmp.ne.s32.totalorder %s49, %s50
      %p61 = scmp.eq.s32.totalorder %s27, 0
      %p62 = por %p60, %p61
      %p63 = scmp.ne.s32.totalorder %s49, %s50
      %p64 = scmp.eq.s32.totalorder %s28, 3
      %p65 = por %p63, %p64
      %p67 = scmp.ne.s32.totalorder %s50, %s66
      %p68 = scmp.eq.s32.totalorder %s28, 0
      %p69 = por %p67, %p68
      %s71 = sadd.s32 %s70, 1
      %p74 = scmp.eq.s32.totalorder %s22, 3
      %p75 = scmp.ne.s32.totalorder %s70, %s72
      %p76 = scmp.eq.s32.totalorder %s22, 0
      %p77 = por %p75, %p76
      %p78 = scmp.ne.s32.totalorder %s70, %s72
      %p79 = scmp.eq.s32.totalorder %s27, 3
      %p80 = por %p78, %p79
      %p81 = scmp.ne.s32.totalorder %s72, %s73
      %p82 = scmp.eq.s32.totalorder %s27, 0
      %p83 = por %p81, %p82
      %p84 = scmp.ne.s32.totalorder %s72, %s73
      %p85 = scmp.eq.s32.totalorder %s28, 3
      %p86 = por %p84, %p85
      %p88 = scmp.ne.s32.totalorder %s73, %s87
      %p89 = scmp.eq.s32.totalorder %s28, 0
      %p90 = por %p88, %p89
      %s92 = sadd.s32 %s91, 1
      %p95 = scmp.eq.s32.totalorder %s22, 3
      %p96 = scmp.ne.s32.totalorder %s91, %s93
      %p97 = scmp.eq.s32.totalorder %s22, 0
      %p98 = por %p96, %p97
      %p99 = scmp.ne.s32.totalorder %s91, %s93
      %p100 = scmp.eq.s32.totalorder %s27, 3
      %p101 = por %p99, %p100
      %p102 = scmp.ne.s32.totalorder %s93, %s94
      %p103 = scmp.eq.s32.totalorder %s27, 0
      %p104 = por %p102, %p103
      %p105 = scmp.ne.s32.totalorder %s93, %s94
      %p106 = scmp.eq.s32.totalorder %s28, 3
      %p107 = por %p105, %p106
      %p109 = scmp.ne.s32.totalorder %s94, %s108
      %p110 = scmp.eq.s32.totalorder %s28, 0
      %p111 = por %p109, %p110
      %s113 = sadd.s32 %s112, 1
      %p116 = scmp.eq.s32.totalorder %s22, 3
      %p117 = scmp.ne.s32.totalorder %s112, %s114
      %p118 = scmp.eq.s32.totalorder %s22, 0
      %p119 = por %p117, %p118
      %p120 = scmp.ne.s32.totalorder %s112, %s114
      %p121 = scmp.eq.s32.totalorder %s27, 3
      %p122 = por %p120, %p121
      %p123 = scmp.ne.s32.totalorder %s114, %s115
      %p124 = scmp.eq.s32.totalorder %s27, 0
      %p125 = por %p123, %p124
      %p126 = scmp.ne.s32.totalorder %s114, %s115
      %p127 = scmp.eq.s32.totalorder %s28, 3
      %p128 = por %p126, %p127
      %p130 = scmp.ne.s32.totalorder %s115, %s129
      %p131 = scmp.eq.s32.totalorder %s28, 0
      %p132 = por %p130, %p131
      %s134 = sadd.s32 %s133, 1
      %p137 = scmp.eq.s32.totalorder %s22, 3
      %p138 = scmp.ne.s32.totalorder %s133, %s135
      %p139 = scmp.eq.s32.totalorder %s22, 0
      %p140 = por %p138, %p139
      %p141 = scmp.ne.s32.totalorder %s133, %s135
      %p142 = scmp.eq.s32.totalorder %s27, 3
      %p143 = por %p141, %p142
      %p144 = scmp.ne.s32.totalorder %s135, %s136
      %p145 = scmp.eq.s32.totalorder %s27, 0
      %p146 = por %p144, %p145
      %p147 = scmp.ne.s32.totalorder %s135, %s136
      %p148 = scmp.eq.s32.totalorder %s28, 3
      %p149 = por %p147, %p148
      %p151 = scmp.ne.s32.totalorder %s136, %s150
      %p152 = scmp.eq.s32.totalorder %s28, 0
      %p153 = por %p151, %p152
      %s155 = sadd.s32 %s154, 1
      %p158 = scmp.eq.s32.totalorder %s22, 3
      %p159 = scmp.ne.s32.totalorder %s154, %s156
      %p160 = scmp.eq.s32.totalorder %s22, 0
      %p161 = por %p159, %p160
      %p162 = scmp.ne.s32.totalorder %s154, %s156
      %p163 = scmp.eq.s32.totalorder %s27, 3
      %p164 = por %p162, %p163
      %p165 = scmp.ne.s32.totalorder %s156, %s157
      %p166 = scmp.eq.s32.totalorder %s27, 0
      %p167 = por %p165, %p166
      %p168 = scmp.ne.s32.totalorder %s156, %s157
      %p169 = scmp.eq.s32.totalorder %s28, 3
      %p170 = por %p168, %p169
      %p172 = scmp.ne.s32.totalorder %s157, %s171
      %p173 = scmp.eq.s32.totalorder %s28, 0
      %p174 = por %p172, %p173
      %s176 = sadd.s32 %s175, 1
      %p179 = scmp.eq.s32.totalorder %s22, 3
      %p180 = scmp.ne.s32.totalorder %s175, %s177
      %p181 = scmp.eq.s32.totalorder %s22, 0
      %p182 = por %p180, %p181
      %p183 = scmp.ne.s32.totalorder %s175, %s177
      %p184 = scmp.eq.s32.totalorder %s27, 3
      %p185 = por %p183, %p184
      %p186 = scmp.ne.s32.totalorder %s177, %s178
      %p187 = scmp.eq.s32.totalorder %s27, 0
      %p188 = por %p186, %p187
      %p189 = scmp.ne.s32.totalorder %s177, %s178
      %p190 = scmp.eq.s32.totalorder %s28, 3
      %p191 = por %p189, %p190
      %p193 = scmp.ne.s32.totalorder %s178, %s192
      %p194 = scmp.eq.s32.totalorder %s28, 0
      %p195 = por %p193, %p194
      %s196 = ssub.s32 %s29, %s41
      %s197 = ssub.s32 %s30, %s37
      %s198 = sor.u32 %s196, %s197
      %p199 = scmp.eq.s32.totalorder %s198, 0
      %s201 = sadd.s32 %s200, 1
      %s202 = scalar_select %p199, %s200, %s201
      %p205 = pneg %p199
      %p206 = scmp.eq.s32.totalorder %s22, 3
      %p207 = por %p205, %p206
      %p208 = scmp.ne.s32.totalorder %s200, %s203
      %p209 = scmp.eq.s32.totalorder %s22, 0
      %p210 = por %p208, %p209
      %p211 = scmp.ne.s32.totalorder %s200, %s203
      %p212 = scmp.eq.s32.totalorder %s27, 3
      %p213 = por %p211, %p212
      %p214 = scmp.ne.s32.totalorder %s203, %s204
      %p215 = scmp.eq.s32.totalorder %s27, 0
      %p216 = por %p214, %p215
      %p217 = scmp.ne.s32.totalorder %s203, %s204
      %p218 = scmp.eq.s32.totalorder %s28, 3
      %p219 = por %p217, %p218
      %p221 = scmp.ne.s32.totalorder %s204, %s220
      %p222 = scmp.eq.s32.totalorder %s28, 0
      %p223 = por %p221, %p222
      %p224 = scmp.le.s32.totalorder 1, %s22
      %p225 = scmp.lt.s32.totalorder %s22, 5
      %p226 = pnand %p224, %p225
      %p227 = pneg %p226
      // Predicated region
      $region9: #{tpu_custom_call.1} parent=5 // pred_check
        _
      $region10: #{tpu_custom_call.1} parent=5 // pred_check_branch
        %229 = sbr.rel (%p226) target = $region12
      $region11: #{tpu_custom_call.1} parent=5 // pred_region
        %s230 = ssub.s32 %s22, 1
        // Predicated region
        $region13: #{tpu_custom_call.1} parent=11 // pred_check
          %p231 = pneg %p83
        $region14: #{tpu_custom_call.1} parent=11 // pred_check_branch
          %233 = sbr.rel (%p231) target = $region16
        $region15: #{tpu_custom_call.1} parent=11 // pred_region
          %s235 = ssub.s32 288, 288
          %236 = vsyncadd [#allocation7], %s235
          %s237 = sshll.u32 [#allocation6], 4
          %s238 = int_to_ptr.vmem [resolvable:$true] %s237
          %243 = dma.hbm_to_vmem [thread:$0]  %s1, 288, %s238, [#allocation7], 32, 32, 2
        $region16: #{tpu_custom_call.1} parent=11 // pred_fallthru
          _
        // Predicated region
        $region17: #{tpu_custom_call.1} parent=11 // pred_check
          %p244 = pneg %p104
        $region18: #{tpu_custom_call.1} parent=11 // pred_check_branch
          %246 = sbr.rel (%p244) target = $region20
        $region19: #{tpu_custom_call.1} parent=11 // pred_region
          %s248 = ssub.s32 16, 16
          %249 = vsyncadd [#allocation7], %s248
          %s251 = sshll.u32 [#allocation8], 4
          %s252 = int_to_ptr.vmem [resolvable:$true] %s251
          %254 = dma.hbm_to_vmem [thread:$0]  %s2, 16, %s252, [#allocation7]
        $region20: #{tpu_custom_call.1} parent=11 // pred_fallthru
          _
        // Predicated region
        $region21: #{tpu_custom_call.1} parent=11 // pred_check
          %p255 = pneg %p125
        $region22: #{tpu_custom_call.1} parent=11 // pred_check_branch
          %257 = sbr.rel (%p255) target = $region24
        $region23: #{tpu_custom_call.1} parent=11 // pred_region
          %s259 = ssub.s32 576, 576
          %260 = vsyncadd [#allocation10], %s259
          %s261 = sshll.u32 [#allocation9], 4
          %s262 = int_to_ptr.vmem [resolvable:$true] %s261
          %267 = dma.hbm_to_vmem [thread:$0]  %s3, 576, %s262, [#allocation10], 64, 64, 4
        $region24: #{tpu_custom_call.1} parent=11 // pred_fallthru
          _
        // Predicated region
        $region25: #{tpu_custom_call.1} parent=11 // pred_check
          %p268 = pneg %p146
        $region26: #{tpu_custom_call.1} parent=11 // pred_check_branch
          %270 = sbr.rel (%p268) target = $region28
        $region27: #{tpu_custom_call.1} parent=11 // pred_region
          %s272 = ssub.s32 16, 16
          %273 = vsyncadd [#allocation10], %s272
          %s275 = sshll.u32 [#allocation11], 4
          %s276 = int_to_ptr.vmem [resolvable:$true] %s275
          %278 = dma.hbm_to_vmem [thread:$0]  %s4, 16, %s276, [#allocation10]
        $region28: #{tpu_custom_call.1} parent=11 // pred_fallthru
          _
        // Predicated region
        $region29: #{tpu_custom_call.1} parent=11 // pred_check
          %p279 = pneg %p167
        $region30: #{tpu_custom_call.1} parent=11 // pred_check_branch
          %281 = sbr.rel (%p279) target = $region32
        $region31: #{tpu_custom_call.1} parent=11 // pred_region
          %s283 = ssub.s32 192, 192
          %284 = vsyncadd [#allocation13], %s283
          %s285 = sshll.u32 [#allocation12], 4
          %s286 = int_to_ptr.vmem [resolvable:$true] %s285
          %291 = dma.hbm_to_vmem [thread:$0]  %s5, 192, %s286, [#allocation13], 64, 64, 4
        $region32: #{tpu_custom_call.1} parent=11 // pred_fallthru
          _
        // Predicated region
        $region33: #{tpu_custom_call.1} parent=11 // pred_check
          %p292 = pneg %p188
        $region34: #{tpu_custom_call.1} parent=11 // pred_check_branch
          %294 = sbr.rel (%p292) target = $region36
        $region35: #{tpu_custom_call.1} parent=11 // pred_region
          %s296 = ssub.s32 16, 16
          %297 = vsyncadd [#allocation13], %s296
          %s299 = sshll.u32 [#allocation14], 4
          %s300 = int_to_ptr.vmem [resolvable:$true] %s299
          %302 = dma.hbm_to_vmem [thread:$0]  %s6, 16, %s300, [#allocation13]
        $region36: #{tpu_custom_call.1} parent=11 // pred_fallthru
          _
      $region12: #{tpu_custom_call.1} parent=5 // pred_fallthru
        _
      %p303 = scmp.lt.s32.totalorder %s22, 4
      // Predicated region
      $region37: #{tpu_custom_call.1} parent=5 // pred_check
        %p304 = pneg %p303
      $region38: #{tpu_custom_call.1} parent=5 // pred_check_branch
        %306 = sbr.rel (%p304) target = $region40
      $region39: #{tpu_custom_call.1} parent=5 // pred_region
        // Predicated region
        $region41: #{tpu_custom_call.1} parent=39 // pred_check
          %p307 = pneg %p56
        $region42: #{tpu_custom_call.1} parent=39 // pred_check_branch
          %309 = sbr.rel (%p307) target = $region44
        $region43: #{tpu_custom_call.1} parent=39 // pred_region
          %s310 = sand.u32 %s46, 1
          %s311 = scalar_lea.sflag [#allocation4], %s310
          %s312 = sand.u32 %s46, 1
          %s313 = smul.addr %s312, 384
          %s314 = scalar_lea.vmem [#allocation3], %s313
          %s316 = ssub.s32 6144, 6144
          %317 = vsyncadd %s311, %s316
          %s318 = smul.addr %s30, 48
          %s319 = smul.addr %s29, 96
          %s320 = sadd.s32 %s318, %s319
          %s321 = smul.addr %s320, 128
          %s322 = scalar_lea.hbm %s0, %s321
          %s323 = sshll.u32 %s314, 4
          %s324 = int_to_ptr.vmem [resolvable:$true] %s323
          %329 = dma.hbm_to_vmem [thread:$0]  %s322, 6144, %s324, %s311, 128, 128, 8
        $region44: #{tpu_custom_call.1} parent=39 // pred_fallthru
          _
      $region40: #{tpu_custom_call.1} parent=5 // pred_fallthru
        _
      %p330 = scmp.le.s32.totalorder 1, %s22
      %p331 = scmp.lt.s32.totalorder %s22, 5
      %p332 = pnand %p330, %p331
      %p333 = pneg %p332
      // Predicated region
      $region45: #{tpu_custom_call.1} parent=5 // pred_check
        _
      $region46: #{tpu_custom_call.1} parent=5 // pred_check_branch
        %335 = sbr.rel (%p332) target = $region48
      $region47: #{tpu_custom_call.1} parent=5 // pred_region
        %s336 = ssub.s32 %s22, 1
        %s337 = sand.u32 %s49, 1
        %s338 = scalar_lea.sflag [#allocation4], %s337
        %s339 = sand.u32 %s49, 1
        %s340 = smul.addr %s339, 384
        %s341 = scalar_lea.vmem [#allocation3], %s340
        // Predicated region
        $region49: #{tpu_custom_call.1} parent=47 // pred_check
          %p342 = pneg %p62
        $region50: #{tpu_custom_call.1} parent=47 // pred_check_branch
          %344 = sbr.rel (%p342) target = $region52
        $region51: #{tpu_custom_call.1} parent=47 // pred_region
          %345 = dma.done %s338, 6144
        $region52: #{tpu_custom_call.1} parent=47 // pred_fallthru
          _
        // Predicated region
        $region53: #{tpu_custom_call.1} parent=47 // pred_check
          %p346 = pneg %p83
        $region54: #{tpu_custom_call.1} parent=47 // pred_check_branch
          %348 = sbr.rel (%p346) target = $region56
        $region55: #{tpu_custom_call.1} parent=47 // pred_region
          %349 = dma.done [#allocation7], 288
        $region56: #{tpu_custom_call.1} parent=47 // pred_fallthru
          _
        // Predicated region
        $region57: #{tpu_custom_call.1} parent=47 // pred_check
          %p350 = pneg %p104
        $region58: #{tpu_custom_call.1} parent=47 // pred_check_branch
          %352 = sbr.rel (%p350) target = $region60
        $region59: #{tpu_custom_call.1} parent=47 // pred_region
          %353 = dma.done [#allocation7], 16
        $region60: #{tpu_custom_call.1} parent=47 // pred_fallthru
          _
        // Predicated region
        $region61: #{tpu_custom_call.1} parent=47 // pred_check
          %p354 = pneg %p125
        $region62: #{tpu_custom_call.1} parent=47 // pred_check_branch
          %356 = sbr.rel (%p354) target = $region64
        $region63: #{tpu_custom_call.1} parent=47 // pred_region
          %357 = dma.done [#allocation10], 576
        $region64: #{tpu_custom_call.1} parent=47 // pred_fallthru
          _
        // Predicated region
        $region65: #{tpu_custom_call.1} parent=47 // pred_check
          %p358 = pneg %p146
        $region66: #{tpu_custom_call.1} parent=47 // pred_check_branch
          %360 = sbr.rel (%p358) target = $region68
        $region67: #{tpu_custom_call.1} parent=47 // pred_region
          %361 = dma.done [#allocation10], 16
        $region68: #{tpu_custom_call.1} parent=47 // pred_fallthru
          _
        // Predicated region
        $region69: #{tpu_custom_call.1} parent=47 // pred_check
          %p362 = pneg %p167
        $region70: #{tpu_custom_call.1} parent=47 // pred_check_branch
          %364 = sbr.rel (%p362) target = $region72
        $region71: #{tpu_custom_call.1} parent=47 // pred_region
          %365 = dma.done [#allocation13], 192
        $region72: #{tpu_custom_call.1} parent=47 // pred_fallthru
          _
        // Predicated region
        $region73: #{tpu_custom_call.1} parent=47 // pred_check
          %p366 = pneg %p188
        $region74: #{tpu_custom_call.1} parent=47 // pred_check_branch
          %368 = sbr.rel (%p366) target = $region76
        $region75: #{tpu_custom_call.1} parent=47 // pred_region
          %369 = dma.done [#allocation13], 16
        $region76: #{tpu_custom_call.1} parent=47 // pred_fallthru
          _
        %s370 = sand.u32 %s49, 1
        %s371 = scalar_lea.sflag [#allocation4], %s370
        %s372 = sand.u32 %s49, 1
        %s373 = smul.addr %s372, 384
        %s374 = scalar_lea.vmem [#allocation3], %s373
        %p375 = pneg %p62
        %p376 = pneg %p59
        %p377 = pneg %p83
        %p378 = pneg %p80
        %p379 = pneg %p104
        %p380 = pneg %p101
        %p381 = pneg %p125
        %p382 = pneg %p122
        %p383 = pneg %p146
        %p384 = pneg %p143
        %p385 = pneg %p167
        %p386 = pneg %p164
        %p387 = pneg %p188
        %p388 = pneg %p185
        %p389 = pneg %p216
        %p390 = pneg %p213
        %s391 = sand.u32 %s203, 1
        %s392 = scalar_lea.sflag [#allocation5], %s391
        %s393 = sand.u32 %s203, 1
        %s394 = smul.addr %s393, 4
        %s395 = scalar_lea.vmem [#allocation15], %s394
        %s397 = smul.u32 %s32, 4
        %v398 = vld [vmem:[%s341] sm:$0xff]
        %v399 = vld [vmem:[%s341 + $0x8] sm:$0xff]
        %v400 = vld [vmem:[%s341 + $0x10] sm:$0xff]
        %v401 = vld [vmem:[%s341 + $0x18] sm:$0xff]
        %v402 = vld [vmem:[%s341 + $0x20] sm:$0xff]
        %v403 = vld [vmem:[%s341 + $0x28] sm:$0xff]
        %v404 = vld [vmem:[%s341 + $0x40] sm:$0xff]
        %v405 = vld [vmem:[%s341 + $0x48] sm:$0xff]
        %v406 = vld [vmem:[%s341 + $0x50] sm:$0xff]
        %v407 = vld [vmem:[%s341 + $0x58] sm:$0xff]
        %v408 = vld [vmem:[%s341 + $0x60] sm:$0xff]
        %v409 = vld [vmem:[%s341 + $0x68] sm:$0xff]
        %v410 = vld [vmem:[%s341 + $0x80] sm:$0xff]
        %v411 = vld [vmem:[%s341 + $0x88] sm:$0xff]
        %v412 = vld [vmem:[%s341 + $0x90] sm:$0xff]
        %v413 = vld [vmem:[%s341 + $0x98] sm:$0xff]
        %v414 = vld [vmem:[%s341 + $0xa0] sm:$0xff]
        %v415 = vld [vmem:[%s341 + $0xa8] sm:$0xff]
        %v416 = vld [vmem:[%s341 + $0xc0] sm:$0xff]
        %v417 = vld [vmem:[%s341 + $0xc8] sm:$0xff]
        %v418 = vld [vmem:[%s341 + $0xd0] sm:$0xff]
        %v419 = vld [vmem:[%s341 + $0xd8] sm:$0xff]
        %v420 = vld [vmem:[%s341 + $0xe0] sm:$0xff]
        %v421 = vld [vmem:[%s341 + $0xe8] sm:$0xff]
        %v422 = vpack.c.bf16 %v399, %v398
        %v423 = vpack.c.bf16 %v401, %v400
        %v424 = vpack.c.bf16 %v403, %v402
        %v425 = vpack.c.bf16 %v405, %v404
        %v426 = vpack.c.bf16 %v407, %v406
        %v427 = vpack.c.bf16 %v409, %v408
        %v428 = vpack.c.bf16 %v411, %v410
        %v429 = vpack.c.bf16 %v413, %v412
        %v430 = vpack.c.bf16 %v415, %v414
        %v431 = vpack.c.bf16 %v417, %v416
        %v432 = vpack.c.bf16 %v419, %v418
        %v433 = vpack.c.bf16 %v421, %v420
        %v434 = vld [vmem:[#allocation6] sm:$0x3]
        %s435 = scalar_lea.vmem %s341, 8 [#allocation3]
        %v436 = vld [vmem:[%s435] sm:$0xff]
        %v437 = vld [vmem:[%s435 + $0x8] sm:$0xff]
        %v438 = vld [vmem:[%s435 + $0x10] sm:$0xff]
        %v439 = vld [vmem:[%s435 + $0x18] sm:$0xff]
        %v440 = vld [vmem:[%s435 + $0x20] sm:$0xff]
        %v441 = vld [vmem:[%s435 + $0x28] sm:$0xff]
        %v442 = vld [vmem:[%s435 + $0x40] sm:$0xff]
        %v443 = vld [vmem:[%s435 + $0x48] sm:$0xff]
        %v444 = vld [vmem:[%s435 + $0x50] sm:$0xff]
        %v445 = vld [vmem:[%s435 + $0x58] sm:$0xff]
        %v446 = vld [vmem:[%s435 + $0x60] sm:$0xff]
        %v447 = vld [vmem:[%s435 + $0x68] sm:$0xff]
        %v448 = vld [vmem:[%s435 + $0x80] sm:$0xff]
        %v449 = vld [vmem:[%s435 + $0x88] sm:$0xff]
        %v450 = vld [vmem:[%s435 + $0x90] sm:$0xff]
        %v451 = vld [vmem:[%s435 + $0x98] sm:$0xff]
        %v452 = vld [vmem:[%s435 + $0xa0] sm:$0xff]
        %v453 = vld [vmem:[%s435 + $0xa8] sm:$0xff]
        %v454 = vld [vmem:[%s435 + $0xc0] sm:$0xff]
        %v455 = vld [vmem:[%s435 + $0xc8] sm:$0xff]
        %v456 = vld [vmem:[%s435 + $0xd0] sm:$0xff]
        %v457 = vld [vmem:[%s435 + $0xd8] sm:$0xff]
        %v458 = vld [vmem:[%s435 + $0xe0] sm:$0xff]
        %v459 = vld [vmem:[%s435 + $0xe8] sm:$0xff]
        %v460 = vpack.c.bf16 %v437, %v436
        %v461 = vpack.c.bf16 %v439, %v438
        %v462 = vpack.c.bf16 %v441, %v440
        %v463 = vpack.c.bf16 %v443, %v442
        %v464 = vpack.c.bf16 %v445, %v444
        %v465 = vpack.c.bf16 %v447, %v446
        %v466 = vpack.c.bf16 %v449, %v448
        %v467 = vpack.c.bf16 %v451, %v450
        %v468 = vpack.c.bf16 %v453, %v452
        %v469 = vpack.c.bf16 %v455, %v454
        %v470 = vpack.c.bf16 %v457, %v456
        %v471 = vpack.c.bf16 %v459, %v458
        %s472 = scalar_lea.vmem [#allocation6], 2
        %v473 = vld [vmem:[%s472] sm:$0x3]
        %vm474 = vcmask 31744
        %v476 = vsel %vm474, %v460, 0
        %v479 = vsel %vm474, %v461, 0
        %v482 = vsel %vm474, %v462, 0
        %v485 = vsel %vm474, %v463, 0
        %v488 = vsel %vm474, %v464, 0
        %v491 = vsel %vm474, %v465, 0
        %v494 = vsel %vm474, %v466, 0
        %v497 = vsel %vm474, %v467, 0
        %v500 = vsel %vm474, %v468, 0
        %v503 = vsel %vm474, %v469, 0
        %v506 = vsel %vm474, %v470, 0
        %v509 = vsel %vm474, %v471, 0
        %vm511 = vcmask 1041408
        %v513 = vsel %vm511, %v473, 0
        %515 = vmatprep.subr.bf16.mxu0 0
        %516 = vmatpush1.bf16.msra.mxu0 %v513
        %517 = vmatprep.subr.bf16.mxu0 0
        %518 = vmatpush1.bf16.msra.mxu0 0
        %519 = vmatprep.subr.bf16.mxu0 0
        %520 = vmatpush1.bf16.msra.mxu0 0
        %521 = vmatprep.subr.bf16.mxu0 0
        %522 = vmatpush1.bf16.msra.mxu0 0
        %523 = vmatprep.subr.bf16.mxu0 0
        %524 = vmatpush1.bf16.msra.mxu0 0
        %525 = vmatprep.subr.bf16.mxu0 0
        %526 = vmatpush1.bf16.msra.mxu0 0
        %527 = vmatprep.subr.bf16.mxu0 0
        %528 = vmatpush1.bf16.msra.mxu0 0
        %529 = vmatprep.subr.bf16.mxu0 0
        %530 = vmatpush1.bf16.msra.mxu0 0
        %531 = vmatprep.subr.bf16.mxu0 0
        %532 = vmatpush1.bf16.msra.mxu0 0
        %533 = vmatprep.subr.bf16.mxu0 0
        %534 = vmatpush1.bf16.msra.mxu0 0
        %535 = vmatprep.subr.bf16.mxu0 0
        %536 = vmatpush1.bf16.msra.mxu0 0
        %537 = vmatprep.subr.bf16.mxu0 0
        %538 = vmatpush1.bf16.msra.mxu0 0
        %539 = vmatprep.subr.bf16.mxu0 0
        %540 = vmatpush1.bf16.msra.mxu0 0
        %541 = vmatprep.subr.bf16.mxu0 0
        %542 = vmatpush1.bf16.msra.mxu0 0
        %543 = vmatprep.subr.bf16.mxu0 0
        %544 = vmatpush1.bf16.msra.mxu0 0
        %545 = vmatprep.subr.bf16.mxu0 0
        %546 = vmatpush1.bf16.msra.mxu0 0
        %547 = vmatprep.mubr.bf16.mxu0 0
        %548 = vmatmul.mubr.bf16.gmra.mrb[0].mxu0 %v476
        %v549 = vpop.f32.mrb[0].mxu0
        %v550 = vadd.f32 0.0, %v549
        %v551 = vpop.f32.mrb[0].mxu0
        %v552 = vpop.f32.mrb[0].mxu0
        %v553 = vadd.f32 0.0, %v552
        %v554 = vpop.f32.mrb[0].mxu0
        %555 = vmatprep.mubr.bf16.mxu0 0
        %556 = vmatmul.mubr.bf16.gmra.mrb[0].mxu0 %v479
        %v557 = vpop.f32.mrb[0].mxu0
        %v558 = vadd.f32 0.0, %v557
        %v559 = vpop.f32.mrb[0].mxu0
        %v560 = vpop.f32.mrb[0].mxu0
        %v561 = vadd.f32 0.0, %v560
        %v562 = vpop.f32.mrb[0].mxu0
        %563 = vmatprep.mubr.bf16.mxu0 0
        %564 = vmatmul.mubr.bf16.gmra.mrb[0].mxu0 %v482
        %v565 = vpop.f32.mrb[0].mxu0
        %v566 = vadd.f32 0.0, %v565
        %v567 = vpop.f32.mrb[0].mxu0
        %v568 = vpop.f32.mrb[0].mxu0
        %v569 = vadd.f32 0.0, %v568
        %v570 = vpop.f32.mrb[0].mxu0
        %571 = vmatprep.mubr.bf16.mxu0 0
        %572 = vmatmul.mubr.bf16.gmra.mrb[0].mxu0 %v485
        %v573 = vpop.f32.mrb[0].mxu0
        %v574 = vadd.f32 0.0, %v573
        %v575 = vpop.f32.mrb[0].mxu0
        %v576 = vpop.f32.mrb[0].mxu0
        %v577 = vadd.f32 0.0, %v576
        %v578 = vpop.f32.mrb[0].mxu0
        %579 = vmatprep.mubr.bf16.mxu0 0
        %580 = vmatmul.mubr.bf16.gmra.mrb[0].mxu0 %v488
        %v581 = vpop.f32.mrb[0].mxu0
        %v582 = vadd.f32 0.0, %v581
        %v583 = vpop.f32.mrb[0].mxu0
        %v584 = vpop.f32.mrb[0].mxu0
        %v585 = vadd.f32 0.0, %v584
        %v586 = vpop.f32.mrb[0].mxu0
        %587 = vmatprep.mubr.bf16.mxu0 0
        %588 = vmatmul.mubr.bf16.gmra.mrb[0].mxu0 %v491
        %v589 = vpop.f32.mrb[0].mxu0
        %v590 = vadd.f32 0.0, %v589
        %v591 = vpop.f32.mrb[0].mxu0
        %v592 = vpop.f32.mrb[0].mxu0
        %v593 = vadd.f32 0.0, %v592
        %v594 = vpop.f32.mrb[0].mxu0
        %595 = vmatprep.mubr.bf16.mxu0 0
        %596 = vmatmul.mubr.bf16.gmra.mrb[0].mxu0 %v494
        %v597 = vpop.f32.mrb[0].mxu0
        %v598 = vadd.f32 0.0, %v597
        %v599 = vpop.f32.mrb[0].mxu0
        %v600 = vpop.f32.mrb[0].mxu0
        %v601 = vadd.f32 0.0, %v600
        %v602 = vpop.f32.mrb[0].mxu0
        %603 = vmatprep.mubr.bf16.mxu0 0
        %604 = vmatmul.mubr.bf16.gmra.mrb[0].mxu0 %v497
        %v605 = vpop.f32.mrb[0].mxu0
        %v606 = vadd.f32 0.0, %v605
        %v607 = vpop.f32.mrb[0].mxu0
        %v608 = vpop.f32.mrb[0].mxu0
        %v609 = vadd.f32 0.0, %v608
        %v610 = vpop.f32.mrb[0].mxu0
        %611 = vmatprep.mubr.bf16.mxu0 0
        %612 = vmatmul.mubr.bf16.gmra.mrb[0].mxu0 %v500
        %v613 = vpop.f32.mrb[0].mxu0
        %v614 = vadd.f32 0.0, %v613
        %v615 = vpop.f32.mrb[0].mxu0
        %v616 = vpop.f32.mrb[0].mxu0
        %v617 = vadd.f32 0.0, %v616
        %v618 = vpop.f32.mrb[0].mxu0
        %619 = vmatprep.mubr.bf16.mxu0 0
        %620 = vmatmul.mubr.bf16.gmra.mrb[0].mxu0 %v503
        %v621 = vpop.f32.mrb[0].mxu0
        %v622 = vadd.f32 0.0, %v621
        %v623 = vpop.f32.mrb[0].mxu0
        %v624 = vpop.f32.mrb[0].mxu0
        %v625 = vadd.f32 0.0, %v624
        %v626 = vpop.f32.mrb[0].mxu0
        %627 = vmatprep.mubr.bf16.mxu0 0
        %628 = vmatmul.mubr.bf16.gmra.mrb[0].mxu0 %v506
        %v629 = vpop.f32.mrb[0].mxu0
        %v630 = vadd.f32 0.0, %v629
        %v631 = vpop.f32.mrb[0].mxu0
        %v632 = vpop.f32.mrb[0].mxu0
        %v633 = vadd.f32 0.0, %v632
        %v634 = vpop.f32.mrb[0].mxu0
        %635 = vmatprep.mubr.bf16.mxu0 0
        %636 = vmatmul.mubr.bf16.gmra.mrb[0].mxu0 %v509
        %v637 = vpop.f32.mrb[0].mxu0
        %v638 = vadd.f32 0.0, %v637
        %v639 = vpop.f32.mrb[0].mxu0
        %v640 = vpop.f32.mrb[0].mxu0
        %v641 = vadd.f32 0.0, %v640
        %v642 = vpop.f32.mrb[0].mxu0
        %643 = vdwg.mxu0
        %v645 = vsel %vm474, %v422, 0
        %v648 = vsel %vm474, %v423, 0
        %v651 = vsel %vm474, %v424, 0
        %v654 = vsel %vm474, %v425, 0
        %v657 = vsel %vm474, %v426, 0
        %v660 = vsel %vm474, %v427, 0
        %v663 = vsel %vm474, %v428, 0
        %v666 = vsel %vm474, %v429, 0
        %v669 = vsel %vm474, %v430, 0
        %v672 = vsel %vm474, %v431, 0
        %v675 = vsel %vm474, %v432, 0
        %v678 = vsel %vm474, %v433, 0
        %v681 = vsel %vm511, %v434, 0
        %683 = vmatprep.subr.bf16.mxu0 0
        %684 = vmatpush1.bf16.msra.mxu0 %v681
        %685 = vmatprep.subr.bf16.mxu0 0
        %686 = vmatpush1.bf16.msra.mxu0 0
        %687 = vmatprep.subr.bf16.mxu0 0
        %688 = vmatpush1.bf16.msra.mxu0 0
        %689 = vmatprep.subr.bf16.mxu0 0
        %690 = vmatpush1.bf16.msra.mxu0 0
        %691 = vmatprep.subr.bf16.mxu0 0
        %692 = vmatpush1.bf16.msra.mxu0 0
        %693 = vmatprep.subr.bf16.mxu0 0
        %694 = vmatpush1.bf16.msra.mxu0 0
        %695 = vmatprep.subr.bf16.mxu0 0
        %696 = vmatpush1.bf16.msra.mxu0 0
        %697 = vmatprep.subr.bf16.mxu0 0
        %698 = vmatpush1.bf16.msra.mxu0 0
        %699 = vmatprep.subr.bf16.mxu0 0
        %700 = vmatpush1.bf16.msra.mxu0 0
        %701 = vmatprep.subr.bf16.mxu0 0
        %702 = vmatpush1.bf16.msra.mxu0 0
        %703 = vmatprep.subr.bf16.mxu0 0
        %704 = vmatpush1.bf16.msra.mxu0 0
        %705 = vmatprep.subr.bf16.mxu0 0
        %706 = vmatpush1.bf16.msra.mxu0 0
        %707 = vmatprep.subr.bf16.mxu0 0
        %708 = vmatpush1.bf16.msra.mxu0 0
        %709 = vmatprep.subr.bf16.mxu0 0
        %710 = vmatpush1.bf16.msra.mxu0 0
        %711 = vmatprep.subr.bf16.mxu0 0
        %712 = vmatpush1.bf16.msra.mxu0 0
        %713 = vmatprep.subr.bf16.mxu0 0
        %714 = vmatpush1.bf16.msra.mxu0 0
        %715 = vmatprep.mubr.bf16.mxu0 0
        %716 = vmatmul.mubr.bf16.gmra.mrb[0].mxu0 %v645
        %v717 = vpop.f32.mrb[0].mxu0
        %v718 = vadd.f32 %v550, %v717
        %v719 = vpop.f32.mrb[0].mxu0
        %v720 = vpop.f32.mrb[0].mxu0
        %v721 = vadd.f32 %v553, %v720
        %v722 = vpop.f32.mrb[0].mxu0
        %723 = vmatprep.mubr.bf16.mxu0 0
        %724 = vmatmul.mubr.bf16.gmra.mrb[0].mxu0 %v648
        %v725 = vpop.f32.mrb[0].mxu0
        %v726 = vadd.f32 %v558, %v725
        %v727 = vpop.f32.mrb[0].mxu0
        %v728 = vpop.f32.mrb[0].mxu0
        %v729 = vadd.f32 %v561, %v728
        %v730 = vpop.f32.mrb[0].mxu0
        %731 = vmatprep.mubr.bf16.mxu0 0
        %732 = vmatmul.mubr.bf16.gmra.mrb[0].mxu0 %v651
        %v733 = vpop.f32.mrb[0].mxu0
        %v734 = vadd.f32 %v566, %v733
        %v735 = vpop.f32.mrb[0].mxu0
        %v736 = vpop.f32.mrb[0].mxu0
        %v737 = vadd.f32 %v569, %v736
        %v738 = vpop.f32.mrb[0].mxu0
        %739 = vmatprep.mubr.bf16.mxu0 0
        %740 = vmatmul.mubr.bf16.gmra.mrb[0].mxu0 %v654
        %v741 = vpop.f32.mrb[0].mxu0
        %v742 = vadd.f32 %v574, %v741
        %v743 = vpop.f32.mrb[0].mxu0
        %v744 = vpop.f32.mrb[0].mxu0
        %v745 = vadd.f32 %v577, %v744
        %v746 = vpop.f32.mrb[0].mxu0
        %747 = vmatprep.mubr.bf16.mxu0 0
        %748 = vmatmul.mubr.bf16.gmra.mrb[0].mxu0 %v657
        %v749 = vpop.f32.mrb[0].mxu0
        %v750 = vadd.f32 %v582, %v749
        %v751 = vpop.f32.mrb[0].mxu0
        %v752 = vpop.f32.mrb[0].mxu0
        %v753 = vadd.f32 %v585, %v752
        %v754 = vpop.f32.mrb[0].mxu0
        %755 = vmatprep.mubr.bf16.mxu0 0
        %756 = vmatmul.mubr.bf16.gmra.mrb[0].mxu0 %v660
        %v757 = vpop.f32.mrb[0].mxu0
        %v758 = vadd.f32 %v590, %v757
        %v759 = vpop.f32.mrb[0].mxu0
        %v760 = vpop.f32.mrb[0].mxu0
        %v761 = vadd.f32 %v593, %v760
        %v762 = vpop.f32.mrb[0].mxu0
        %763 = vmatprep.mubr.bf16.mxu0 0
        %764 = vmatmul.mubr.bf16.gmra.mrb[0].mxu0 %v663
        %v765 = vpop.f32.mrb[0].mxu0
        %v766 = vadd.f32 %v598, %v765
        %v767 = vpop.f32.mrb[0].mxu0
        %v768 = vpop.f32.mrb[0].mxu0
        %v769 = vadd.f32 %v601, %v768
        %v770 = vpop.f32.mrb[0].mxu0
        %771 = vmatprep.mubr.bf16.mxu0 0
        %772 = vmatmul.mubr.bf16.gmra.mrb[0].mxu0 %v666
        %v773 = vpop.f32.mrb[0].mxu0
        %v774 = vadd.f32 %v606, %v773
        %v775 = vpop.f32.mrb[0].mxu0
        %v776 = vpop.f32.mrb[0].mxu0
        %v777 = vadd.f32 %v609, %v776
        %v778 = vpop.f32.mrb[0].mxu0
        %779 = vmatprep.mubr.bf16.mxu0 0
        %780 = vmatmul.mubr.bf16.gmra.mrb[0].mxu0 %v669
        %v781 = vpop.f32.mrb[0].mxu0
        %v782 = vadd.f32 %v614, %v781
        %v783 = vpop.f32.mrb[0].mxu0
        %v784 = vpop.f32.mrb[0].mxu0
        %v785 = vadd.f32 %v617, %v784
        %v786 = vpop.f32.mrb[0].mxu0
        %787 = vmatprep.mubr.bf16.mxu0 0
        %788 = vmatmul.mubr.bf16.gmra.mrb[0].mxu0 %v672
        %v789 = vpop.f32.mrb[0].mxu0
        %v790 = vadd.f32 %v622, %v789
        %v791 = vpop.f32.mrb[0].mxu0
        %v792 = vpop.f32.mrb[0].mxu0
        %v793 = vadd.f32 %v625, %v792
        %v794 = vpop.f32.mrb[0].mxu0
        %795 = vmatprep.mubr.bf16.mxu0 0
        %796 = vmatmul.mubr.bf16.gmra.mrb[0].mxu0 %v675
        %v797 = vpop.f32.mrb[0].mxu0
        %v798 = vadd.f32 %v630, %v797
        %v799 = vpop.f32.mrb[0].mxu0
        %v800 = vpop.f32.mrb[0].mxu0
        %v801 = vadd.f32 %v633, %v800
        %v802 = vpop.f32.mrb[0].mxu0
        %803 = vmatprep.mubr.bf16.mxu0 0
        %804 = vmatmul.mubr.bf16.gmra.mrb[0].mxu0 %v678
        %v805 = vpop.f32.mrb[0].mxu0
        %v806 = vadd.f32 %v638, %v805
        %v807 = vpop.f32.mrb[0].mxu0
        %v808 = vpop.f32.mrb[0].mxu0
        %v809 = vadd.f32 %v641, %v808
        %v810 = vpop.f32.mrb[0].mxu0
        %811 = vdwg.mxu0
        %s812 = scalar_lea.vmem %s341, 16 [#allocation3]
        %v813 = vld [vmem:[%s812] sm:$0xff]
        %v814 = vld [vmem:[%s812 + $0x8] sm:$0xff]
        %v815 = vld [vmem:[%s812 + $0x10] sm:$0xff]
        %v816 = vld [vmem:[%s812 + $0x18] sm:$0xff]
        %v817 = vld [vmem:[%s812 + $0x20] sm:$0xff]
        %v818 = vld [vmem:[%s812 + $0x28] sm:$0xff]
        %v819 = vld [vmem:[%s812 + $0x40] sm:$0xff]
        %v820 = vld [vmem:[%s812 + $0x48] sm:$0xff]
        %v821 = vld [vmem:[%s812 + $0x50] sm:$0xff]
        %v822 = vld [vmem:[%s812 + $0x58] sm:$0xff]
        %v823 = vld [vmem:[%s812 + $0x60] sm:$0xff]
        %v824 = vld [vmem:[%s812 + $0x68] sm:$0xff]
        %v825 = vld [vmem:[%s812 + $0x80] sm:$0xff]
        %v826 = vld [vmem:[%s812 + $0x88] sm:$0xff]
        %v827 = vld [vmem:[%s812 + $0x90] sm:$0xff]
        %v828 = vld [vmem:[%s812 + $0x98] sm:$0xff]
        %v829 = vld [vmem:[%s812 + $0xa0] sm:$0xff]
        %v830 = vld [vmem:[%s812 + $0xa8] sm:$0xff]
        %v831 = vld [vmem:[%s812 + $0xc0] sm:$0xff]
        %v832 = vld [vmem:[%s812 + $0xc8] sm:$0xff]
        %v833 = vld [vmem:[%s812 + $0xd0] sm:$0xff]
        %v834 = vld [vmem:[%s812 + $0xd8] sm:$0xff]
        %v835 = vld [vmem:[%s812 + $0xe0] sm:$0xff]
        %v836 = vld [vmem:[%s812 + $0xe8] sm:$0xff]
        %v837 = vpack.c.bf16 %v814, %v813
        %v838 = vpack.c.bf16 %v816, %v815
        %v839 = vpack.c.bf16 %v818, %v817
        %v840 = vpack.c.bf16 %v820, %v819
        %v841 = vpack.c.bf16 %v822, %v821
        %v842 = vpack.c.bf16 %v824, %v823
        %v843 = vpack.c.bf16 %v826, %v825
        %v844 = vpack.c.bf16 %v828, %v827
        %v845 = vpack.c.bf16 %v830, %v829
        %v846 = vpack.c.bf16 %v832, %v831
        %v847 = vpack.c.bf16 %v834, %v833
        %v848 = vpack.c.bf16 %v836, %v835
        %s849 = scalar_lea.vmem [#allocation6], 4
        %v850 = vld [vmem:[%s849] sm:$0x3]
        %v852 = vsel %vm474, %v837, 0
        %v855 = vsel %vm474, %v838, 0
        %v858 = vsel %vm474, %v839, 0
        %v861 = vsel %vm474, %v840, 0
        %v864 = vsel %vm474, %v841, 0
        %v867 = vsel %vm474, %v842, 0
        %v870 = vsel %vm474, %v843, 0
        %v873 = vsel %vm474, %v844, 0
        %v876 = vsel %vm474, %v845, 0
        %v879 = vsel %vm474, %v846, 0
        %v882 = vsel %vm474, %v847, 0
        %v885 = vsel %vm474, %v848, 0
        %v888 = vsel %vm511, %v850, 0
        %890 = vmatprep.subr.bf16.mxu0 0
        %891 = vmatpush1.bf16.msra.mxu0 %v888
        %892 = vmatprep.subr.bf16.mxu0 0
        %893 = vmatpush1.bf16.msra.mxu0 0
        %894 = vmatprep.subr.bf16.mxu0 0
        %895 = vmatpush1.bf16.msra.mxu0 0
        %896 = vmatprep.subr.bf16.mxu0 0
        %897 = vmatpush1.bf16.msra.mxu0 0
        %898 = vmatprep.subr.bf16.mxu0 0
        %899 = vmatpush1.bf16.msra.mxu0 0
        %900 = vmatprep.subr.bf16.mxu0 0
        %901 = vmatpush1.bf16.msra.mxu0 0
        %902 = vmatprep.subr.bf16.mxu0 0
        %903 = vmatpush1.bf16.msra.mxu0 0
        %904 = vmatprep.subr.bf16.mxu0 0
        %905 = vmatpush1.bf16.msra.mxu0 0
        %906 = vmatprep.subr.bf16.mxu0 0
        %907 = vmatpush1.bf16.msra.mxu0 0
        %908 = vmatprep.subr.bf16.mxu0 0
        %909 = vmatpush1.bf16.msra.mxu0 0
        %910 = vmatprep.subr.bf16.mxu0 0
        %911 = vmatpush1.bf16.msra.mxu0 0
        %912 = vmatprep.subr.bf16.mxu0 0
        %913 = vmatpush1.bf16.msra.mxu0 0
        %914 = vmatprep.subr.bf16.mxu0 0
        %915 = vmatpush1.bf16.msra.mxu0 0
        %916 = vmatprep.subr.bf16.mxu0 0
        %917 = vmatpush1.bf16.msra.mxu0 0
        %918 = vmatprep.subr.bf16.mxu0 0
        %919 = vmatpush1.bf16.msra.mxu0 0
        %920 = vmatprep.subr.bf16.mxu0 0
        %921 = vmatpush1.bf16.msra.mxu0 0
        %922 = vmatprep.mubr.bf16.mxu0 0
        %923 = vmatmul.mubr.bf16.gmra.mrb[0].mxu0 %v852
        %v924 = vpop.f32.mrb[0].mxu0
        %v925 = vadd.f32 0.0, %v924
        %v926 = vpop.f32.mrb[0].mxu0
        %v927 = vpop.f32.mrb[0].mxu0
        %v928 = vadd.f32 0.0, %v927
        %v929 = vpop.f32.mrb[0].mxu0
        %930 = vmatprep.mubr.bf16.mxu0 0
        %931 = vmatmul.mubr.bf16.gmra.mrb[0].mxu0 %v855
        %v932 = vpop.f32.mrb[0].mxu0
        %v933 = vadd.f32 0.0, %v932
        %v934 = vpop.f32.mrb[0].mxu0
        %v935 = vpop.f32.mrb[0].mxu0
        %v936 = vadd.f32 0.0, %v935
        %v937 = vpop.f32.mrb[0].mxu0
        %938 = vmatprep.mubr.bf16.mxu0 0
        %939 = vmatmul.mubr.bf16.gmra.mrb[0].mxu0 %v858
        %v940 = vpop.f32.mrb[0].mxu0
        %v941 = vadd.f32 0.0, %v940
        %v942 = vpop.f32.mrb[0].mxu0
        %v943 = vpop.f32.mrb[0].mxu0
        %v944 = vadd.f32 0.0, %v943
        %v945 = vpop.f32.mrb[0].mxu0
        %946 = vmatprep.mubr.bf16.mxu0 0
        %947 = vmatmul.mubr.bf16.gmra.mrb[0].mxu0 %v861
        %v948 = vpop.f32.mrb[0].mxu0
        %v949 = vadd.f32 0.0, %v948
        %v950 = vpop.f32.mrb[0].mxu0
        %v951 = vpop.f32.mrb[0].mxu0
        %v952 = vadd.f32 0.0, %v951
        %v953 = vpop.f32.mrb[0].mxu0
        %954 = vmatprep.mubr.bf16.mxu0 0
        %955 = vmatmul.mubr.bf16.gmra.mrb[0].mxu0 %v864
        %v956 = vpop.f32.mrb[0].mxu0
        %v957 = vadd.f32 0.0, %v956
        %v958 = vpop.f32.mrb[0].mxu0
        %v959 = vpop.f32.mrb[0].mxu0
        %v960 = vadd.f32 0.0, %v959
        %v961 = vpop.f32.mrb[0].mxu0
        %962 = vmatprep.mubr.bf16.mxu0 0
        %963 = vmatmul.mubr.bf16.gmra.mrb[0].mxu0 %v867
        %v964 = vpop.f32.mrb[0].mxu0
        %v965 = vadd.f32 0.0, %v964
        %v966 = vpop.f32.mrb[0].mxu0
        %v967 = vpop.f32.mrb[0].mxu0
        %v968 = vadd.f32 0.0, %v967
        %v969 = vpop.f32.mrb[0].mxu0
        %970 = vmatprep.mubr.bf16.mxu0 0
        %971 = vmatmul.mubr.bf16.gmra.mrb[0].mxu0 %v870
        %v972 = vpop.f32.mrb[0].mxu0
        %v973 = vadd.f32 0.0, %v972
        %v974 = vpop.f32.mrb[0].mxu0
        %v975 = vpop.f32.mrb[0].mxu0
        %v976 = vadd.f32 0.0, %v975
        %v977 = vpop.f32.mrb[0].mxu0
        %978 = vmatprep.mubr.bf16.mxu0 0
        %979 = vmatmul.mubr.bf16.gmra.mrb[0].mxu0 %v873
        %v980 = vpop.f32.mrb[0].mxu0
        %v981 = vadd.f32 0.0, %v980
        %v982 = vpop.f32.mrb[0].mxu0
        %v983 = vpop.f32.mrb[0].mxu0
        %v984 = vadd.f32 0.0, %v983
        %v985 = vpop.f32.mrb[0].mxu0
        %986 = vmatprep.mubr.bf16.mxu0 0
        %987 = vmatmul.mubr.bf16.gmra.mrb[0].mxu0 %v876
        %v988 = vpop.f32.mrb[0].mxu0
        %v989 = vadd.f32 0.0, %v988
        %v990 = vpop.f32.mrb[0].mxu0
        %v991 = vpop.f32.mrb[0].mxu0
        %v992 = vadd.f32 0.0, %v991
        %v993 = vpop.f32.mrb[0].mxu0
        %994 = vmatprep.mubr.bf16.mxu0 0
        %995 = vmatmul.mubr.bf16.gmra.mrb[0].mxu0 %v879
        %v996 = vpop.f32.mrb[0].mxu0
        %v997 = vadd.f32 0.0, %v996
        %v998 = vpop.f32.mrb[0].mxu0
        %v999 = vpop.f32.mrb[0].mxu0
        %v1000 = vadd.f32 0.0, %v999
        %v1001 = vpop.f32.mrb[0].mxu0
        %1002 = vmatprep.mubr.bf16.mxu0 0
        %1003 = vmatmul.mubr.bf16.gmra.mrb[0].mxu0 %v882
        %v1004 = vpop.f32.mrb[0].mxu0
        %v1005 = vadd.f32 0.0, %v1004
        %v1006 = vpop.f32.mrb[0].mxu0
        %v1007 = vpop.f32.mrb[0].mxu0
        %v1008 = vadd.f32 0.0, %v1007
        %v1009 = vpop.f32.mrb[0].mxu0
        %1010 = vmatprep.mubr.bf16.mxu0 0
        %1011 = vmatmul.mubr.bf16.gmra.mrb[0].mxu0 %v885
        %v1012 = vpop.f32.mrb[0].mxu0
        %v1013 = vadd.f32 0.0, %v1012
        %v1014 = vpop.f32.mrb[0].mxu0
        %v1015 = vpop.f32.mrb[0].mxu0
        %v1016 = vadd.f32 0.0, %v1015
        %v1017 = vpop.f32.mrb[0].mxu0
        %1018 = vdwg.mxu0
        %v1019 = vadd.f32 %v718, %v925
        %v1020 = vadd.f32 %v721, %v928
        %v1021 = vadd.f32 %v726, %v933
        %v1022 = vadd.f32 %v729, %v936
        %v1023 = vadd.f32 %v734, %v941
        %v1024 = vadd.f32 %v737, %v944
        %v1025 = vadd.f32 %v742, %v949
        %v1026 = vadd.f32 %v745, %v952
        %v1027 = vadd.f32 %v750, %v957
        %v1028 = vadd.f32 %v753, %v960
        %v1029 = vadd.f32 %v758, %v965
        %v1030 = vadd.f32 %v761, %v968
        %v1031 = vadd.f32 %v766, %v973
        %v1032 = vadd.f32 %v769, %v976
        %v1033 = vadd.f32 %v774, %v981
        %v1034 = vadd.f32 %v777, %v984
        %v1035 = vadd.f32 %v782, %v989
        %v1036 = vadd.f32 %v785, %v992
        %v1037 = vadd.f32 %v790, %v997
        %v1038 = vadd.f32 %v793, %v1000
        %v1039 = vadd.f32 %v798, %v1005
        %v1040 = vadd.f32 %v801, %v1008
        %v1041 = vadd.f32 %v806, %v1013
        %v1042 = vadd.f32 %v809, %v1016
        %s1043 = scalar_lea.vmem %s341, 64 [#allocation3]
        %v1044 = vld [vmem:[%s1043] sm:$0xff]
        %v1045 = vld [vmem:[%s1043 + $0x8] sm:$0xff]
        %v1046 = vld [vmem:[%s1043 + $0x10] sm:$0xff]
        %v1047 = vld [vmem:[%s1043 + $0x18] sm:$0xff]
        %v1048 = vld [vmem:[%s1043 + $0x20] sm:$0xff]
        %v1049 = vld [vmem:[%s1043 + $0x28] sm:$0xff]
        %v1050 = vld [vmem:[%s1043 + $0x40] sm:$0xff]
        %v1051 = vld [vmem:[%s1043 + $0x48] sm:$0xff]
        %v1052 = vld [vmem:[%s1043 + $0x50] sm:$0xff]
        %v1053 = vld [vmem:[%s1043 + $0x58] sm:$0xff]
        %v1054 = vld [vmem:[%s1043 + $0x60] sm:$0xff]
        %v1055 = vld [vmem:[%s1043 + $0x68] sm:$0xff]
        %v1056 = vld [vmem:[%s1043 + $0x80] sm:$0xff]
        %v1057 = vld [vmem:[%s1043 + $0x88] sm:$0xff]
        %v1058 = vld [vmem:[%s1043 + $0x90] sm:$0xff]
        %v1059 = vld [vmem:[%s1043 + $0x98] sm:$0xff]
        %v1060 = vld [vmem:[%s1043 + $0xa0] sm:$0xff]
        %v1061 = vld [vmem:[%s1043 + $0xa8] sm:$0xff]
        %v1062 = vld [vmem:[%s1043 + $0xc0] sm:$0xff]
        %v1063 = vld [vmem:[%s1043 + $0xc8] sm:$0xff]
        %v1064 = vld [vmem:[%s1043 + $0xd0] sm:$0xff]
        %v1065 = vld [vmem:[%s1043 + $0xd8] sm:$0xff]
        %v1066 = vld [vmem:[%s1043 + $0xe0] sm:$0xff]
        %v1067 = vld [vmem:[%s1043 + $0xe8] sm:$0xff]
        %v1068 = vpack.c.bf16 %v1045, %v1044
        %v1069 = vpack.c.bf16 %v1047, %v1046
        %v1070 = vpack.c.bf16 %v1049, %v1048
        %v1071 = vpack.c.bf16 %v1051, %v1050
        %v1072 = vpack.c.bf16 %v1053, %v1052
        %v1073 = vpack.c.bf16 %v1055, %v1054
        %v1074 = vpack.c.bf16 %v1057, %v1056
        %v1075 = vpack.c.bf16 %v1059, %v1058
        %v1076 = vpack.c.bf16 %v1061, %v1060
        %v1077 = vpack.c.bf16 %v1063, %v1062
        %v1078 = vpack.c.bf16 %v1065, %v1064
        %v1079 = vpack.c.bf16 %v1067, %v1066
        %s1080 = scalar_lea.vmem [#allocation6], 6
        %v1081 = vld [vmem:[%s1080] sm:$0x3]
        %v1083 = vsel %vm474, %v1068, 0
        %v1086 = vsel %vm474, %v1069, 0
        %v1089 = vsel %vm474, %v1070, 0
        %v1092 = vsel %vm474, %v1071, 0
        %v1095 = vsel %vm474, %v1072, 0
        %v1098 = vsel %vm474, %v1073, 0
        %v1101 = vsel %vm474, %v1074, 0
        %v1104 = vsel %vm474, %v1075, 0
        %v1107 = vsel %vm474, %v1076, 0
        %v1110 = vsel %vm474, %v1077, 0
        %v1113 = vsel %vm474, %v1078, 0
        %v1116 = vsel %vm474, %v1079, 0
        %v1119 = vsel %vm511, %v1081, 0
        %1121 = vmatprep.subr.bf16.mxu0 0
        %1122 = vmatpush1.bf16.msra.mxu0 %v1119
        %1123 = vmatprep.subr.bf16.mxu0 0
        %1124 = vmatpush1.bf16.msra.mxu0 0
        %1125 = vmatprep.subr.bf16.mxu0 0
        %1126 = vmatpush1.bf16.msra.mxu0 0
        %1127 = vmatprep.subr.bf16.mxu0 0
        %1128 = vmatpush1.bf16.msra.mxu0 0
        %1129 = vmatprep.subr.bf16.mxu0 0
        %1130 = vmatpush1.bf16.msra.mxu0 0
        %1131 = vmatprep.subr.bf16.mxu0 0
        %1132 = vmatpush1.bf16.msra.mxu0 0
        %1133 = vmatprep.subr.bf16.mxu0 0
        %1134 = vmatpush1.bf16.msra.mxu0 0
        %1135 = vmatprep.subr.bf16.mxu0 0
        %1136 = vmatpush1.bf16.msra.mxu0 0
        %1137 = vmatprep.subr.bf16.mxu0 0
        %1138 = vmatpush1.bf16.msra.mxu0 0
        %1139 = vmatprep.subr.bf16.mxu0 0
        %1140 = vmatpush1.bf16.msra.mxu0 0
        %1141 = vmatprep.subr.bf16.mxu0 0
        %1142 = vmatpush1.bf16.msra.mxu0 0
        %1143 = vmatprep.subr.bf16.mxu0 0
        %1144 = vmatpush1.bf16.msra.mxu0 0
        %1145 = vmatprep.subr.bf16.mxu0 0
        %1146 = vmatpush1.bf16.msra.mxu0 0
        %1147 = vmatprep.subr.bf16.mxu0 0
        %1148 = vmatpush1.bf16.msra.mxu0 0
        %1149 = vmatprep.subr.bf16.mxu0 0
        %1150 = vmatpush1.bf16.msra.mxu0 0
        %1151 = vmatprep.subr.bf16.mxu0 0
        %1152 = vmatpush1.bf16.msra.mxu0 0
        %1153 = vmatprep.mubr.bf16.mxu0 0
        %1154 = vmatmul.mubr.bf16.gmra.mrb[0].mxu0 %v1083
        %v1155 = vpop.f32.mrb[0].mxu0
        %v1156 = vadd.f32 0.0, %v1155
        %v1157 = vpop.f32.mrb[0].mxu0
        %v1158 = vpop.f32.mrb[0].mxu0
        %v1159 = vadd.f32 0.0, %v1158
        %v1160 = vpop.f32.mrb[0].mxu0
        %1161 = vmatprep.mubr.bf16.mxu0 0
        %1162 = vmatmul.mubr.bf16.gmra.mrb[0].mxu0 %v1086
        %v1163 = vpop.f32.mrb[0].mxu0
        %v1164 = vadd.f32 0.0, %v1163
        %v1165 = vpop.f32.mrb[0].mxu0
        %v1166 = vpop.f32.mrb[0].mxu0
        %v1167 = vadd.f32 0.0, %v1166
        %v1168 = vpop.f32.mrb[0].mxu0
        %1169 = vmatprep.mubr.bf16.mxu0 0
        %1170 = vmatmul.mubr.bf16.gmra.mrb[0].mxu0 %v1089
        %v1171 = vpop.f32.mrb[0].mxu0
        %v1172 = vadd.f32 0.0, %v1171
        %v1173 = vpop.f32.mrb[0].mxu0
        %v1174 = vpop.f32.mrb[0].mxu0
        %v1175 = vadd.f32 0.0, %v1174
        %v1176 = vpop.f32.mrb[0].mxu0
        %1177 = vmatprep.mubr.bf16.mxu0 0
        %1178 = vmatmul.mubr.bf16.gmra.mrb[0].mxu0 %v1092
        %v1179 = vpop.f32.mrb[0].mxu0
        %v1180 = vadd.f32 0.0, %v1179
        %v1181 = vpop.f32.mrb[0].mxu0
        %v1182 = vpop.f32.mrb[0].mxu0
        %v1183 = vadd.f32 0.0, %v1182
        %v1184 = vpop.f32.mrb[0].mxu0
        %1185 = vmatprep.mubr.bf16.mxu0 0
        %1186 = vmatmul.mubr.bf16.gmra.mrb[0].mxu0 %v1095
        %v1187 = vpop.f32.mrb[0].mxu0
        %v1188 = vadd.f32 0.0, %v1187
        %v1189 = vpop.f32.mrb[0].mxu0
        %v1190 = vpop.f32.mrb[0].mxu0
        %v1191 = vadd.f32 0.0, %v1190
        %v1192 = vpop.f32.mrb[0].mxu0
        %1193 = vmatprep.mubr.bf16.mxu0 0
        %1194 = vmatmul.mubr.bf16.gmra.mrb[0].mxu0 %v1098
        %v1195 = vpop.f32.mrb[0].mxu0
        %v1196 = vadd.f32 0.0, %v1195
        %v1197 = vpop.f32.mrb[0].mxu0
        %v1198 = vpop.f32.mrb[0].mxu0
        %v1199 = vadd.f32 0.0, %v1198
        %v1200 = vpop.f32.mrb[0].mxu0
        %1201 = vmatprep.mubr.bf16.mxu0 0
        %1202 = vmatmul.mubr.bf16.gmra.mrb[0].mxu0 %v1101
        %v1203 = vpop.f32.mrb[0].mxu0
        %v1204 = vadd.f32 0.0, %v1203
        %v1205 = vpop.f32.mrb[0].mxu0
        %v1206 = vpop.f32.mrb[0].mxu0
        %v1207 = vadd.f32 0.0, %v1206
        %v1208 = vpop.f32.mrb[0].mxu0
        %1209 = vmatprep.mubr.bf16.mxu0 0
        %1210 = vmatmul.mubr.bf16.gmra.mrb[0].mxu0 %v1104
        %v1211 = vpop.f32.mrb[0].mxu0
        %v1212 = vadd.f32 0.0, %v1211
        %v1213 = vpop.f32.mrb[0].mxu0
        %v1214 = vpop.f32.mrb[0].mxu0
        %v1215 = vadd.f32 0.0, %v1214
        %v1216 = vpop.f32.mrb[0].mxu0
        %1217 = vmatprep.mubr.bf16.mxu0 0
        %1218 = vmatmul.mubr.bf16.gmra.mrb[0].mxu0 %v1107
        %v1219 = vpop.f32.mrb[0].mxu0
        %v1220 = vadd.f32 0.0, %v1219
        %v1221 = vpop.f32.mrb[0].mxu0
        %v1222 = vpop.f32.mrb[0].mxu0
        %v1223 = vadd.f32 0.0, %v1222
        %v1224 = vpop.f32.mrb[0].mxu0
        %1225 = vmatprep.mubr.bf16.mxu0 0
        %1226 = vmatmul.mubr.bf16.gmra.mrb[0].mxu0 %v1110
        %v1227 = vpop.f32.mrb[0].mxu0
        %v1228 = vadd.f32 0.0, %v1227
        %v1229 = vpop.f32.mrb[0].mxu0
        %v1230 = vpop.f32.mrb[0].mxu0
        %v1231 = vadd.f32 0.0, %v1230
        %v1232 = vpop.f32.mrb[0].mxu0
        %1233 = vmatprep.mubr.bf16.mxu0 0
        %1234 = vmatmul.mubr.bf16.gmra.mrb[0].mxu0 %v1113
        %v1235 = vpop.f32.mrb[0].mxu0
        %v1236 = vadd.f32 0.0, %v1235
        %v1237 = vpop.f32.mrb[0].mxu0
        %v1238 = vpop.f32.mrb[0].mxu0
        %v1239 = vadd.f32 0.0, %v1238
        %v1240 = vpop.f32.mrb[0].mxu0
        %1241 = vmatprep.mubr.bf16.mxu0 0
        %1242 = vmatmul.mubr.bf16.gmra.mrb[0].mxu0 %v1116
        %v1243 = vpop.f32.mrb[0].mxu0
        %v1244 = vadd.f32 0.0, %v1243
        %v1245 = vpop.f32.mrb[0].mxu0
        %v1246 = vpop.f32.mrb[0].mxu0
        %v1247 = vadd.f32 0.0, %v1246
        %v1248 = vpop.f32.mrb[0].mxu0
        %1249 = vdwg.mxu0
        %v1250 = vadd.f32 %v1019, %v1156
        %v1251 = vadd.f32 %v1020, %v1159
        %v1252 = vadd.f32 %v1021, %v1164
        %v1253 = vadd.f32 %v1022, %v1167
        %v1254 = vadd.f32 %v1023, %v1172
        %v1255 = vadd.f32 %v1024, %v1175
        %v1256 = vadd.f32 %v1025, %v1180
        %v1257 = vadd.f32 %v1026, %v1183
        %v1258 = vadd.f32 %v1027, %v1188
        %v1259 = vadd.f32 %v1028, %v1191
        %v1260 = vadd.f32 %v1029, %v1196
        %v1261 = vadd.f32 %v1030, %v1199
        %v1262 = vadd.f32 %v1031, %v1204
        %v1263 = vadd.f32 %v1032, %v1207
        %v1264 = vadd.f32 %v1033, %v1212
        %v1265 = vadd.f32 %v1034, %v1215
        %v1266 = vadd.f32 %v1035, %v1220
        %v1267 = vadd.f32 %v1036, %v1223
        %v1268 = vadd.f32 %v1037, %v1228
        %v1269 = vadd.f32 %v1038, %v1231
        %v1270 = vadd.f32 %v1039, %v1236
        %v1271 = vadd.f32 %v1040, %v1239
        %v1272 = vadd.f32 %v1041, %v1244
        %v1273 = vadd.f32 %v1042, %v1247
        %s1274 = scalar_lea.vmem %s341, 72 [#allocation3]
        %v1275 = vld [vmem:[%s1274] sm:$0xff]
        %v1276 = vld [vmem:[%s1274 + $0x8] sm:$0xff]
        %v1277 = vld [vmem:[%s1274 + $0x10] sm:$0xff]
        %v1278 = vld [vmem:[%s1274 + $0x18] sm:$0xff]
        %v1279 = vld [vmem:[%s1274 + $0x20] sm:$0xff]
        %v1280 = vld [vmem:[%s1274 + $0x28] sm:$0xff]
        %v1281 = vld [vmem:[%s1274 + $0x40] sm:$0xff]
        %v1282 = vld [vmem:[%s1274 + $0x48] sm:$0xff]
        %v1283 = vld [vmem:[%s1274 + $0x50] sm:$0xff]
        %v1284 = vld [vmem:[%s1274 + $0x58] sm:$0xff]
        %v1285 = vld [vmem:[%s1274 + $0x60] sm:$0xff]
        %v1286 = vld [vmem:[%s1274 + $0x68] sm:$0xff]
        %v1287 = vld [vmem:[%s1274 + $0x80] sm:$0xff]
        %v1288 = vld [vmem:[%s1274 + $0x88] sm:$0xff]
        %v1289 = vld [vmem:[%s1274 + $0x90] sm:$0xff]
        %v1290 = vld [vmem:[%s1274 + $0x98] sm:$0xff]
        %v1291 = vld [vmem:[%s1274 + $0xa0] sm:$0xff]
        %v1292 = vld [vmem:[%s1274 + $0xa8] sm:$0xff]
        %v1293 = vld [vmem:[%s1274 + $0xc0] sm:$0xff]
        %v1294 = vld [vmem:[%s1274 + $0xc8] sm:$0xff]
        %v1295 = vld [vmem:[%s1274 + $0xd0] sm:$0xff]
        %v1296 = vld [vmem:[%s1274 + $0xd8] sm:$0xff]
        %v1297 = vld [vmem:[%s1274 + $0xe0] sm:$0xff]
        %v1298 = vld [vmem:[%s1274 + $0xe8] sm:$0xff]
        %v1299 = vpack.c.bf16 %v1276, %v1275
        %v1300 = vpack.c.bf16 %v1278, %v1277
        %v1301 = vpack.c.bf16 %v1280, %v1279
        %v1302 = vpack.c.bf16 %v1282, %v1281
        %v1303 = vpack.c.bf16 %v1284, %v1283
        %v1304 = vpack.c.bf16 %v1286, %v1285
        %v1305 = vpack.c.bf16 %v1288, %v1287
        %v1306 = vpack.c.bf16 %v1290, %v1289
        %v1307 = vpack.c.bf16 %v1292, %v1291
        %v1308 = vpack.c.bf16 %v1294, %v1293
        %v1309 = vpack.c.bf16 %v1296, %v1295
        %v1310 = vpack.c.bf16 %v1298, %v1297
        %s1311 = scalar_lea.vmem [#allocation6], 8
        %v1312 = vld [vmem:[%s1311] sm:$0x3]
        %v1314 = vsel %vm474, %v1299, 0
        %v1317 = vsel %vm474, %v1300, 0
        %v1320 = vsel %vm474, %v1301, 0
        %v1323 = vsel %vm474, %v1302, 0
        %v1326 = vsel %vm474, %v1303, 0
        %v1329 = vsel %vm474, %v1304, 0
        %v1332 = vsel %vm474, %v1305, 0
        %v1335 = vsel %vm474, %v1306, 0
        %v1338 = vsel %vm474, %v1307, 0
        %v1341 = vsel %vm474, %v1308, 0
        %v1344 = vsel %vm474, %v1309, 0
        %v1347 = vsel %vm474, %v1310, 0
        %v1350 = vsel %vm511, %v1312, 0
        %1352 = vmatprep.subr.bf16.mxu0 0
        %1353 = vmatpush1.bf16.msra.mxu0 %v1350
        %1354 = vmatprep.subr.bf16.mxu0 0
        %1355 = vmatpush1.bf16.msra.mxu0 0
        %1356 = vmatprep.subr.bf16.mxu0 0
        %1357 = vmatpush1.bf16.msra.mxu0 0
        %1358 = vmatprep.subr.bf16.mxu0 0
        %1359 = vmatpush1.bf16.msra.mxu0 0
        %1360 = vmatprep.subr.bf16.mxu0 0
        %1361 = vmatpush1.bf16.msra.mxu0 0
        %1362 = vmatprep.subr.bf16.mxu0 0
        %1363 = vmatpush1.bf16.msra.mxu0 0
        %1364 = vmatprep.subr.bf16.mxu0 0
        %1365 = vmatpush1.bf16.msra.mxu0 0
        %1366 = vmatprep.subr.bf16.mxu0 0
        %1367 = vmatpush1.bf16.msra.mxu0 0
        %1368 = vmatprep.subr.bf16.mxu0 0
        %1369 = vmatpush1.bf16.msra.mxu0 0
        %1370 = vmatprep.subr.bf16.mxu0 0
        %1371 = vmatpush1.bf16.msra.mxu0 0
        %1372 = vmatprep.subr.bf16.mxu0 0
        %1373 = vmatpush1.bf16.msra.mxu0 0
        %1374 = vmatprep.subr.bf16.mxu0 0
        %1375 = vmatpush1.bf16.msra.mxu0 0
        %1376 = vmatprep.subr.bf16.mxu0 0
        %1377 = vmatpush1.bf16.msra.mxu0 0
        %1378 = vmatprep.subr.bf16.mxu0 0
        %1379 = vmatpush1.bf16.msra.mxu0 0
        %1380 = vmatprep.subr.bf16.mxu0 0
        %1381 = vmatpush1.bf16.msra.mxu0 0
        %1382 = vmatprep.subr.bf16.mxu0 0
        %1383 = vmatpush1.bf16.msra.mxu0 0
        %1384 = vmatprep.mubr.bf16.mxu0 0
        %1385 = vmatmul.mubr.bf16.gmra.mrb[0].mxu0 %v1314
        %v1386 = vpop.f32.mrb[0].mxu0
        %v1387 = vadd.f32 0.0, %v1386
        %v1388 = vpop.f32.mrb[0].mxu0
        %v1389 = vpop.f32.mrb[0].mxu0
        %v1390 = vadd.f32 0.0, %v1389
        %v1391 = vpop.f32.mrb[0].mxu0
        %1392 = vmatprep.mubr.bf16.mxu0 0
        %1393 = vmatmul.mubr.bf16.gmra.mrb[0].mxu0 %v1317
        %v1394 = vpop.f32.mrb[0].mxu0
        %v1395 = vadd.f32 0.0, %v1394
        %v1396 = vpop.f32.mrb[0].mxu0
        %v1397 = vpop.f32.mrb[0].mxu0
        %v1398 = vadd.f32 0.0, %v1397
        %v1399 = vpop.f32.mrb[0].mxu0
        %1400 = vmatprep.mubr.bf16.mxu0 0
        %1401 = vmatmul.mubr.bf16.gmra.mrb[0].mxu0 %v1320
        %v1402 = vpop.f32.mrb[0].mxu0
        %v1403 = vadd.f32 0.0, %v1402
        %v1404 = vpop.f32.mrb[0].mxu0
        %v1405 = vpop.f32.mrb[0].mxu0
        %v1406 = vadd.f32 0.0, %v1405
        %v1407 = vpop.f32.mrb[0].mxu0
        %1408 = vmatprep.mubr.bf16.mxu0 0
        %1409 = vmatmul.mubr.bf16.gmra.mrb[0].mxu0 %v1323
        %v1410 = vpop.f32.mrb[0].mxu0
        %v1411 = vadd.f32 0.0, %v1410
        %v1412 = vpop.f32.mrb[0].mxu0
        %v1413 = vpop.f32.mrb[0].mxu0
        %v1414 = vadd.f32 0.0, %v1413
        %v1415 = vpop.f32.mrb[0].mxu0
        %1416 = vmatprep.mubr.bf16.mxu0 0
        %1417 = vmatmul.mubr.bf16.gmra.mrb[0].mxu0 %v1326
        %v1418 = vpop.f32.mrb[0].mxu0
        %v1419 = vadd.f32 0.0, %v1418
        %v1420 = vpop.f32.mrb[0].mxu0
        %v1421 = vpop.f32.mrb[0].mxu0
        %v1422 = vadd.f32 0.0, %v1421
        %v1423 = vpop.f32.mrb[0].mxu0
        %1424 = vmatprep.mubr.bf16.mxu0 0
        %1425 = vmatmul.mubr.bf16.gmra.mrb[0].mxu0 %v1329
        %v1426 = vpop.f32.mrb[0].mxu0
        %v1427 = vadd.f32 0.0, %v1426
        %v1428 = vpop.f32.mrb[0].mxu0
        %v1429 = vpop.f32.mrb[0].mxu0
        %v1430 = vadd.f32 0.0, %v1429
        %v1431 = vpop.f32.mrb[0].mxu0
        %1432 = vmatprep.mubr.bf16.mxu0 0
        %1433 = vmatmul.mubr.bf16.gmra.mrb[0].mxu0 %v1332
        %v1434 = vpop.f32.mrb[0].mxu0
        %v1435 = vadd.f32 0.0, %v1434
        %v1436 = vpop.f32.mrb[0].mxu0
        %v1437 = vpop.f32.mrb[0].mxu0
        %v1438 = vadd.f32 0.0, %v1437
        %v1439 = vpop.f32.mrb[0].mxu0
        %1440 = vmatprep.mubr.bf16.mxu0 0
        %1441 = vmatmul.mubr.bf16.gmra.mrb[0].mxu0 %v1335
        %v1442 = vpop.f32.mrb[0].mxu0
        %v1443 = vadd.f32 0.0, %v1442
        %v1444 = vpop.f32.mrb[0].mxu0
        %v1445 = vpop.f32.mrb[0].mxu0
        %v1446 = vadd.f32 0.0, %v1445
        %v1447 = vpop.f32.mrb[0].mxu0
        %1448 = vmatprep.mubr.bf16.mxu0 0
        %1449 = vmatmul.mubr.bf16.gmra.mrb[0].mxu0 %v1338
        %v1450 = vpop.f32.mrb[0].mxu0
        %v1451 = vadd.f32 0.0, %v1450
        %v1452 = vpop.f32.mrb[0].mxu0
        %v1453 = vpop.f32.mrb[0].mxu0
        %v1454 = vadd.f32 0.0, %v1453
        %v1455 = vpop.f32.mrb[0].mxu0
        %1456 = vmatprep.mubr.bf16.mxu0 0
        %1457 = vmatmul.mubr.bf16.gmra.mrb[0].mxu0 %v1341
        %v1458 = vpop.f32.mrb[0].mxu0
        %v1459 = vadd.f32 0.0, %v1458
        %v1460 = vpop.f32.mrb[0].mxu0
        %v1461 = vpop.f32.mrb[0].mxu0
        %v1462 = vadd.f32 0.0, %v1461
        %v1463 = vpop.f32.mrb[0].mxu0
        %1464 = vmatprep.mubr.bf16.mxu0 0
        %1465 = vmatmul.mubr.bf16.gmra.mrb[0].mxu0 %v1344
        %v1466 = vpop.f32.mrb[0].mxu0
        %v1467 = vadd.f32 0.0, %v1466
        %v1468 = vpop.f32.mrb[0].mxu0
        %v1469 = vpop.f32.mrb[0].mxu0
        %v1470 = vadd.f32 0.0, %v1469
        %v1471 = vpop.f32.mrb[0].mxu0
        %1472 = vmatprep.mubr.bf16.mxu0 0
        %1473 = vmatmul.mubr.bf16.gmra.mrb[0].mxu0 %v1347
        %v1474 = vpop.f32.mrb[0].mxu0
        %v1475 = vadd.f32 0.0, %v1474
        %v1476 = vpop.f32.mrb[0].mxu0
        %v1477 = vpop.f32.mrb[0].mxu0
        %v1478 = vadd.f32 0.0, %v1477
        %v1479 = vpop.f32.mrb[0].mxu0
        %1480 = vdwg.mxu0
        %v1481 = vadd.f32 %v1250, %v1387
        %v1482 = vadd.f32 %v1251, %v1390
        %v1483 = vadd.f32 %v1252, %v1395
        %v1484 = vadd.f32 %v1253, %v1398
        %v1485 = vadd.f32 %v1254, %v1403
        %v1486 = vadd.f32 %v1255, %v1406
        %v1487 = vadd.f32 %v1256, %v1411
        %v1488 = vadd.f32 %v1257, %v1414
        %v1489 = vadd.f32 %v1258, %v1419
        %v1490 = vadd.f32 %v1259, %v1422
        %v1491 = vadd.f32 %v1260, %v1427
        %v1492 = vadd.f32 %v1261, %v1430
        %v1493 = vadd.f32 %v1262, %v1435
        %v1494 = vadd.f32 %v1263, %v1438
        %v1495 = vadd.f32 %v1264, %v1443
        %v1496 = vadd.f32 %v1265, %v1446
        %v1497 = vadd.f32 %v1266, %v1451
        %v1498 = vadd.f32 %v1267, %v1454
        %v1499 = vadd.f32 %v1268, %v1459
        %v1500 = vadd.f32 %v1269, %v1462
        %v1501 = vadd.f32 %v1270, %v1467
        %v1502 = vadd.f32 %v1271, %v1470
        %v1503 = vadd.f32 %v1272, %v1475
        %v1504 = vadd.f32 %v1273, %v1478
        %s1505 = scalar_lea.vmem %s341, 80 [#allocation3]
        %v1506 = vld [vmem:[%s1505] sm:$0xff]
        %v1507 = vld [vmem:[%s1505 + $0x8] sm:$0xff]
        %v1508 = vld [vmem:[%s1505 + $0x10] sm:$0xff]
        %v1509 = vld [vmem:[%s1505 + $0x18] sm:$0xff]
        %v1510 = vld [vmem:[%s1505 + $0x20] sm:$0xff]
        %v1511 = vld [vmem:[%s1505 + $0x28] sm:$0xff]
        %v1512 = vld [vmem:[%s1505 + $0x40] sm:$0xff]
        %v1513 = vld [vmem:[%s1505 + $0x48] sm:$0xff]
        %v1514 = vld [vmem:[%s1505 + $0x50] sm:$0xff]
        %v1515 = vld [vmem:[%s1505 + $0x58] sm:$0xff]
        %v1516 = vld [vmem:[%s1505 + $0x60] sm:$0xff]
        %v1517 = vld [vmem:[%s1505 + $0x68] sm:$0xff]
        %v1518 = vld [vmem:[%s1505 + $0x80] sm:$0xff]
        %v1519 = vld [vmem:[%s1505 + $0x88] sm:$0xff]
        %v1520 = vld [vmem:[%s1505 + $0x90] sm:$0xff]
        %v1521 = vld [vmem:[%s1505 + $0x98] sm:$0xff]
        %v1522 = vld [vmem:[%s1505 + $0xa0] sm:$0xff]
        %v1523 = vld [vmem:[%s1505 + $0xa8] sm:$0xff]
        %v1524 = vld [vmem:[%s1505 + $0xc0] sm:$0xff]
        %v1525 = vld [vmem:[%s1505 + $0xc8] sm:$0xff]
        %v1526 = vld [vmem:[%s1505 + $0xd0] sm:$0xff]
        %v1527 = vld [vmem:[%s1505 + $0xd8] sm:$0xff]
        %v1528 = vld [vmem:[%s1505 + $0xe0] sm:$0xff]
        %v1529 = vld [vmem:[%s1505 + $0xe8] sm:$0xff]
        %v1530 = vpack.c.bf16 %v1507, %v1506
        %v1531 = vpack.c.bf16 %v1509, %v1508
        %v1532 = vpack.c.bf16 %v1511, %v1510
        %v1533 = vpack.c.bf16 %v1513, %v1512
        %v1534 = vpack.c.bf16 %v1515, %v1514
        %v1535 = vpack.c.bf16 %v1517, %v1516
        %v1536 = vpack.c.bf16 %v1519, %v1518
        %v1537 = vpack.c.bf16 %v1521, %v1520
        %v1538 = vpack.c.bf16 %v1523, %v1522
        %v1539 = vpack.c.bf16 %v1525, %v1524
        %v1540 = vpack.c.bf16 %v1527, %v1526
        %v1541 = vpack.c.bf16 %v1529, %v1528
        %s1542 = scalar_lea.vmem [#allocation6], 10
        %v1543 = vld [vmem:[%s1542] sm:$0x3]
        %v1545 = vsel %vm474, %v1530, 0
        %v1548 = vsel %vm474, %v1531, 0
        %v1551 = vsel %vm474, %v1532, 0
        %v1554 = vsel %vm474, %v1533, 0
        %v1557 = vsel %vm474, %v1534, 0
        %v1560 = vsel %vm474, %v1535, 0
        %v1563 = vsel %vm474, %v1536, 0
        %v1566 = vsel %vm474, %v1537, 0
        %v1569 = vsel %vm474, %v1538, 0
        %v1572 = vsel %vm474, %v1539, 0
        %v1575 = vsel %vm474, %v1540, 0
        %v1578 = vsel %vm474, %v1541, 0
        %v1581 = vsel %vm511, %v1543, 0
        %1583 = vmatprep.subr.bf16.mxu0 0
        %1584 = vmatpush1.bf16.msra.mxu0 %v1581
        %1585 = vmatprep.subr.bf16.mxu0 0
        %1586 = vmatpush1.bf16.msra.mxu0 0
        %1587 = vmatprep.subr.bf16.mxu0 0
        %1588 = vmatpush1.bf16.msra.mxu0 0
        %1589 = vmatprep.subr.bf16.mxu0 0
        %1590 = vmatpush1.bf16.msra.mxu0 0
        %1591 = vmatprep.subr.bf16.mxu0 0
        %1592 = vmatpush1.bf16.msra.mxu0 0
        %1593 = vmatprep.subr.bf16.mxu0 0
        %1594 = vmatpush1.bf16.msra.mxu0 0
        %1595 = vmatprep.subr.bf16.mxu0 0
        %1596 = vmatpush1.bf16.msra.mxu0 0
        %1597 = vmatprep.subr.bf16.mxu0 0
        %1598 = vmatpush1.bf16.msra.mxu0 0
        %1599 = vmatprep.subr.bf16.mxu0 0
        %1600 = vmatpush1.bf16.msra.mxu0 0
        %1601 = vmatprep.subr.bf16.mxu0 0
        %1602 = vmatpush1.bf16.msra.mxu0 0
        %1603 = vmatprep.subr.bf16.mxu0 0
        %1604 = vmatpush1.bf16.msra.mxu0 0
        %1605 = vmatprep.subr.bf16.mxu0 0
        %1606 = vmatpush1.bf16.msra.mxu0 0
        %1607 = vmatprep.subr.bf16.mxu0 0
        %1608 = vmatpush1.bf16.msra.mxu0 0
        %1609 = vmatprep.subr.bf16.mxu0 0
        %1610 = vmatpush1.bf16.msra.mxu0 0
        %1611 = vmatprep.subr.bf16.mxu0 0
        %1612 = vmatpush1.bf16.msra.mxu0 0
        %1613 = vmatprep.subr.bf16.mxu0 0
        %1614 = vmatpush1.bf16.msra.mxu0 0
        %1615 = vmatprep.mubr.bf16.mxu0 0
        %1616 = vmatmul.mubr.bf16.gmra.mrb[0].mxu0 %v1545
        %v1617 = vpop.f32.mrb[0].mxu0
        %v1618 = vadd.f32 0.0, %v1617
        %v1619 = vpop.f32.mrb[0].mxu0
        %v1620 = vpop.f32.mrb[0].mxu0
        %v1621 = vadd.f32 0.0, %v1620
        %v1622 = vpop.f32.mrb[0].mxu0
        %1623 = vmatprep.mubr.bf16.mxu0 0
        %1624 = vmatmul.mubr.bf16.gmra.mrb[0].mxu0 %v1548
        %v1625 = vpop.f32.mrb[0].mxu0
        %v1626 = vadd.f32 0.0, %v1625
        %v1627 = vpop.f32.mrb[0].mxu0
        %v1628 = vpop.f32.mrb[0].mxu0
        %v1629 = vadd.f32 0.0, %v1628
        %v1630 = vpop.f32.mrb[0].mxu0
        %1631 = vmatprep.mubr.bf16.mxu0 0
        %1632 = vmatmul.mubr.bf16.gmra.mrb[0].mxu0 %v1551
        %v1633 = vpop.f32.mrb[0].mxu0
        %v1634 = vadd.f32 0.0, %v1633
        %v1635 = vpop.f32.mrb[0].mxu0
        %v1636 = vpop.f32.mrb[0].mxu0
        %v1637 = vadd.f32 0.0, %v1636
        %v1638 = vpop.f32.mrb[0].mxu0
        %1639 = vmatprep.mubr.bf16.mxu0 0
        %1640 = vmatmul.mubr.bf16.gmra.mrb[0].mxu0 %v1554
        %v1641 = vpop.f32.mrb[0].mxu0
        %v1642 = vadd.f32 0.0, %v1641
        %v1643 = vpop.f32.mrb[0].mxu0
        %v1644 = vpop.f32.mrb[0].mxu0
        %v1645 = vadd.f32 0.0, %v1644
        %v1646 = vpop.f32.mrb[0].mxu0
        %1647 = vmatprep.mubr.bf16.mxu0 0
        %1648 = vmatmul.mubr.bf16.gmra.mrb[0].mxu0 %v1557
        %v1649 = vpop.f32.mrb[0].mxu0
        %v1650 = vadd.f32 0.0, %v1649
        %v1651 = vpop.f32.mrb[0].mxu0
        %v1652 = vpop.f32.mrb[0].mxu0
        %v1653 = vadd.f32 0.0, %v1652
        %v1654 = vpop.f32.mrb[0].mxu0
        %1655 = vmatprep.mubr.bf16.mxu0 0
        %1656 = vmatmul.mubr.bf16.gmra.mrb[0].mxu0 %v1560
        %v1657 = vpop.f32.mrb[0].mxu0
        %v1658 = vadd.f32 0.0, %v1657
        %v1659 = vpop.f32.mrb[0].mxu0
        %v1660 = vpop.f32.mrb[0].mxu0
        %v1661 = vadd.f32 0.0, %v1660
        %v1662 = vpop.f32.mrb[0].mxu0
        %1663 = vmatprep.mubr.bf16.mxu0 0
        %1664 = vmatmul.mubr.bf16.gmra.mrb[0].mxu0 %v1563
        %v1665 = vpop.f32.mrb[0].mxu0
        %v1666 = vadd.f32 0.0, %v1665
        %v1667 = vpop.f32.mrb[0].mxu0
        %v1668 = vpop.f32.mrb[0].mxu0
        %v1669 = vadd.f32 0.0, %v1668
        %v1670 = vpop.f32.mrb[0].mxu0
        %1671 = vmatprep.mubr.bf16.mxu0 0
        %1672 = vmatmul.mubr.bf16.gmra.mrb[0].mxu0 %v1566
        %v1673 = vpop.f32.mrb[0].mxu0
        %v1674 = vadd.f32 0.0, %v1673
        %v1675 = vpop.f32.mrb[0].mxu0
        %v1676 = vpop.f32.mrb[0].mxu0
        %v1677 = vadd.f32 0.0, %v1676
        %v1678 = vpop.f32.mrb[0].mxu0
        %1679 = vmatprep.mubr.bf16.mxu0 0
        %1680 = vmatmul.mubr.bf16.gmra.mrb[0].mxu0 %v1569
        %v1681 = vpop.f32.mrb[0].mxu0
        %v1682 = vadd.f32 0.0, %v1681
        %v1683 = vpop.f32.mrb[0].mxu0
        %v1684 = vpop.f32.mrb[0].mxu0
        %v1685 = vadd.f32 0.0, %v1684
        %v1686 = vpop.f32.mrb[0].mxu0
        %1687 = vmatprep.mubr.bf16.mxu0 0
        %1688 = vmatmul.mubr.bf16.gmra.mrb[0].mxu0 %v1572
        %v1689 = vpop.f32.mrb[0].mxu0
        %v1690 = vadd.f32 0.0, %v1689
        %v1691 = vpop.f32.mrb[0].mxu0
        %v1692 = vpop.f32.mrb[0].mxu0
        %v1693 = vadd.f32 0.0, %v1692
        %v1694 = vpop.f32.mrb[0].mxu0
        %1695 = vmatprep.mubr.bf16.mxu0 0
        %1696 = vmatmul.mubr.bf16.gmra.mrb[0].mxu0 %v1575
        %v1697 = vpop.f32.mrb[0].mxu0
        %v1698 = vadd.f32 0.0, %v1697
        %v1699 = vpop.f32.mrb[0].mxu0
        %v1700 = vpop.f32.mrb[0].mxu0
        %v1701 = vadd.f32 0.0, %v1700
        %v1702 = vpop.f32.mrb[0].mxu0
        %1703 = vmatprep.mubr.bf16.mxu0 0
        %1704 = vmatmul.mubr.bf16.gmra.mrb[0].mxu0 %v1578
        %v1705 = vpop.f32.mrb[0].mxu0
        %v1706 = vadd.f32 0.0, %v1705
        %v1707 = vpop.f32.mrb[0].mxu0
        %v1708 = vpop.f32.mrb[0].mxu0
        %v1709 = vadd.f32 0.0, %v1708
        %v1710 = vpop.f32.mrb[0].mxu0
        %1711 = vdwg.mxu0
        %v1712 = vadd.f32 %v1481, %v1618
        %v1713 = vadd.f32 %v1482, %v1621
        %v1714 = vadd.f32 %v1483, %v1626
        %v1715 = vadd.f32 %v1484, %v1629
        %v1716 = vadd.f32 %v1485, %v1634
        %v1717 = vadd.f32 %v1486, %v1637
        %v1718 = vadd.f32 %v1487, %v1642
        %v1719 = vadd.f32 %v1488, %v1645
        %v1720 = vadd.f32 %v1489, %v1650
        %v1721 = vadd.f32 %v1490, %v1653
        %v1722 = vadd.f32 %v1491, %v1658
        %v1723 = vadd.f32 %v1492, %v1661
        %v1724 = vadd.f32 %v1493, %v1666
        %v1725 = vadd.f32 %v1494, %v1669
        %v1726 = vadd.f32 %v1495, %v1674
        %v1727 = vadd.f32 %v1496, %v1677
        %v1728 = vadd.f32 %v1497, %v1682
        %v1729 = vadd.f32 %v1498, %v1685
        %v1730 = vadd.f32 %v1499, %v1690
        %v1731 = vadd.f32 %v1500, %v1693
        %v1732 = vadd.f32 %v1501, %v1698
        %v1733 = vadd.f32 %v1502, %v1701
        %v1734 = vadd.f32 %v1503, %v1706
        %v1735 = vadd.f32 %v1504, %v1709
        %s1736 = scalar_lea.vmem %s341, 128 [#allocation3]
        %v1737 = vld [vmem:[%s1736] sm:$0xff]
        %v1738 = vld [vmem:[%s1736 + $0x8] sm:$0xff]
        %v1739 = vld [vmem:[%s1736 + $0x10] sm:$0xff]
        %v1740 = vld [vmem:[%s1736 + $0x18] sm:$0xff]
        %v1741 = vld [vmem:[%s1736 + $0x20] sm:$0xff]
        %v1742 = vld [vmem:[%s1736 + $0x28] sm:$0xff]
        %v1743 = vld [vmem:[%s1736 + $0x40] sm:$0xff]
        %v1744 = vld [vmem:[%s1736 + $0x48] sm:$0xff]
        %v1745 = vld [vmem:[%s1736 + $0x50] sm:$0xff]
        %v1746 = vld [vmem:[%s1736 + $0x58] sm:$0xff]
        %v1747 = vld [vmem:[%s1736 + $0x60] sm:$0xff]
        %v1748 = vld [vmem:[%s1736 + $0x68] sm:$0xff]
        %v1749 = vld [vmem:[%s1736 + $0x80] sm:$0xff]
        %v1750 = vld [vmem:[%s1736 + $0x88] sm:$0xff]
        %v1751 = vld [vmem:[%s1736 + $0x90] sm:$0xff]
        %v1752 = vld [vmem:[%s1736 + $0x98] sm:$0xff]
        %v1753 = vld [vmem:[%s1736 + $0xa0] sm:$0xff]
        %v1754 = vld [vmem:[%s1736 + $0xa8] sm:$0xff]
        %v1755 = vld [vmem:[%s1736 + $0xc0] sm:$0xff]
        %v1756 = vld [vmem:[%s1736 + $0xc8] sm:$0xff]
        %v1757 = vld [vmem:[%s1736 + $0xd0] sm:$0xff]
        %v1758 = vld [vmem:[%s1736 + $0xd8] sm:$0xff]
        %v1759 = vld [vmem:[%s1736 + $0xe0] sm:$0xff]
        %v1760 = vld [vmem:[%s1736 + $0xe8] sm:$0xff]
        %v1761 = vpack.c.bf16 %v1738, %v1737
        %v1762 = vpack.c.bf16 %v1740, %v1739
        %v1763 = vpack.c.bf16 %v1742, %v1741
        %v1764 = vpack.c.bf16 %v1744, %v1743
        %v1765 = vpack.c.bf16 %v1746, %v1745
        %v1766 = vpack.c.bf16 %v1748, %v1747
        %v1767 = vpack.c.bf16 %v1750, %v1749
        %v1768 = vpack.c.bf16 %v1752, %v1751
        %v1769 = vpack.c.bf16 %v1754, %v1753
        %v1770 = vpack.c.bf16 %v1756, %v1755
        %v1771 = vpack.c.bf16 %v1758, %v1757
        %v1772 = vpack.c.bf16 %v1760, %v1759
        %s1773 = scalar_lea.vmem [#allocation6], 12
        %v1774 = vld [vmem:[%s1773] sm:$0x3]
        %v1776 = vsel %vm474, %v1761, 0
        %v1779 = vsel %vm474, %v1762, 0
        %v1782 = vsel %vm474, %v1763, 0
        %v1785 = vsel %vm474, %v1764, 0
        %v1788 = vsel %vm474, %v1765, 0
        %v1791 = vsel %vm474, %v1766, 0
        %v1794 = vsel %vm474, %v1767, 0
        %v1797 = vsel %vm474, %v1768, 0
        %v1800 = vsel %vm474, %v1769, 0
        %v1803 = vsel %vm474, %v1770, 0
        %v1806 = vsel %vm474, %v1771, 0
        %v1809 = vsel %vm474, %v1772, 0
        %v1812 = vsel %vm511, %v1774, 0
        %1814 = vmatprep.subr.bf16.mxu0 0
        %1815 = vmatpush1.bf16.msra.mxu0 %v1812
        %1816 = vmatprep.subr.bf16.mxu0 0
        %1817 = vmatpush1.bf16.msra.mxu0 0
        %1818 = vmatprep.subr.bf16.mxu0 0
        %1819 = vmatpush1.bf16.msra.mxu0 0
        %1820 = vmatprep.subr.bf16.mxu0 0
        %1821 = vmatpush1.bf16.msra.mxu0 0
        %1822 = vmatprep.subr.bf16.mxu0 0
        %1823 = vmatpush1.bf16.msra.mxu0 0
        %1824 = vmatprep.subr.bf16.mxu0 0
        %1825 = vmatpush1.bf16.msra.mxu0 0
        %1826 = vmatprep.subr.bf16.mxu0 0
        %1827 = vmatpush1.bf16.msra.mxu0 0
        %1828 = vmatprep.subr.bf16.mxu0 0
        %1829 = vmatpush1.bf16.msra.mxu0 0
        %1830 = vmatprep.subr.bf16.mxu0 0
        %1831 = vmatpush1.bf16.msra.mxu0 0
        %1832 = vmatprep.subr.bf16.mxu0 0
        %1833 = vmatpush1.bf16.msra.mxu0 0
        %1834 = vmatprep.subr.bf16.mxu0 0
        %1835 = vmatpush1.bf16.msra.mxu0 0
        %1836 = vmatprep.subr.bf16.mxu0 0
        %1837 = vmatpush1.bf16.msra.mxu0 0
        %1838 = vmatprep.subr.bf16.mxu0 0
        %1839 = vmatpush1.bf16.msra.mxu0 0
        %1840 = vmatprep.subr.bf16.mxu0 0
        %1841 = vmatpush1.bf16.msra.mxu0 0
        %1842 = vmatprep.subr.bf16.mxu0 0
        %1843 = vmatpush1.bf16.msra.mxu0 0
        %1844 = vmatprep.subr.bf16.mxu0 0
        %1845 = vmatpush1.bf16.msra.mxu0 0
        %1846 = vmatprep.mubr.bf16.mxu0 0
        %1847 = vmatmul.mubr.bf16.gmra.mrb[0].mxu0 %v1776
        %v1848 = vpop.f32.mrb[0].mxu0
        %v1849 = vadd.f32 0.0, %v1848
        %v1850 = vpop.f32.mrb[0].mxu0
        %v1851 = vpop.f32.mrb[0].mxu0
        %v1852 = vadd.f32 0.0, %v1851
        %v1853 = vpop.f32.mrb[0].mxu0
        %1854 = vmatprep.mubr.bf16.mxu0 0
        %1855 = vmatmul.mubr.bf16.gmra.mrb[0].mxu0 %v1779
        %v1856 = vpop.f32.mrb[0].mxu0
        %v1857 = vadd.f32 0.0, %v1856
        %v1858 = vpop.f32.mrb[0].mxu0
        %v1859 = vpop.f32.mrb[0].mxu0
        %v1860 = vadd.f32 0.0, %v1859
        %v1861 = vpop.f32.mrb[0].mxu0
        %1862 = vmatprep.mubr.bf16.mxu0 0
        %1863 = vmatmul.mubr.bf16.gmra.mrb[0].mxu0 %v1782
        %v1864 = vpop.f32.mrb[0].mxu0
        %v1865 = vadd.f32 0.0, %v1864
        %v1866 = vpop.f32.mrb[0].mxu0
        %v1867 = vpop.f32.mrb[0].mxu0
        %v1868 = vadd.f32 0.0, %v1867
        %v1869 = vpop.f32.mrb[0].mxu0
        %1870 = vmatprep.mubr.bf16.mxu0 0
        %1871 = vmatmul.mubr.bf16.gmra.mrb[0].mxu0 %v1785
        %v1872 = vpop.f32.mrb[0].mxu0
        %v1873 = vadd.f32 0.0, %v1872
        %v1874 = vpop.f32.mrb[0].mxu0
        %v1875 = vpop.f32.mrb[0].mxu0
        %v1876 = vadd.f32 0.0, %v1875
        %v1877 = vpop.f32.mrb[0].mxu0
        %1878 = vmatprep.mubr.bf16.mxu0 0
        %1879 = vmatmul.mubr.bf16.gmra.mrb[0].mxu0 %v1788
        %v1880 = vpop.f32.mrb[0].mxu0
        %v1881 = vadd.f32 0.0, %v1880
        %v1882 = vpop.f32.mrb[0].mxu0
        %v1883 = vpop.f32.mrb[0].mxu0
        %v1884 = vadd.f32 0.0, %v1883
        %v1885 = vpop.f32.mrb[0].mxu0
        %1886 = vmatprep.mubr.bf16.mxu0 0
        %1887 = vmatmul.mubr.bf16.gmra.mrb[0].mxu0 %v1791
        %v1888 = vpop.f32.mrb[0].mxu0
        %v1889 = vadd.f32 0.0, %v1888
        %v1890 = vpop.f32.mrb[0].mxu0
        %v1891 = vpop.f32.mrb[0].mxu0
        %v1892 = vadd.f32 0.0, %v1891
        %v1893 = vpop.f32.mrb[0].mxu0
        %1894 = vmatprep.mubr.bf16.mxu0 0
        %1895 = vmatmul.mubr.bf16.gmra.mrb[0].mxu0 %v1794
        %v1896 = vpop.f32.mrb[0].mxu0
        %v1897 = vadd.f32 0.0, %v1896
        %v1898 = vpop.f32.mrb[0].mxu0
        %v1899 = vpop.f32.mrb[0].mxu0
        %v1900 = vadd.f32 0.0, %v1899
        %v1901 = vpop.f32.mrb[0].mxu0
        %1902 = vmatprep.mubr.bf16.mxu0 0
        %1903 = vmatmul.mubr.bf16.gmra.mrb[0].mxu0 %v1797
        %v1904 = vpop.f32.mrb[0].mxu0
        %v1905 = vadd.f32 0.0, %v1904
        %v1906 = vpop.f32.mrb[0].mxu0
        %v1907 = vpop.f32.mrb[0].mxu0
        %v1908 = vadd.f32 0.0, %v1907
        %v1909 = vpop.f32.mrb[0].mxu0
        %1910 = vmatprep.mubr.bf16.mxu0 0
        %1911 = vmatmul.mubr.bf16.gmra.mrb[0].mxu0 %v1800
        %v1912 = vpop.f32.mrb[0].mxu0
        %v1913 = vadd.f32 0.0, %v1912
        %v1914 = vpop.f32.mrb[0].mxu0
        %v1915 = vpop.f32.mrb[0].mxu0
        %v1916 = vadd.f32 0.0, %v1915
        %v1917 = vpop.f32.mrb[0].mxu0
        %1918 = vmatprep.mubr.bf16.mxu0 0
        %1919 = vmatmul.mubr.bf16.gmra.mrb[0].mxu0 %v1803
        %v1920 = vpop.f32.mrb[0].mxu0
        %v1921 = vadd.f32 0.0, %v1920
        %v1922 = vpop.f32.mrb[0].mxu0
        %v1923 = vpop.f32.mrb[0].mxu0
        %v1924 = vadd.f32 0.0, %v1923
        %v1925 = vpop.f32.mrb[0].mxu0
        %1926 = vmatprep.mubr.bf16.mxu0 0
        %1927 = vmatmul.mubr.bf16.gmra.mrb[0].mxu0 %v1806
        %v1928 = vpop.f32.mrb[0].mxu0
        %v1929 = vadd.f32 0.0, %v1928
        %v1930 = vpop.f32.mrb[0].mxu0
        %v1931 = vpop.f32.mrb[0].mxu0
        %v1932 = vadd.f32 0.0, %v1931
        %v1933 = vpop.f32.mrb[0].mxu0
        %1934 = vmatprep.mubr.bf16.mxu0 0
        %1935 = vmatmul.mubr.bf16.gmra.mrb[0].mxu0 %v1809
        %v1936 = vpop.f32.mrb[0].mxu0
        %v1937 = vadd.f32 0.0, %v1936
        %v1938 = vpop.f32.mrb[0].mxu0
        %v1939 = vpop.f32.mrb[0].mxu0
        %v1940 = vadd.f32 0.0, %v1939
        %v1941 = vpop.f32.mrb[0].mxu0
        %1942 = vdwg.mxu0
        %v1943 = vadd.f32 %v1712, %v1849
        %v1944 = vadd.f32 %v1713, %v1852
        %v1945 = vadd.f32 %v1714, %v1857
        %v1946 = vadd.f32 %v1715, %v1860
        %v1947 = vadd.f32 %v1716, %v1865
        %v1948 = vadd.f32 %v1717, %v1868
        %v1949 = vadd.f32 %v1718, %v1873
        %v1950 = vadd.f32 %v1719, %v1876
        %v1951 = vadd.f32 %v1720, %v1881
        %v1952 = vadd.f32 %v1721, %v1884
        %v1953 = vadd.f32 %v1722, %v1889
        %v1954 = vadd.f32 %v1723, %v1892
        %v1955 = vadd.f32 %v1724, %v1897
        %v1956 = vadd.f32 %v1725, %v1900
        %v1957 = vadd.f32 %v1726, %v1905
        %v1958 = vadd.f32 %v1727, %v1908
        %v1959 = vadd.f32 %v1728, %v1913
        %v1960 = vadd.f32 %v1729, %v1916
        %v1961 = vadd.f32 %v1730, %v1921
        %v1962 = vadd.f32 %v1731, %v1924
        %v1963 = vadd.f32 %v1732, %v1929
        %v1964 = vadd.f32 %v1733, %v1932
        %v1965 = vadd.f32 %v1734, %v1937
        %v1966 = vadd.f32 %v1735, %v1940
        %s1967 = scalar_lea.vmem %s341, 136 [#allocation3]
        %v1968 = vld [vmem:[%s1967] sm:$0xff]
        %v1969 = vld [vmem:[%s1967 + $0x8] sm:$0xff]
        %v1970 = vld [vmem:[%s1967 + $0x10] sm:$0xff]
        %v1971 = vld [vmem:[%s1967 + $0x18] sm:$0xff]
        %v1972 = vld [vmem:[%s1967 + $0x20] sm:$0xff]
        %v1973 = vld [vmem:[%s1967 + $0x28] sm:$0xff]
        %v1974 = vld [vmem:[%s1967 + $0x40] sm:$0xff]
        %v1975 = vld [vmem:[%s1967 + $0x48] sm:$0xff]
        %v1976 = vld [vmem:[%s1967 + $0x50] sm:$0xff]
        %v1977 = vld [vmem:[%s1967 + $0x58] sm:$0xff]
        %v1978 = vld [vmem:[%s1967 + $0x60] sm:$0xff]
        %v1979 = vld [vmem:[%s1967 + $0x68] sm:$0xff]
        %v1980 = vld [vmem:[%s1967 + $0x80] sm:$0xff]
        %v1981 = vld [vmem:[%s1967 + $0x88] sm:$0xff]
        %v1982 = vld [vmem:[%s1967 + $0x90] sm:$0xff]
        %v1983 = vld [vmem:[%s1967 + $0x98] sm:$0xff]
        %v1984 = vld [vmem:[%s1967 + $0xa0] sm:$0xff]
        %v1985 = vld [vmem:[%s1967 + $0xa8] sm:$0xff]
        %v1986 = vld [vmem:[%s1967 + $0xc0] sm:$0xff]
        %v1987 = vld [vmem:[%s1967 + $0xc8] sm:$0xff]
        %v1988 = vld [vmem:[%s1967 + $0xd0] sm:$0xff]
        %v1989 = vld [vmem:[%s1967 + $0xd8] sm:$0xff]
        %v1990 = vld [vmem:[%s1967 + $0xe0] sm:$0xff]
        %v1991 = vld [vmem:[%s1967 + $0xe8] sm:$0xff]
        %v1992 = vpack.c.bf16 %v1969, %v1968
        %v1993 = vpack.c.bf16 %v1971, %v1970
        %v1994 = vpack.c.bf16 %v1973, %v1972
        %v1995 = vpack.c.bf16 %v1975, %v1974
        %v1996 = vpack.c.bf16 %v1977, %v1976
        %v1997 = vpack.c.bf16 %v1979, %v1978
        %v1998 = vpack.c.bf16 %v1981, %v1980
        %v1999 = vpack.c.bf16 %v1983, %v1982
        %v2000 = vpack.c.bf16 %v1985, %v1984
        %v2001 = vpack.c.bf16 %v1987, %v1986
        %v2002 = vpack.c.bf16 %v1989, %v1988
        %v2003 = vpack.c.bf16 %v1991, %v1990
        %s2004 = scalar_lea.vmem [#allocation6], 14
        %v2005 = vld [vmem:[%s2004] sm:$0x3]
        %v2007 = vsel %vm474, %v1992, 0
        %v2010 = vsel %vm474, %v1993, 0
        %v2013 = vsel %vm474, %v1994, 0
        %v2016 = vsel %vm474, %v1995, 0
        %v2019 = vsel %vm474, %v1996, 0
        %v2022 = vsel %vm474, %v1997, 0
        %v2025 = vsel %vm474, %v1998, 0
        %v2028 = vsel %vm474, %v1999, 0
        %v2031 = vsel %vm474, %v2000, 0
        %v2034 = vsel %vm474, %v2001, 0
        %v2037 = vsel %vm474, %v2002, 0
        %v2040 = vsel %vm474, %v2003, 0
        %v2043 = vsel %vm511, %v2005, 0
        %2045 = vmatprep.subr.bf16.mxu0 0
        %2046 = vmatpush1.bf16.msra.mxu0 %v2043
        %2047 = vmatprep.subr.bf16.mxu0 0
        %2048 = vmatpush1.bf16.msra.mxu0 0
        %2049 = vmatprep.subr.bf16.mxu0 0
        %2050 = vmatpush1.bf16.msra.mxu0 0
        %2051 = vmatprep.subr.bf16.mxu0 0
        %2052 = vmatpush1.bf16.msra.mxu0 0
        %2053 = vmatprep.subr.bf16.mxu0 0
        %2054 = vmatpush1.bf16.msra.mxu0 0
        %2055 = vmatprep.subr.bf16.mxu0 0
        %2056 = vmatpush1.bf16.msra.mxu0 0
        %2057 = vmatprep.subr.bf16.mxu0 0
        %2058 = vmatpush1.bf16.msra.mxu0 0
        %2059 = vmatprep.subr.bf16.mxu0 0
        %2060 = vmatpush1.bf16.msra.mxu0 0
        %2061 = vmatprep.subr.bf16.mxu0 0
        %2062 = vmatpush1.bf16.msra.mxu0 0
        %2063 = vmatprep.subr.bf16.mxu0 0
        %2064 = vmatpush1.bf16.msra.mxu0 0
        %2065 = vmatprep.subr.bf16.mxu0 0
        %2066 = vmatpush1.bf16.msra.mxu0 0
        %2067 = vmatprep.subr.bf16.mxu0 0
        %2068 = vmatpush1.bf16.msra.mxu0 0
        %2069 = vmatprep.subr.bf16.mxu0 0
        %2070 = vmatpush1.bf16.msra.mxu0 0
        %2071 = vmatprep.subr.bf16.mxu0 0
        %2072 = vmatpush1.bf16.msra.mxu0 0
        %2073 = vmatprep.subr.bf16.mxu0 0
        %2074 = vmatpush1.bf16.msra.mxu0 0
        %2075 = vmatprep.subr.bf16.mxu0 0
        %2076 = vmatpush1.bf16.msra.mxu0 0
        %2077 = vmatprep.mubr.bf16.mxu0 0
        %2078 = vmatmul.mubr.bf16.gmra.mrb[0].mxu0 %v2007
        %v2079 = vpop.f32.mrb[0].mxu0
        %v2080 = vadd.f32 0.0, %v2079
        %v2081 = vpop.f32.mrb[0].mxu0
        %v2082 = vpop.f32.mrb[0].mxu0
        %v2083 = vadd.f32 0.0, %v2082
        %v2084 = vpop.f32.mrb[0].mxu0
        %2085 = vmatprep.mubr.bf16.mxu0 0
        %2086 = vmatmul.mubr.bf16.gmra.mrb[0].mxu0 %v2010
        %v2087 = vpop.f32.mrb[0].mxu0
        %v2088 = vadd.f32 0.0, %v2087
        %v2089 = vpop.f32.mrb[0].mxu0
        %v2090 = vpop.f32.mrb[0].mxu0
        %v2091 = vadd.f32 0.0, %v2090
        %v2092 = vpop.f32.mrb[0].mxu0
        %2093 = vmatprep.mubr.bf16.mxu0 0
        %2094 = vmatmul.mubr.bf16.gmra.mrb[0].mxu0 %v2013
        %v2095 = vpop.f32.mrb[0].mxu0
        %v2096 = vadd.f32 0.0, %v2095
        %v2097 = vpop.f32.mrb[0].mxu0
        %v2098 = vpop.f32.mrb[0].mxu0
        %v2099 = vadd.f32 0.0, %v2098
        %v2100 = vpop.f32.mrb[0].mxu0
        %2101 = vmatprep.mubr.bf16.mxu0 0
        %2102 = vmatmul.mubr.bf16.gmra.mrb[0].mxu0 %v2016
        %v2103 = vpop.f32.mrb[0].mxu0
        %v2104 = vadd.f32 0.0, %v2103
        %v2105 = vpop.f32.mrb[0].mxu0
        %v2106 = vpop.f32.mrb[0].mxu0
        %v2107 = vadd.f32 0.0, %v2106
        %v2108 = vpop.f32.mrb[0].mxu0
        %2109 = vmatprep.mubr.bf16.mxu0 0
        %2110 = vmatmul.mubr.bf16.gmra.mrb[0].mxu0 %v2019
        %v2111 = vpop.f32.mrb[0].mxu0
        %v2112 = vadd.f32 0.0, %v2111
        %v2113 = vpop.f32.mrb[0].mxu0
        %v2114 = vpop.f32.mrb[0].mxu0
        %v2115 = vadd.f32 0.0, %v2114
        %v2116 = vpop.f32.mrb[0].mxu0
        %2117 = vmatprep.mubr.bf16.mxu0 0
        %2118 = vmatmul.mubr.bf16.gmra.mrb[0].mxu0 %v2022
        %v2119 = vpop.f32.mrb[0].mxu0
        %v2120 = vadd.f32 0.0, %v2119
        %v2121 = vpop.f32.mrb[0].mxu0
        %v2122 = vpop.f32.mrb[0].mxu0
        %v2123 = vadd.f32 0.0, %v2122
        %v2124 = vpop.f32.mrb[0].mxu0
        %2125 = vmatprep.mubr.bf16.mxu0 0
        %2126 = vmatmul.mubr.bf16.gmra.mrb[0].mxu0 %v2025
        %v2127 = vpop.f32.mrb[0].mxu0
        %v2128 = vadd.f32 0.0, %v2127
        %v2129 = vpop.f32.mrb[0].mxu0
        %v2130 = vpop.f32.mrb[0].mxu0
        %v2131 = vadd.f32 0.0, %v2130
        %v2132 = vpop.f32.mrb[0].mxu0
        %2133 = vmatprep.mubr.bf16.mxu0 0
        %2134 = vmatmul.mubr.bf16.gmra.mrb[0].mxu0 %v2028
        %v2135 = vpop.f32.mrb[0].mxu0
        %v2136 = vadd.f32 0.0, %v2135
        %v2137 = vpop.f32.mrb[0].mxu0
        %v2138 = vpop.f32.mrb[0].mxu0
        %v2139 = vadd.f32 0.0, %v2138
        %v2140 = vpop.f32.mrb[0].mxu0
        %2141 = vmatprep.mubr.bf16.mxu0 0
        %2142 = vmatmul.mubr.bf16.gmra.mrb[0].mxu0 %v2031
        %v2143 = vpop.f32.mrb[0].mxu0
        %v2144 = vadd.f32 0.0, %v2143
        %v2145 = vpop.f32.mrb[0].mxu0
        %v2146 = vpop.f32.mrb[0].mxu0
        %v2147 = vadd.f32 0.0, %v2146
        %v2148 = vpop.f32.mrb[0].mxu0
        %2149 = vmatprep.mubr.bf16.mxu0 0
        %2150 = vmatmul.mubr.bf16.gmra.mrb[0].mxu0 %v2034
        %v2151 = vpop.f32.mrb[0].mxu0
        %v2152 = vadd.f32 0.0, %v2151
        %v2153 = vpop.f32.mrb[0].mxu0
        %v2154 = vpop.f32.mrb[0].mxu0
        %v2155 = vadd.f32 0.0, %v2154
        %v2156 = vpop.f32.mrb[0].mxu0
        %2157 = vmatprep.mubr.bf16.mxu0 0
        %2158 = vmatmul.mubr.bf16.gmra.mrb[0].mxu0 %v2037
        %v2159 = vpop.f32.mrb[0].mxu0
        %v2160 = vadd.f32 0.0, %v2159
        %v2161 = vpop.f32.mrb[0].mxu0
        %v2162 = vpop.f32.mrb[0].mxu0
        %v2163 = vadd.f32 0.0, %v2162
        %v2164 = vpop.f32.mrb[0].mxu0
        %2165 = vmatprep.mubr.bf16.mxu0 0
        %2166 = vmatmul.mubr.bf16.gmra.mrb[0].mxu0 %v2040
        %v2167 = vpop.f32.mrb[0].mxu0
        %v2168 = vadd.f32 0.0, %v2167
        %v2169 = vpop.f32.mrb[0].mxu0
        %v2170 = vpop.f32.mrb[0].mxu0
        %v2171 = vadd.f32 0.0, %v2170
        %v2172 = vpop.f32.mrb[0].mxu0
        %2173 = vdwg.mxu0
        %v2174 = vadd.f32 %v1943, %v2080
        %v2175 = vadd.f32 %v1944, %v2083
        %v2176 = vadd.f32 %v1945, %v2088
        %v2177 = vadd.f32 %v1946, %v2091
        %v2178 = vadd.f32 %v1947, %v2096
        %v2179 = vadd.f32 %v1948, %v2099
        %v2180 = vadd.f32 %v1949, %v2104
        %v2181 = vadd.f32 %v1950, %v2107
        %v2182 = vadd.f32 %v1951, %v2112
        %v2183 = vadd.f32 %v1952, %v2115
        %v2184 = vadd.f32 %v1953, %v2120
        %v2185 = vadd.f32 %v1954, %v2123
        %v2186 = vadd.f32 %v1955, %v2128
        %v2187 = vadd.f32 %v1956, %v2131
        %v2188 = vadd.f32 %v1957, %v2136
        %v2189 = vadd.f32 %v1958, %v2139
        %v2190 = vadd.f32 %v1959, %v2144
        %v2191 = vadd.f32 %v1960, %v2147
        %v2192 = vadd.f32 %v1961, %v2152
        %v2193 = vadd.f32 %v1962, %v2155
        %v2194 = vadd.f32 %v1963, %v2160
        %v2195 = vadd.f32 %v1964, %v2163
        %v2196 = vadd.f32 %v1965, %v2168
        %v2197 = vadd.f32 %v1966, %v2171
        %s2198 = scalar_lea.vmem %s341, 144 [#allocation3]
        %v2199 = vld [vmem:[%s2198] sm:$0xff]
        %v2200 = vld [vmem:[%s2198 + $0x8] sm:$0xff]
        %v2201 = vld [vmem:[%s2198 + $0x10] sm:$0xff]
        %v2202 = vld [vmem:[%s2198 + $0x18] sm:$0xff]
        %v2203 = vld [vmem:[%s2198 + $0x20] sm:$0xff]
        %v2204 = vld [vmem:[%s2198 + $0x28] sm:$0xff]
        %v2205 = vld [vmem:[%s2198 + $0x40] sm:$0xff]
        %v2206 = vld [vmem:[%s2198 + $0x48] sm:$0xff]
        %v2207 = vld [vmem:[%s2198 + $0x50] sm:$0xff]
        %v2208 = vld [vmem:[%s2198 + $0x58] sm:$0xff]
        %v2209 = vld [vmem:[%s2198 + $0x60] sm:$0xff]
        %v2210 = vld [vmem:[%s2198 + $0x68] sm:$0xff]
        %v2211 = vld [vmem:[%s2198 + $0x80] sm:$0xff]
        %v2212 = vld [vmem:[%s2198 + $0x88] sm:$0xff]
        %v2213 = vld [vmem:[%s2198 + $0x90] sm:$0xff]
        %v2214 = vld [vmem:[%s2198 + $0x98] sm:$0xff]
        %v2215 = vld [vmem:[%s2198 + $0xa0] sm:$0xff]
        %v2216 = vld [vmem:[%s2198 + $0xa8] sm:$0xff]
        %v2217 = vld [vmem:[%s2198 + $0xc0] sm:$0xff]
        %v2218 = vld [vmem:[%s2198 + $0xc8] sm:$0xff]
        %v2219 = vld [vmem:[%s2198 + $0xd0] sm:$0xff]
        %v2220 = vld [vmem:[%s2198 + $0xd8] sm:$0xff]
        %v2221 = vld [vmem:[%s2198 + $0xe0] sm:$0xff]
        %v2222 = vld [vmem:[%s2198 + $0xe8] sm:$0xff]
        %v2223 = vpack.c.bf16 %v2200, %v2199
        %v2224 = vpack.c.bf16 %v2202, %v2201
        %v2225 = vpack.c.bf16 %v2204, %v2203
        %v2226 = vpack.c.bf16 %v2206, %v2205
        %v2227 = vpack.c.bf16 %v2208, %v2207
        %v2228 = vpack.c.bf16 %v2210, %v2209
        %v2229 = vpack.c.bf16 %v2212, %v2211
        %v2230 = vpack.c.bf16 %v2214, %v2213
        %v2231 = vpack.c.bf16 %v2216, %v2215
        %v2232 = vpack.c.bf16 %v2218, %v2217
        %v2233 = vpack.c.bf16 %v2220, %v2219
        %v2234 = vpack.c.bf16 %v2222, %v2221
        %s2235 = scalar_lea.vmem [#allocation6], 16
        %v2236 = vld [vmem:[%s2235] sm:$0x3]
        %v2238 = vsel %vm474, %v2223, 0
        %v2241 = vsel %vm474, %v2224, 0
        %v2244 = vsel %vm474, %v2225, 0
        %v2247 = vsel %vm474, %v2226, 0
        %v2250 = vsel %vm474, %v2227, 0
        %v2253 = vsel %vm474, %v2228, 0
        %v2256 = vsel %vm474, %v2229, 0
        %v2259 = vsel %vm474, %v2230, 0
        %v2262 = vsel %vm474, %v2231, 0
        %v2265 = vsel %vm474, %v2232, 0
        %v2268 = vsel %vm474, %v2233, 0
        %v2271 = vsel %vm474, %v2234, 0
        %v2274 = vsel %vm511, %v2236, 0
        %2276 = vmatprep.subr.bf16.mxu0 0
        %2277 = vmatpush1.bf16.msra.mxu0 %v2274
        %2278 = vmatprep.subr.bf16.mxu0 0
        %2279 = vmatpush1.bf16.msra.mxu0 0
        %2280 = vmatprep.subr.bf16.mxu0 0
        %2281 = vmatpush1.bf16.msra.mxu0 0
        %2282 = vmatprep.subr.bf16.mxu0 0
        %2283 = vmatpush1.bf16.msra.mxu0 0
        %2284 = vmatprep.subr.bf16.mxu0 0
        %2285 = vmatpush1.bf16.msra.mxu0 0
        %2286 = vmatprep.subr.bf16.mxu0 0
        %2287 = vmatpush1.bf16.msra.mxu0 0
        %2288 = vmatprep.subr.bf16.mxu0 0
        %2289 = vmatpush1.bf16.msra.mxu0 0
        %2290 = vmatprep.subr.bf16.mxu0 0
        %2291 = vmatpush1.bf16.msra.mxu0 0
        %2292 = vmatprep.subr.bf16.mxu0 0
        %2293 = vmatpush1.bf16.msra.mxu0 0
        %2294 = vmatprep.subr.bf16.mxu0 0
        %2295 = vmatpush1.bf16.msra.mxu0 0
        %2296 = vmatprep.subr.bf16.mxu0 0
        %2297 = vmatpush1.bf16.msra.mxu0 0
        %2298 = vmatprep.subr.bf16.mxu0 0
        %2299 = vmatpush1.bf16.msra.mxu0 0
        %2300 = vmatprep.subr.bf16.mxu0 0
        %2301 = vmatpush1.bf16.msra.mxu0 0
        %2302 = vmatprep.subr.bf16.mxu0 0
        %2303 = vmatpush1.bf16.msra.mxu0 0
        %2304 = vmatprep.subr.bf16.mxu0 0
        %2305 = vmatpush1.bf16.msra.mxu0 0
        %2306 = vmatprep.subr.bf16.mxu0 0
        %2307 = vmatpush1.bf16.msra.mxu0 0
        %2308 = vmatprep.mubr.bf16.mxu0 0
        %2309 = vmatmul.mubr.bf16.gmra.mrb[0].mxu0 %v2238
        %v2310 = vpop.f32.mrb[0].mxu0
        %v2311 = vadd.f32 0.0, %v2310
        %v2312 = vpop.f32.mrb[0].mxu0
        %v2313 = vpop.f32.mrb[0].mxu0
        %v2314 = vadd.f32 0.0, %v2313
        %v2315 = vpop.f32.mrb[0].mxu0
        %2316 = vmatprep.mubr.bf16.mxu0 0
        %2317 = vmatmul.mubr.bf16.gmra.mrb[0].mxu0 %v2241
        %v2318 = vpop.f32.mrb[0].mxu0
        %v2319 = vadd.f32 0.0, %v2318
        %v2320 = vpop.f32.mrb[0].mxu0
        %v2321 = vpop.f32.mrb[0].mxu0
        %v2322 = vadd.f32 0.0, %v2321
        %v2323 = vpop.f32.mrb[0].mxu0
        %2324 = vmatprep.mubr.bf16.mxu0 0
        %2325 = vmatmul.mubr.bf16.gmra.mrb[0].mxu0 %v2244
        %v2326 = vpop.f32.mrb[0].mxu0
        %v2327 = vadd.f32 0.0, %v2326
        %v2328 = vpop.f32.mrb[0].mxu0
        %v2329 = vpop.f32.mrb[0].mxu0
        %v2330 = vadd.f32 0.0, %v2329
        %v2331 = vpop.f32.mrb[0].mxu0
        %2332 = vmatprep.mubr.bf16.mxu0 0
        %2333 = vmatmul.mubr.bf16.gmra.mrb[0].mxu0 %v2247
        %v2334 = vpop.f32.mrb[0].mxu0
        %v2335 = vadd.f32 0.0, %v2334
        %v2336 = vpop.f32.mrb[0].mxu0
        %v2337 = vpop.f32.mrb[0].mxu0
        %v2338 = vadd.f32 0.0, %v2337
        %v2339 = vpop.f32.mrb[0].mxu0
        %2340 = vmatprep.mubr.bf16.mxu0 0
        %2341 = vmatmul.mubr.bf16.gmra.mrb[0].mxu0 %v2250
        %v2342 = vpop.f32.mrb[0].mxu0
        %v2343 = vadd.f32 0.0, %v2342
        %v2344 = vpop.f32.mrb[0].mxu0
        %v2345 = vpop.f32.mrb[0].mxu0
        %v2346 = vadd.f32 0.0, %v2345
        %v2347 = vpop.f32.mrb[0].mxu0
        %2348 = vmatprep.mubr.bf16.mxu0 0
        %2349 = vmatmul.mubr.bf16.gmra.mrb[0].mxu0 %v2253
        %v2350 = vpop.f32.mrb[0].mxu0
        %v2351 = vadd.f32 0.0, %v2350
        %v2352 = vpop.f32.mrb[0].mxu0
        %v2353 = vpop.f32.mrb[0].mxu0
        %v2354 = vadd.f32 0.0, %v2353
        %v2355 = vpop.f32.mrb[0].mxu0
        %2356 = vmatprep.mubr.bf16.mxu0 0
        %2357 = vmatmul.mubr.bf16.gmra.mrb[0].mxu0 %v2256
        %v2358 = vpop.f32.mrb[0].mxu0
        %v2359 = vadd.f32 0.0, %v2358
        %v2360 = vpop.f32.mrb[0].mxu0
        %v2361 = vpop.f32.mrb[0].mxu0
        %v2362 = vadd.f32 0.0, %v2361
        %v2363 = vpop.f32.mrb[0].mxu0
        %2364 = vmatprep.mubr.bf16.mxu0 0
        %2365 = vmatmul.mubr.bf16.gmra.mrb[0].mxu0 %v2259
        %v2366 = vpop.f32.mrb[0].mxu0
        %v2367 = vadd.f32 0.0, %v2366
        %v2368 = vpop.f32.mrb[0].mxu0
        %v2369 = vpop.f32.mrb[0].mxu0
        %v2370 = vadd.f32 0.0, %v2369
        %v2371 = vpop.f32.mrb[0].mxu0
        %2372 = vmatprep.mubr.bf16.mxu0 0
        %2373 = vmatmul.mubr.bf16.gmra.mrb[0].mxu0 %v2262
        %v2374 = vpop.f32.mrb[0].mxu0
        %v2375 = vadd.f32 0.0, %v2374
        %v2376 = vpop.f32.mrb[0].mxu0
        %v2377 = vpop.f32.mrb[0].mxu0
        %v2378 = vadd.f32 0.0, %v2377
        %v2379 = vpop.f32.mrb[0].mxu0
        %2380 = vmatprep.mubr.bf16.mxu0 0
        %2381 = vmatmul.mubr.bf16.gmra.mrb[0].mxu0 %v2265
        %v2382 = vpop.f32.mrb[0].mxu0
        %v2383 = vadd.f32 0.0, %v2382
        %v2384 = vpop.f32.mrb[0].mxu0
        %v2385 = vpop.f32.mrb[0].mxu0
        %v2386 = vadd.f32 0.0, %v2385
        %v2387 = vpop.f32.mrb[0].mxu0
        %2388 = vmatprep.mubr.bf16.mxu0 0
        %2389 = vmatmul.mubr.bf16.gmra.mrb[0].mxu0 %v2268
        %v2390 = vpop.f32.mrb[0].mxu0
        %v2391 = vadd.f32 0.0, %v2390
        %v2392 = vpop.f32.mrb[0].mxu0
        %v2393 = vpop.f32.mrb[0].mxu0
        %v2394 = vadd.f32 0.0, %v2393
        %v2395 = vpop.f32.mrb[0].mxu0
        %2396 = vmatprep.mubr.bf16.mxu0 0
        %2397 = vmatmul.mubr.bf16.gmra.mrb[0].mxu0 %v2271
        %v2398 = vpop.f32.mrb[0].mxu0
        %v2399 = vadd.f32 0.0, %v2398
        %v2400 = vpop.f32.mrb[0].mxu0
        %v2401 = vpop.f32.mrb[0].mxu0
        %v2402 = vadd.f32 0.0, %v2401
        %v2403 = vpop.f32.mrb[0].mxu0
        %2404 = vdwg.mxu0
        %v2405 = vadd.f32 %v2174, %v2311
        %v2406 = vadd.f32 %v2175, %v2314
        %v2407 = vadd.f32 %v2176, %v2319
        %v2408 = vadd.f32 %v2177, %v2322
        %v2409 = vadd.f32 %v2178, %v2327
        %v2410 = vadd.f32 %v2179, %v2330
        %v2411 = vadd.f32 %v2180, %v2335
        %v2412 = vadd.f32 %v2181, %v2338
        %v2413 = vadd.f32 %v2182, %v2343
        %v2414 = vadd.f32 %v2183, %v2346
        %v2415 = vadd.f32 %v2184, %v2351
        %v2416 = vadd.f32 %v2185, %v2354
        %v2417 = vadd.f32 %v2186, %v2359
        %v2418 = vadd.f32 %v2187, %v2362
        %v2419 = vadd.f32 %v2188, %v2367
        %v2420 = vadd.f32 %v2189, %v2370
        %v2421 = vadd.f32 %v2190, %v2375
        %v2422 = vadd.f32 %v2191, %v2378
        %v2423 = vadd.f32 %v2192, %v2383
        %v2424 = vadd.f32 %v2193, %v2386
        %v2425 = vadd.f32 %v2194, %v2391
        %v2426 = vadd.f32 %v2195, %v2394
        %v2427 = vadd.f32 %v2196, %v2399
        %v2428 = vadd.f32 %v2197, %v2402
        %v2429 = vld [vmem:[#allocation8] sm:$0x1]
        %v2431 = vlaneseq
        %v2432 = vshrl.u32 %v2431, 7
        %v2433 = vsub.s32 0, %v2432
        %v2434 = vrot.slane %v2429, %v2433
        %v2436 = vadd.f32 %v2405, %v2434
        %v2437 = vadd.f32 %v2406, %v2434
        %v2438 = vadd.f32 %v2407, %v2434
        %v2439 = vadd.f32 %v2408, %v2434
        %v2440 = vadd.f32 %v2409, %v2434
        %v2441 = vadd.f32 %v2410, %v2434
        %v2442 = vadd.f32 %v2411, %v2434
        %v2443 = vadd.f32 %v2412, %v2434
        %v2444 = vadd.f32 %v2413, %v2434
        %v2445 = vadd.f32 %v2414, %v2434
        %v2446 = vadd.f32 %v2415, %v2434
        %v2447 = vadd.f32 %v2416, %v2434
        %v2448 = vadd.f32 %v2417, %v2434
        %v2449 = vadd.f32 %v2418, %v2434
        %v2450 = vadd.f32 %v2419, %v2434
        %v2451 = vadd.f32 %v2420, %v2434
        %v2452 = vadd.f32 %v2421, %v2434
        %v2453 = vadd.f32 %v2422, %v2434
        %v2454 = vadd.f32 %v2423, %v2434
        %v2455 = vadd.f32 %v2424, %v2434
        %v2456 = vadd.f32 %v2425, %v2434
        %v2457 = vadd.f32 %v2426, %v2434
        %v2458 = vadd.f32 %v2427, %v2434
        %v2459 = vadd.f32 %v2428, %v2434
        %v2460 = vmax.f32 %v2436, 0.0
        %v2461 = vmax.f32 %v2437, 0.0
        %v2462 = vmax.f32 %v2438, 0.0
        %v2463 = vmax.f32 %v2439, 0.0
        %v2464 = vmax.f32 %v2440, 0.0
        %v2465 = vmax.f32 %v2441, 0.0
        %v2466 = vmax.f32 %v2442, 0.0
        %v2467 = vmax.f32 %v2443, 0.0
        %v2468 = vmax.f32 %v2444, 0.0
        %v2469 = vmax.f32 %v2445, 0.0
        %v2470 = vmax.f32 %v2446, 0.0
        %v2471 = vmax.f32 %v2447, 0.0
        %v2472 = vmax.f32 %v2448, 0.0
        %v2473 = vmax.f32 %v2449, 0.0
        %v2474 = vmax.f32 %v2450, 0.0
        %v2475 = vmax.f32 %v2451, 0.0
        %v2476 = vmax.f32 %v2452, 0.0
        %v2477 = vmax.f32 %v2453, 0.0
        %v2478 = vmax.f32 %v2454, 0.0
        %v2479 = vmax.f32 %v2455, 0.0
        %v2480 = vmax.f32 %v2456, 0.0
        %v2481 = vmax.f32 %v2457, 0.0
        %v2482 = vmax.f32 %v2458, 0.0
        %v2483 = vmax.f32 %v2459, 0.0
        %s2484 = ssub.s32 %s397, 1
        %v2485 = vstv %s2484
        %v2486 = vadd.s32 %v2485, 1
        %v2487 = vadd.s32 %v2485, 2
        %v2488 = vadd.s32 %v2485, 3
        %v2489 = vadd.s32 %v2485, 4
        %v2490 = vadd.s32 %v2485, 5
        %vm2491 = vcmp.ge.s32.totalorder %v2485, 0
        %vm2492 = vcmp.ge.s32.totalorder %v2486, 0
        %vm2493 = vcmp.ge.s32.totalorder %v2487, 0
        %vm2494 = vcmp.ge.s32.totalorder %v2488, 0
        %vm2495 = vcmp.ge.s32.totalorder %v2489, 0
        %vm2496 = vcmp.ge.s32.totalorder %v2490, 0
        %vm2497 = vcmp.lt.s32.totalorder %v2485, 8
        %vm2498 = vcmp.lt.s32.totalorder %v2486, 8
        %vm2499 = vcmp.lt.s32.totalorder %v2487, 8
        %vm2500 = vcmp.lt.s32.totalorder %v2488, 8
        %vm2501 = vcmp.lt.s32.totalorder %v2489, 8
        %vm2502 = vcmp.lt.s32.totalorder %v2490, 8
        %vm2503 = vmand %vm2491, %vm2497
        %vm2504 = vmand %vm2492, %vm2498
        %vm2505 = vmand %vm2493, %vm2499
        %vm2506 = vmand %vm2494, %vm2500
        %vm2507 = vmand %vm2495, %vm2501
        %vm2508 = vmand %vm2496, %vm2502
        %v2509 = vsel %vm2503, %v2460, 0.0
        %v2510 = vsel %vm2504, %v2461, 0.0
        %v2511 = vsel %vm2505, %v2462, 0.0
        %v2512 = vsel %vm2506, %v2463, 0.0
        %v2513 = vsel %vm2507, %v2464, 0.0
        %v2514 = vsel %vm2508, %v2465, 0.0
        %v2515 = vsel %vm2503, %v2466, 0.0
        %v2516 = vsel %vm2504, %v2467, 0.0
        %v2517 = vsel %vm2505, %v2468, 0.0
        %v2518 = vsel %vm2506, %v2469, 0.0
        %v2519 = vsel %vm2507, %v2470, 0.0
        %v2520 = vsel %vm2508, %v2471, 0.0
        %v2521 = vsel %vm2503, %v2472, 0.0
        %v2522 = vsel %vm2504, %v2473, 0.0
        %v2523 = vsel %vm2505, %v2474, 0.0
        %v2524 = vsel %vm2506, %v2475, 0.0
        %v2525 = vsel %vm2507, %v2476, 0.0
        %v2526 = vsel %vm2508, %v2477, 0.0
        %v2527 = vsel %vm2503, %v2478, 0.0
        %v2528 = vsel %vm2504, %v2479, 0.0
        %v2529 = vsel %vm2505, %v2480, 0.0
        %v2530 = vsel %vm2506, %v2481, 0.0
        %v2531 = vsel %vm2507, %v2482, 0.0
        %v2532 = vsel %vm2508, %v2483, 0.0
        %vm2533 = vcmask 64512
        %2534 = vst.msk [vmem:[#allocation2] sm:$0xff] %vm2533, 0.0
        %2535 = vst.msk [vmem:[#allocation2 + $0x8] sm:$0xff] %vm2533, 0.0
        %2536 = vst.msk [vmem:[#allocation2 + $0x10] sm:$0xff] %vm2533, 0.0
        %2537 = vst.msk [vmem:[#allocation2 + $0x18] sm:$0xff] %vm2533, 0.0
        %2538 = vst.msk [vmem:[#allocation2 + $0x20] sm:$0xff] %vm2533, 0.0
        %2539 = vst.msk [vmem:[#allocation2 + $0x28] sm:$0xff] %vm2533, 0.0
        %s2540 = scalar_lea.vmem [#allocation2], 240
        %2541 = vst.msk [vmem:[%s2540] sm:$0xff] %vm2533, 0.0
        %2542 = vst.msk [vmem:[%s2540 + $0x8] sm:$0xff] %vm2533, 0.0
        %2543 = vst.msk [vmem:[%s2540 + $0x10] sm:$0xff] %vm2533, 0.0
        %2544 = vst.msk [vmem:[%s2540 + $0x18] sm:$0xff] %vm2533, 0.0
        %2545 = vst.msk [vmem:[%s2540 + $0x20] sm:$0xff] %vm2533, 0.0
        %2546 = vst.msk [vmem:[%s2540 + $0x28] sm:$0xff] %vm2533, 0.0
        %s2547 = scalar_lea.vmem [#allocation2], 48
        %2548 = vst.msk [vmem:[%s2547] sm:$0xff] %vm2533, %v2509
        %2549 = vst.msk [vmem:[%s2547 + $0x8] sm:$0xff] %vm2533, %v2510
        %2550 = vst.msk [vmem:[%s2547 + $0x10] sm:$0xff] %vm2533, %v2511
        %2551 = vst.msk [vmem:[%s2547 + $0x18] sm:$0xff] %vm2533, %v2512
        %2552 = vst.msk [vmem:[%s2547 + $0x20] sm:$0xff] %vm2533, %v2513
        %2553 = vst.msk [vmem:[%s2547 + $0x28] sm:$0xff] %vm2533, %v2514
        %2554 = vst.msk [vmem:[%s2547 + $0x30] sm:$0xff] %vm2533, %v2515
        %2555 = vst.msk [vmem:[%s2547 + $0x38] sm:$0xff] %vm2533, %v2516
        %2556 = vst.msk [vmem:[%s2547 + $0x40] sm:$0xff] %vm2533, %v2517
        %2557 = vst.msk [vmem:[%s2547 + $0x48] sm:$0xff] %vm2533, %v2518
        %2558 = vst.msk [vmem:[%s2547 + $0x50] sm:$0xff] %vm2533, %v2519
        %2559 = vst.msk [vmem:[%s2547 + $0x58] sm:$0xff] %vm2533, %v2520
        %2560 = vst.msk [vmem:[%s2547 + $0x60] sm:$0xff] %vm2533, %v2521
        %2561 = vst.msk [vmem:[%s2547 + $0x68] sm:$0xff] %vm2533, %v2522
        %2562 = vst.msk [vmem:[%s2547 + $0x70] sm:$0xff] %vm2533, %v2523
        %2563 = vst.msk [vmem:[%s2547 + $0x78] sm:$0xff] %vm2533, %v2524
        %2564 = vst.msk [vmem:[%s2547 + $0x80] sm:$0xff] %vm2533, %v2525
        %2565 = vst.msk [vmem:[%s2547 + $0x88] sm:$0xff] %vm2533, %v2526
        %2566 = vst.msk [vmem:[%s2547 + $0x90] sm:$0xff] %vm2533, %v2527
        %2567 = vst.msk [vmem:[%s2547 + $0x98] sm:$0xff] %vm2533, %v2528
        %2568 = vst.msk [vmem:[%s2547 + $0xa0] sm:$0xff] %vm2533, %v2529
        %2569 = vst.msk [vmem:[%s2547 + $0xa8] sm:$0xff] %vm2533, %v2530
        %2570 = vst.msk [vmem:[%s2547 + $0xb0] sm:$0xff] %vm2533, %v2531
        %2571 = vst.msk [vmem:[%s2547 + $0xb8] sm:$0xff] %vm2533, %v2532
        %v2572 = vld [vmem:[#allocation2] sm:$0xff]
        %v2573 = vld [vmem:[#allocation2 + $0x8] sm:$0xff]
        %v2574 = vld [vmem:[#allocation2 + $0x10] sm:$0xff]
        %v2575 = vld [vmem:[#allocation2 + $0x18] sm:$0xff]
        %v2576 = vld [vmem:[#allocation2 + $0x30] sm:$0xff]
        %v2577 = vld [vmem:[#allocation2 + $0x38] sm:$0xff]
        %v2578 = vld [vmem:[#allocation2 + $0x40] sm:$0xff]
        %v2579 = vld [vmem:[#allocation2 + $0x48] sm:$0xff]
        %v2580 = vld [vmem:[#allocation2 + $0x60] sm:$0xff]
        %v2581 = vld [vmem:[#allocation2 + $0x68] sm:$0xff]
        %v2582 = vld [vmem:[#allocation2 + $0x70] sm:$0xff]
        %v2583 = vld [vmem:[#allocation2 + $0x78] sm:$0xff]
        %v2584 = vld [vmem:[#allocation2 + $0x90] sm:$0xff]
        %v2585 = vld [vmem:[#allocation2 + $0x98] sm:$0xff]
        %v2586 = vld [vmem:[#allocation2 + $0xa0] sm:$0xff]
        %v2587 = vld [vmem:[#allocation2 + $0xa8] sm:$0xff]
        %v2588 = vpack.c.bf16 %v2573, %v2572
        %v2589 = vpack.c.bf16 %v2575, %v2574
        %v2590 = vpack.c.bf16 %v2577, %v2576
        %v2591 = vpack.c.bf16 %v2579, %v2578
        %v2592 = vpack.c.bf16 %v2581, %v2580
        %v2593 = vpack.c.bf16 %v2583, %v2582
        %v2594 = vpack.c.bf16 %v2585, %v2584
        %v2595 = vpack.c.bf16 %v2587, %v2586
        %v2596 = vld [vmem:[#allocation9] sm:$0xf]
        %s2597 = scalar_lea.vmem [#allocation2], 8
        %v2598 = vld [vmem:[%s2597] sm:$0xff]
        %v2599 = vld [vmem:[%s2597 + $0x8] sm:$0xff]
        %v2600 = vld [vmem:[%s2597 + $0x10] sm:$0xff]
        %v2601 = vld [vmem:[%s2597 + $0x18] sm:$0xff]
        %v2602 = vld [vmem:[%s2597 + $0x30] sm:$0xff]
        %v2603 = vld [vmem:[%s2597 + $0x38] sm:$0xff]
        %v2604 = vld [vmem:[%s2597 + $0x40] sm:$0xff]
        %v2605 = vld [vmem:[%s2597 + $0x48] sm:$0xff]
        %v2606 = vld [vmem:[%s2597 + $0x60] sm:$0xff]
        %v2607 = vld [vmem:[%s2597 + $0x68] sm:$0xff]
        %v2608 = vld [vmem:[%s2597 + $0x70] sm:$0xff]
        %v2609 = vld [vmem:[%s2597 + $0x78] sm:$0xff]
        %v2610 = vld [vmem:[%s2597 + $0x90] sm:$0xff]
        %v2611 = vld [vmem:[%s2597 + $0x98] sm:$0xff]
        %v2612 = vld [vmem:[%s2597 + $0xa0] sm:$0xff]
        %v2613 = vld [vmem:[%s2597 + $0xa8] sm:$0xff]
        %v2614 = vpack.c.bf16 %v2599, %v2598
        %v2615 = vpack.c.bf16 %v2601, %v2600
        %v2616 = vpack.c.bf16 %v2603, %v2602
        %v2617 = vpack.c.bf16 %v2605, %v2604
        %v2618 = vpack.c.bf16 %v2607, %v2606
        %v2619 = vpack.c.bf16 %v2609, %v2608
        %v2620 = vpack.c.bf16 %v2611, %v2610
        %v2621 = vpack.c.bf16 %v2613, %v2612
        %s2622 = scalar_lea.vmem [#allocation9], 4
        %v2623 = vld [vmem:[%s2622] sm:$0xf]
        %v2625 = vsel %vm2533, %v2614, 0
        %v2628 = vsel %vm2533, %v2615, 0
        %v2631 = vsel %vm2533, %v2616, 0
        %v2634 = vsel %vm2533, %v2617, 0
        %v2637 = vsel %vm2533, %v2618, 0
        %v2640 = vsel %vm2533, %v2619, 0
        %v2643 = vsel %vm2533, %v2620, 0
        %v2646 = vsel %vm2533, %v2621, 0
        %vm2648 = vcmask 1043456
        %v2650 = vsel %vm2648, %v2623, 0
        %2652 = vmatprep.subr.bf16.mxu0 0
        %2653 = vmatpush1.bf16.msra.mxu0 %v2650
        %2654 = vmatprep.subr.bf16.mxu0 0
        %2655 = vmatpush1.bf16.msra.mxu0 0
        %2656 = vmatprep.subr.bf16.mxu0 0
        %2657 = vmatpush1.bf16.msra.mxu0 0
        %2658 = vmatprep.subr.bf16.mxu0 0
        %2659 = vmatpush1.bf16.msra.mxu0 0
        %2660 = vmatprep.subr.bf16.mxu0 0
        %2661 = vmatpush1.bf16.msra.mxu0 0
        %2662 = vmatprep.subr.bf16.mxu0 0
        %2663 = vmatpush1.bf16.msra.mxu0 0
        %2664 = vmatprep.subr.bf16.mxu0 0
        %2665 = vmatpush1.bf16.msra.mxu0 0
        %2666 = vmatprep.subr.bf16.mxu0 0
        %2667 = vmatpush1.bf16.msra.mxu0 0
        %2668 = vmatprep.subr.bf16.mxu0 0
        %2669 = vmatpush1.bf16.msra.mxu0 0
        %2670 = vmatprep.subr.bf16.mxu0 0
        %2671 = vmatpush1.bf16.msra.mxu0 0
        %2672 = vmatprep.subr.bf16.mxu0 0
        %2673 = vmatpush1.bf16.msra.mxu0 0
        %2674 = vmatprep.subr.bf16.mxu0 0
        %2675 = vmatpush1.bf16.msra.mxu0 0
        %2676 = vmatprep.subr.bf16.mxu0 0
        %2677 = vmatpush1.bf16.msra.mxu0 0
        %2678 = vmatprep.subr.bf16.mxu0 0
        %2679 = vmatpush1.bf16.msra.mxu0 0
        %2680 = vmatprep.subr.bf16.mxu0 0
        %2681 = vmatpush1.bf16.msra.mxu0 0
        %2682 = vmatprep.subr.bf16.mxu0 0
        %2683 = vmatpush1.bf16.msra.mxu0 0
        %2684 = vmatprep.mubr.bf16.mxu0 0
        %2685 = vmatmul.mubr.bf16.gmra.mrb[0].mxu0 %v2625
        %v2686 = vpop.f32.mrb[0].mxu0
        %v2687 = vadd.f32 0.0, %v2686
        %v2688 = vpop.f32.mrb[0].mxu0
        %v2689 = vpop.f32.mrb[0].mxu0
        %v2690 = vadd.f32 0.0, %v2689
        %v2691 = vpop.f32.mrb[0].mxu0
        %2692 = vmatprep.mubr.bf16.mxu0 0
        %2693 = vmatmul.mubr.bf16.gmra.mrb[0].mxu0 %v2628
        %v2694 = vpop.f32.mrb[0].mxu0
        %v2695 = vadd.f32 0.0, %v2694
        %v2696 = vpop.f32.mrb[0].mxu0
        %v2697 = vpop.f32.mrb[0].mxu0
        %v2698 = vadd.f32 0.0, %v2697
        %v2699 = vpop.f32.mrb[0].mxu0
        %2700 = vmatprep.mubr.bf16.mxu0 0
        %2701 = vmatmul.mubr.bf16.gmra.mrb[0].mxu0 %v2631
        %v2702 = vpop.f32.mrb[0].mxu0
        %v2703 = vadd.f32 0.0, %v2702
        %v2704 = vpop.f32.mrb[0].mxu0
        %v2705 = vpop.f32.mrb[0].mxu0
        %v2706 = vadd.f32 0.0, %v2705
        %v2707 = vpop.f32.mrb[0].mxu0
        %2708 = vmatprep.mubr.bf16.mxu0 0
        %2709 = vmatmul.mubr.bf16.gmra.mrb[0].mxu0 %v2634
        %v2710 = vpop.f32.mrb[0].mxu0
        %v2711 = vadd.f32 0.0, %v2710
        %v2712 = vpop.f32.mrb[0].mxu0
        %v2713 = vpop.f32.mrb[0].mxu0
        %v2714 = vadd.f32 0.0, %v2713
        %v2715 = vpop.f32.mrb[0].mxu0
        %2716 = vmatprep.mubr.bf16.mxu0 0
        %2717 = vmatmul.mubr.bf16.gmra.mrb[0].mxu0 %v2637
        %v2718 = vpop.f32.mrb[0].mxu0
        %v2719 = vadd.f32 0.0, %v2718
        %v2720 = vpop.f32.mrb[0].mxu0
        %v2721 = vpop.f32.mrb[0].mxu0
        %v2722 = vadd.f32 0.0, %v2721
        %v2723 = vpop.f32.mrb[0].mxu0
        %2724 = vmatprep.mubr.bf16.mxu0 0
        %2725 = vmatmul.mubr.bf16.gmra.mrb[0].mxu0 %v2640
        %v2726 = vpop.f32.mrb[0].mxu0
        %v2727 = vadd.f32 0.0, %v2726
        %v2728 = vpop.f32.mrb[0].mxu0
        %v2729 = vpop.f32.mrb[0].mxu0
        %v2730 = vadd.f32 0.0, %v2729
        %v2731 = vpop.f32.mrb[0].mxu0
        %2732 = vmatprep.mubr.bf16.mxu0 0
        %2733 = vmatmul.mubr.bf16.gmra.mrb[0].mxu0 %v2643
        %v2734 = vpop.f32.mrb[0].mxu0
        %v2735 = vadd.f32 0.0, %v2734
        %v2736 = vpop.f32.mrb[0].mxu0
        %v2737 = vpop.f32.mrb[0].mxu0
        %v2738 = vadd.f32 0.0, %v2737
        %v2739 = vpop.f32.mrb[0].mxu0
        %2740 = vmatprep.mubr.bf16.mxu0 0
        %2741 = vmatmul.mubr.bf16.gmra.mrb[0].mxu0 %v2646
        %v2742 = vpop.f32.mrb[0].mxu0
        %v2743 = vadd.f32 0.0, %v2742
        %v2744 = vpop.f32.mrb[0].mxu0
        %v2745 = vpop.f32.mrb[0].mxu0
        %v2746 = vadd.f32 0.0, %v2745
        %v2747 = vpop.f32.mrb[0].mxu0
        %2748 = vdwg.mxu0
        %v2750 = vsel %vm2533, %v2588, 0
        %v2753 = vsel %vm2533, %v2589, 0
        %v2756 = vsel %vm2533, %v2590, 0
        %v2759 = vsel %vm2533, %v2591, 0
        %v2762 = vsel %vm2533, %v2592, 0
        %v2765 = vsel %vm2533, %v2593, 0
        %v2768 = vsel %vm2533, %v2594, 0
        %v2771 = vsel %vm2533, %v2595, 0
        %v2774 = vsel %vm2648, %v2596, 0
        %2776 = vmatprep.subr.bf16.mxu0 0
        %2777 = vmatpush1.bf16.msra.mxu0 %v2774
        %2778 = vmatprep.subr.bf16.mxu0 0
        %2779 = vmatpush1.bf16.msra.mxu0 0
        %2780 = vmatprep.subr.bf16.mxu0 0
        %2781 = vmatpush1.bf16.msra.mxu0 0
        %2782 = vmatprep.subr.bf16.mxu0 0
        %2783 = vmatpush1.bf16.msra.mxu0 0
        %2784 = vmatprep.subr.bf16.mxu0 0
        %2785 = vmatpush1.bf16.msra.mxu0 0
        %2786 = vmatprep.subr.bf16.mxu0 0
        %2787 = vmatpush1.bf16.msra.mxu0 0
        %2788 = vmatprep.subr.bf16.mxu0 0
        %2789 = vmatpush1.bf16.msra.mxu0 0
        %2790 = vmatprep.subr.bf16.mxu0 0
        %2791 = vmatpush1.bf16.msra.mxu0 0
        %2792 = vmatprep.subr.bf16.mxu0 0
        %2793 = vmatpush1.bf16.msra.mxu0 0
        %2794 = vmatprep.subr.bf16.mxu0 0
        %2795 = vmatpush1.bf16.msra.mxu0 0
        %2796 = vmatprep.subr.bf16.mxu0 0
        %2797 = vmatpush1.bf16.msra.mxu0 0
        %2798 = vmatprep.subr.bf16.mxu0 0
        %2799 = vmatpush1.bf16.msra.mxu0 0
        %2800 = vmatprep.subr.bf16.mxu0 0
        %2801 = vmatpush1.bf16.msra.mxu0 0
        %2802 = vmatprep.subr.bf16.mxu0 0
        %2803 = vmatpush1.bf16.msra.mxu0 0
        %2804 = vmatprep.subr.bf16.mxu0 0
        %2805 = vmatpush1.bf16.msra.mxu0 0
        %2806 = vmatprep.subr.bf16.mxu0 0
        %2807 = vmatpush1.bf16.msra.mxu0 0
        %2808 = vmatprep.mubr.bf16.mxu0 0
        %2809 = vmatmul.mubr.bf16.gmra.mrb[0].mxu0 %v2750
        %v2810 = vpop.f32.mrb[0].mxu0
        %v2811 = vadd.f32 %v2687, %v2810
        %v2812 = vpop.f32.mrb[0].mxu0
        %v2813 = vpop.f32.mrb[0].mxu0
        %v2814 = vadd.f32 %v2690, %v2813
        %v2815 = vpop.f32.mrb[0].mxu0
        %2816 = vmatprep.mubr.bf16.mxu0 0
        %2817 = vmatmul.mubr.bf16.gmra.mrb[0].mxu0 %v2753
        %v2818 = vpop.f32.mrb[0].mxu0
        %v2819 = vadd.f32 %v2695, %v2818
        %v2820 = vpop.f32.mrb[0].mxu0
        %v2821 = vpop.f32.mrb[0].mxu0
        %v2822 = vadd.f32 %v2698, %v2821
        %v2823 = vpop.f32.mrb[0].mxu0
        %2824 = vmatprep.mubr.bf16.mxu0 0
        %2825 = vmatmul.mubr.bf16.gmra.mrb[0].mxu0 %v2756
        %v2826 = vpop.f32.mrb[0].mxu0
        %v2827 = vadd.f32 %v2703, %v2826
        %v2828 = vpop.f32.mrb[0].mxu0
        %v2829 = vpop.f32.mrb[0].mxu0
        %v2830 = vadd.f32 %v2706, %v2829
        %v2831 = vpop.f32.mrb[0].mxu0
        %2832 = vmatprep.mubr.bf16.mxu0 0
        %2833 = vmatmul.mubr.bf16.gmra.mrb[0].mxu0 %v2759
        %v2834 = vpop.f32.mrb[0].mxu0
        %v2835 = vadd.f32 %v2711, %v2834
        %v2836 = vpop.f32.mrb[0].mxu0
        %v2837 = vpop.f32.mrb[0].mxu0
        %v2838 = vadd.f32 %v2714, %v2837
        %v2839 = vpop.f32.mrb[0].mxu0
        %2840 = vmatprep.mubr.bf16.mxu0 0
        %2841 = vmatmul.mubr.bf16.gmra.mrb[0].mxu0 %v2762
        %v2842 = vpop.f32.mrb[0].mxu0
        %v2843 = vadd.f32 %v2719, %v2842
        %v2844 = vpop.f32.mrb[0].mxu0
        %v2845 = vpop.f32.mrb[0].mxu0
        %v2846 = vadd.f32 %v2722, %v2845
        %v2847 = vpop.f32.mrb[0].mxu0
        %2848 = vmatprep.mubr.bf16.mxu0 0
        %2849 = vmatmul.mubr.bf16.gmra.mrb[0].mxu0 %v2765
        %v2850 = vpop.f32.mrb[0].mxu0
        %v2851 = vadd.f32 %v2727, %v2850
        %v2852 = vpop.f32.mrb[0].mxu0
        %v2853 = vpop.f32.mrb[0].mxu0
        %v2854 = vadd.f32 %v2730, %v2853
        %v2855 = vpop.f32.mrb[0].mxu0
        %2856 = vmatprep.mubr.bf16.mxu0 0
        %2857 = vmatmul.mubr.bf16.gmra.mrb[0].mxu0 %v2768
        %v2858 = vpop.f32.mrb[0].mxu0
        %v2859 = vadd.f32 %v2735, %v2858
        %v2860 = vpop.f32.mrb[0].mxu0
        %v2861 = vpop.f32.mrb[0].mxu0
        %v2862 = vadd.f32 %v2738, %v2861
        %v2863 = vpop.f32.mrb[0].mxu0
        %2864 = vmatprep.mubr.bf16.mxu0 0
        %2865 = vmatmul.mubr.bf16.gmra.mrb[0].mxu0 %v2771
        %v2866 = vpop.f32.mrb[0].mxu0
        %v2867 = vadd.f32 %v2743, %v2866
        %v2868 = vpop.f32.mrb[0].mxu0
        %v2869 = vpop.f32.mrb[0].mxu0
        %v2870 = vadd.f32 %v2746, %v2869
        %v2871 = vpop.f32.mrb[0].mxu0
        %2872 = vdwg.mxu0
        %s2873 = scalar_lea.vmem [#allocation2], 16
        %v2874 = vld [vmem:[%s2873] sm:$0xff]
        %v2875 = vld [vmem:[%s2873 + $0x8] sm:$0xff]
        %v2876 = vld [vmem:[%s2873 + $0x10] sm:$0xff]
        %v2877 = vld [vmem:[%s2873 + $0x18] sm:$0xff]
        %v2878 = vld [vmem:[%s2873 + $0x30] sm:$0xff]
        %v2879 = vld [vmem:[%s2873 + $0x38] sm:$0xff]
        %v2880 = vld [vmem:[%s2873 + $0x40] sm:$0xff]
        %v2881 = vld [vmem:[%s2873 + $0x48] sm:$0xff]
        %v2882 = vld [vmem:[%s2873 + $0x60] sm:$0xff]
        %v2883 = vld [vmem:[%s2873 + $0x68] sm:$0xff]
        %v2884 = vld [vmem:[%s2873 + $0x70] sm:$0xff]
        %v2885 = vld [vmem:[%s2873 + $0x78] sm:$0xff]
        %v2886 = vld [vmem:[%s2873 + $0x90] sm:$0xff]
        %v2887 = vld [vmem:[%s2873 + $0x98] sm:$0xff]
        %v2888 = vld [vmem:[%s2873 + $0xa0] sm:$0xff]
        %v2889 = vld [vmem:[%s2873 + $0xa8] sm:$0xff]
        %v2890 = vpack.c.bf16 %v2875, %v2874
        %v2891 = vpack.c.bf16 %v2877, %v2876
        %v2892 = vpack.c.bf16 %v2879, %v2878
        %v2893 = vpack.c.bf16 %v2881, %v2880
        %v2894 = vpack.c.bf16 %v2883, %v2882
        %v2895 = vpack.c.bf16 %v2885, %v2884
        %v2896 = vpack.c.bf16 %v2887, %v2886
        %v2897 = vpack.c.bf16 %v2889, %v2888
        %s2898 = scalar_lea.vmem [#allocation9], 8
        %v2899 = vld [vmem:[%s2898] sm:$0xf]
        %v2901 = vsel %vm2533, %v2890, 0
        %v2904 = vsel %vm2533, %v2891, 0
        %v2907 = vsel %vm2533, %v2892, 0
        %v2910 = vsel %vm2533, %v2893, 0
        %v2913 = vsel %vm2533, %v2894, 0
        %v2916 = vsel %vm2533, %v2895, 0
        %v2919 = vsel %vm2533, %v2896, 0
        %v2922 = vsel %vm2533, %v2897, 0
        %v2925 = vsel %vm2648, %v2899, 0
        %2927 = vmatprep.subr.bf16.mxu0 0
        %2928 = vmatpush1.bf16.msra.mxu0 %v2925
        %2929 = vmatprep.subr.bf16.mxu0 0
        %2930 = vmatpush1.bf16.msra.mxu0 0
        %2931 = vmatprep.subr.bf16.mxu0 0
        %2932 = vmatpush1.bf16.msra.mxu0 0
        %2933 = vmatprep.subr.bf16.mxu0 0
        %2934 = vmatpush1.bf16.msra.mxu0 0
        %2935 = vmatprep.subr.bf16.mxu0 0
        %2936 = vmatpush1.bf16.msra.mxu0 0
        %2937 = vmatprep.subr.bf16.mxu0 0
        %2938 = vmatpush1.bf16.msra.mxu0 0
        %2939 = vmatprep.subr.bf16.mxu0 0
        %2940 = vmatpush1.bf16.msra.mxu0 0
        %2941 = vmatprep.subr.bf16.mxu0 0
        %2942 = vmatpush1.bf16.msra.mxu0 0
        %2943 = vmatprep.subr.bf16.mxu0 0
        %2944 = vmatpush1.bf16.msra.mxu0 0
        %2945 = vmatprep.subr.bf16.mxu0 0
        %2946 = vmatpush1.bf16.msra.mxu0 0
        %2947 = vmatprep.subr.bf16.mxu0 0
        %2948 = vmatpush1.bf16.msra.mxu0 0
        %2949 = vmatprep.subr.bf16.mxu0 0
        %2950 = vmatpush1.bf16.msra.mxu0 0
        %2951 = vmatprep.subr.bf16.mxu0 0
        %2952 = vmatpush1.bf16.msra.mxu0 0
        %2953 = vmatprep.subr.bf16.mxu0 0
        %2954 = vmatpush1.bf16.msra.mxu0 0
        %2955 = vmatprep.subr.bf16.mxu0 0
        %2956 = vmatpush1.bf16.msra.mxu0 0
        %2957 = vmatprep.subr.bf16.mxu0 0
        %2958 = vmatpush1.bf16.msra.mxu0 0
        %2959 = vmatprep.mubr.bf16.mxu0 0
        %2960 = vmatmul.mubr.bf16.gmra.mrb[0].mxu0 %v2901
        %v2961 = vpop.f32.mrb[0].mxu0
        %v2962 = vadd.f32 0.0, %v2961
        %v2963 = vpop.f32.mrb[0].mxu0
        %v2964 = vpop.f32.mrb[0].mxu0
        %v2965 = vadd.f32 0.0, %v2964
        %v2966 = vpop.f32.mrb[0].mxu0
        %2967 = vmatprep.mubr.bf16.mxu0 0
        %2968 = vmatmul.mubr.bf16.gmra.mrb[0].mxu0 %v2904
        %v2969 = vpop.f32.mrb[0].mxu0
        %v2970 = vadd.f32 0.0, %v2969
        %v2971 = vpop.f32.mrb[0].mxu0
        %v2972 = vpop.f32.mrb[0].mxu0
        %v2973 = vadd.f32 0.0, %v2972
        %v2974 = vpop.f32.mrb[0].mxu0
        %2975 = vmatprep.mubr.bf16.mxu0 0
        %2976 = vmatmul.mubr.bf16.gmra.mrb[0].mxu0 %v2907
        %v2977 = vpop.f32.mrb[0].mxu0
        %v2978 = vadd.f32 0.0, %v2977
        %v2979 = vpop.f32.mrb[0].mxu0
        %v2980 = vpop.f32.mrb[0].mxu0
        %v2981 = vadd.f32 0.0, %v2980
        %v2982 = vpop.f32.mrb[0].mxu0
        %2983 = vmatprep.mubr.bf16.mxu0 0
        %2984 = vmatmul.mubr.bf16.gmra.mrb[0].mxu0 %v2910
        %v2985 = vpop.f32.mrb[0].mxu0
        %v2986 = vadd.f32 0.0, %v2985
        %v2987 = vpop.f32.mrb[0].mxu0
        %v2988 = vpop.f32.mrb[0].mxu0
        %v2989 = vadd.f32 0.0, %v2988
        %v2990 = vpop.f32.mrb[0].mxu0
        %2991 = vmatprep.mubr.bf16.mxu0 0
        %2992 = vmatmul.mubr.bf16.gmra.mrb[0].mxu0 %v2913
        %v2993 = vpop.f32.mrb[0].mxu0
        %v2994 = vadd.f32 0.0, %v2993
        %v2995 = vpop.f32.mrb[0].mxu0
        %v2996 = vpop.f32.mrb[0].mxu0
        %v2997 = vadd.f32 0.0, %v2996
        %v2998 = vpop.f32.mrb[0].mxu0
        %2999 = vmatprep.mubr.bf16.mxu0 0
        %3000 = vmatmul.mubr.bf16.gmra.mrb[0].mxu0 %v2916
        %v3001 = vpop.f32.mrb[0].mxu0
        %v3002 = vadd.f32 0.0, %v3001
        %v3003 = vpop.f32.mrb[0].mxu0
        %v3004 = vpop.f32.mrb[0].mxu0
        %v3005 = vadd.f32 0.0, %v3004
        %v3006 = vpop.f32.mrb[0].mxu0
        %3007 = vmatprep.mubr.bf16.mxu0 0
        %3008 = vmatmul.mubr.bf16.gmra.mrb[0].mxu0 %v2919
        %v3009 = vpop.f32.mrb[0].mxu0
        %v3010 = vadd.f32 0.0, %v3009
        %v3011 = vpop.f32.mrb[0].mxu0
        %v3012 = vpop.f32.mrb[0].mxu0
        %v3013 = vadd.f32 0.0, %v3012
        %v3014 = vpop.f32.mrb[0].mxu0
        %3015 = vmatprep.mubr.bf16.mxu0 0
        %3016 = vmatmul.mubr.bf16.gmra.mrb[0].mxu0 %v2922
        %v3017 = vpop.f32.mrb[0].mxu0
        %v3018 = vadd.f32 0.0, %v3017
        %v3019 = vpop.f32.mrb[0].mxu0
        %v3020 = vpop.f32.mrb[0].mxu0
        %v3021 = vadd.f32 0.0, %v3020
        %v3022 = vpop.f32.mrb[0].mxu0
        %3023 = vdwg.mxu0
        %v3024 = vadd.f32 %v2811, %v2962
        %v3025 = vadd.f32 %v2814, %v2965
        %v3026 = vadd.f32 %v2819, %v2970
        %v3027 = vadd.f32 %v2822, %v2973
        %v3028 = vadd.f32 %v2827, %v2978
        %v3029 = vadd.f32 %v2830, %v2981
        %v3030 = vadd.f32 %v2835, %v2986
        %v3031 = vadd.f32 %v2838, %v2989
        %v3032 = vadd.f32 %v2843, %v2994
        %v3033 = vadd.f32 %v2846, %v2997
        %v3034 = vadd.f32 %v2851, %v3002
        %v3035 = vadd.f32 %v2854, %v3005
        %v3036 = vadd.f32 %v2859, %v3010
        %v3037 = vadd.f32 %v2862, %v3013
        %v3038 = vadd.f32 %v2867, %v3018
        %v3039 = vadd.f32 %v2870, %v3021
        %v3040 = vld [vmem:[%s2547] sm:$0xff]
        %v3041 = vld [vmem:[%s2547 + $0x8] sm:$0xff]
        %v3042 = vld [vmem:[%s2547 + $0x10] sm:$0xff]
        %v3043 = vld [vmem:[%s2547 + $0x18] sm:$0xff]
        %v3044 = vld [vmem:[%s2547 + $0x30] sm:$0xff]
        %v3045 = vld [vmem:[%s2547 + $0x38] sm:$0xff]
        %v3046 = vld [vmem:[%s2547 + $0x40] sm:$0xff]
        %v3047 = vld [vmem:[%s2547 + $0x48] sm:$0xff]
        %v3048 = vld [vmem:[%s2547 + $0x60] sm:$0xff]
        %v3049 = vld [vmem:[%s2547 + $0x68] sm:$0xff]
        %v3050 = vld [vmem:[%s2547 + $0x70] sm:$0xff]
        %v3051 = vld [vmem:[%s2547 + $0x78] sm:$0xff]
        %v3052 = vld [vmem:[%s2547 + $0x90] sm:$0xff]
        %v3053 = vld [vmem:[%s2547 + $0x98] sm:$0xff]
        %v3054 = vld [vmem:[%s2547 + $0xa0] sm:$0xff]
        %v3055 = vld [vmem:[%s2547 + $0xa8] sm:$0xff]
        %v3056 = vpack.c.bf16 %v3041, %v3040
        %v3057 = vpack.c.bf16 %v3043, %v3042
        %v3058 = vpack.c.bf16 %v3045, %v3044
        %v3059 = vpack.c.bf16 %v3047, %v3046
        %v3060 = vpack.c.bf16 %v3049, %v3048
        %v3061 = vpack.c.bf16 %v3051, %v3050
        %v3062 = vpack.c.bf16 %v3053, %v3052
        %v3063 = vpack.c.bf16 %v3055, %v3054
        %s3064 = scalar_lea.vmem [#allocation9], 12
        %v3065 = vld [vmem:[%s3064] sm:$0xf]
        %v3067 = vsel %vm2533, %v3056, 0
        %v3070 = vsel %vm2533, %v3057, 0
        %v3073 = vsel %vm2533, %v3058, 0
        %v3076 = vsel %vm2533, %v3059, 0
        %v3079 = vsel %vm2533, %v3060, 0
        %v3082 = vsel %vm2533, %v3061, 0
        %v3085 = vsel %vm2533, %v3062, 0
        %v3088 = vsel %vm2533, %v3063, 0
        %v3091 = vsel %vm2648, %v3065, 0
        %3093 = vmatprep.subr.bf16.mxu0 0
        %3094 = vmatpush1.bf16.msra.mxu0 %v3091
        %3095 = vmatprep.subr.bf16.mxu0 0
        %3096 = vmatpush1.bf16.msra.mxu0 0
        %3097 = vmatprep.subr.bf16.mxu0 0
        %3098 = vmatpush1.bf16.msra.mxu0 0
        %3099 = vmatprep.subr.bf16.mxu0 0
        %3100 = vmatpush1.bf16.msra.mxu0 0
        %3101 = vmatprep.subr.bf16.mxu0 0
        %3102 = vmatpush1.bf16.msra.mxu0 0
        %3103 = vmatprep.subr.bf16.mxu0 0
        %3104 = vmatpush1.bf16.msra.mxu0 0
        %3105 = vmatprep.subr.bf16.mxu0 0
        %3106 = vmatpush1.bf16.msra.mxu0 0
        %3107 = vmatprep.subr.bf16.mxu0 0
        %3108 = vmatpush1.bf16.msra.mxu0 0
        %3109 = vmatprep.subr.bf16.mxu0 0
        %3110 = vmatpush1.bf16.msra.mxu0 0
        %3111 = vmatprep.subr.bf16.mxu0 0
        %3112 = vmatpush1.bf16.msra.mxu0 0
        %3113 = vmatprep.subr.bf16.mxu0 0
        %3114 = vmatpush1.bf16.msra.mxu0 0
        %3115 = vmatprep.subr.bf16.mxu0 0
        %3116 = vmatpush1.bf16.msra.mxu0 0
        %3117 = vmatprep.subr.bf16.mxu0 0
        %3118 = vmatpush1.bf16.msra.mxu0 0
        %3119 = vmatprep.subr.bf16.mxu0 0
        %3120 = vmatpush1.bf16.msra.mxu0 0
        %3121 = vmatprep.subr.bf16.mxu0 0
        %3122 = vmatpush1.bf16.msra.mxu0 0
        %3123 = vmatprep.subr.bf16.mxu0 0
        %3124 = vmatpush1.bf16.msra.mxu0 0
        %3125 = vmatprep.mubr.bf16.mxu0 0
        %3126 = vmatmul.mubr.bf16.gmra.mrb[0].mxu0 %v3067
        %v3127 = vpop.f32.mrb[0].mxu0
        %v3128 = vadd.f32 0.0, %v3127
        %v3129 = vpop.f32.mrb[0].mxu0
        %v3130 = vpop.f32.mrb[0].mxu0
        %v3131 = vadd.f32 0.0, %v3130
        %v3132 = vpop.f32.mrb[0].mxu0
        %3133 = vmatprep.mubr.bf16.mxu0 0
        %3134 = vmatmul.mubr.bf16.gmra.mrb[0].mxu0 %v3070
        %v3135 = vpop.f32.mrb[0].mxu0
        %v3136 = vadd.f32 0.0, %v3135
        %v3137 = vpop.f32.mrb[0].mxu0
        %v3138 = vpop.f32.mrb[0].mxu0
        %v3139 = vadd.f32 0.0, %v3138
        %v3140 = vpop.f32.mrb[0].mxu0
        %3141 = vmatprep.mubr.bf16.mxu0 0
        %3142 = vmatmul.mubr.bf16.gmra.mrb[0].mxu0 %v3073
        %v3143 = vpop.f32.mrb[0].mxu0
        %v3144 = vadd.f32 0.0, %v3143
        %v3145 = vpop.f32.mrb[0].mxu0
        %v3146 = vpop.f32.mrb[0].mxu0
        %v3147 = vadd.f32 0.0, %v3146
        %v3148 = vpop.f32.mrb[0].mxu0
        %3149 = vmatprep.mubr.bf16.mxu0 0
        %3150 = vmatmul.mubr.bf16.gmra.mrb[0].mxu0 %v3076
        %v3151 = vpop.f32.mrb[0].mxu0
        %v3152 = vadd.f32 0.0, %v3151
        %v3153 = vpop.f32.mrb[0].mxu0
        %v3154 = vpop.f32.mrb[0].mxu0
        %v3155 = vadd.f32 0.0, %v3154
        %v3156 = vpop.f32.mrb[0].mxu0
        %3157 = vmatprep.mubr.bf16.mxu0 0
        %3158 = vmatmul.mubr.bf16.gmra.mrb[0].mxu0 %v3079
        %v3159 = vpop.f32.mrb[0].mxu0
        %v3160 = vadd.f32 0.0, %v3159
        %v3161 = vpop.f32.mrb[0].mxu0
        %v3162 = vpop.f32.mrb[0].mxu0
        %v3163 = vadd.f32 0.0, %v3162
        %v3164 = vpop.f32.mrb[0].mxu0
        %3165 = vmatprep.mubr.bf16.mxu0 0
        %3166 = vmatmul.mubr.bf16.gmra.mrb[0].mxu0 %v3082
        %v3167 = vpop.f32.mrb[0].mxu0
        %v3168 = vadd.f32 0.0, %v3167
        %v3169 = vpop.f32.mrb[0].mxu0
        %v3170 = vpop.f32.mrb[0].mxu0
        %v3171 = vadd.f32 0.0, %v3170
        %v3172 = vpop.f32.mrb[0].mxu0
        %3173 = vmatprep.mubr.bf16.mxu0 0
        %3174 = vmatmul.mubr.bf16.gmra.mrb[0].mxu0 %v3085
        %v3175 = vpop.f32.mrb[0].mxu0
        %v3176 = vadd.f32 0.0, %v3175
        %v3177 = vpop.f32.mrb[0].mxu0
        %v3178 = vpop.f32.mrb[0].mxu0
        %v3179 = vadd.f32 0.0, %v3178
        %v3180 = vpop.f32.mrb[0].mxu0
        %3181 = vmatprep.mubr.bf16.mxu0 0
        %3182 = vmatmul.mubr.bf16.gmra.mrb[0].mxu0 %v3088
        %v3183 = vpop.f32.mrb[0].mxu0
        %v3184 = vadd.f32 0.0, %v3183
        %v3185 = vpop.f32.mrb[0].mxu0
        %v3186 = vpop.f32.mrb[0].mxu0
        %v3187 = vadd.f32 0.0, %v3186
        %v3188 = vpop.f32.mrb[0].mxu0
        %3189 = vdwg.mxu0
        %v3190 = vadd.f32 %v3024, %v3128
        %v3191 = vadd.f32 %v3025, %v3131
        %v3192 = vadd.f32 %v3026, %v3136
        %v3193 = vadd.f32 %v3027, %v3139
        %v3194 = vadd.f32 %v3028, %v3144
        %v3195 = vadd.f32 %v3029, %v3147
        %v3196 = vadd.f32 %v3030, %v3152
        %v3197 = vadd.f32 %v3031, %v3155
        %v3198 = vadd.f32 %v3032, %v3160
        %v3199 = vadd.f32 %v3033, %v3163
        %v3200 = vadd.f32 %v3034, %v3168
        %v3201 = vadd.f32 %v3035, %v3171
        %v3202 = vadd.f32 %v3036, %v3176
        %v3203 = vadd.f32 %v3037, %v3179
        %v3204 = vadd.f32 %v3038, %v3184
        %v3205 = vadd.f32 %v3039, %v3187
        %s3206 = scalar_lea.vmem [#allocation2], 56
        %v3207 = vld [vmem:[%s3206] sm:$0xff]
        %v3208 = vld [vmem:[%s3206 + $0x8] sm:$0xff]
        %v3209 = vld [vmem:[%s3206 + $0x10] sm:$0xff]
        %v3210 = vld [vmem:[%s3206 + $0x18] sm:$0xff]
        %v3211 = vld [vmem:[%s3206 + $0x30] sm:$0xff]
        %v3212 = vld [vmem:[%s3206 + $0x38] sm:$0xff]
        %v3213 = vld [vmem:[%s3206 + $0x40] sm:$0xff]
        %v3214 = vld [vmem:[%s3206 + $0x48] sm:$0xff]
        %v3215 = vld [vmem:[%s3206 + $0x60] sm:$0xff]
        %v3216 = vld [vmem:[%s3206 + $0x68] sm:$0xff]
        %v3217 = vld [vmem:[%s3206 + $0x70] sm:$0xff]
        %v3218 = vld [vmem:[%s3206 + $0x78] sm:$0xff]
        %v3219 = vld [vmem:[%s3206 + $0x90] sm:$0xff]
        %v3220 = vld [vmem:[%s3206 + $0x98] sm:$0xff]
        %v3221 = vld [vmem:[%s3206 + $0xa0] sm:$0xff]
        %v3222 = vld [vmem:[%s3206 + $0xa8] sm:$0xff]
        %v3223 = vpack.c.bf16 %v3208, %v3207
        %v3224 = vpack.c.bf16 %v3210, %v3209
        %v3225 = vpack.c.bf16 %v3212, %v3211
        %v3226 = vpack.c.bf16 %v3214, %v3213
        %v3227 = vpack.c.bf16 %v3216, %v3215
        %v3228 = vpack.c.bf16 %v3218, %v3217
        %v3229 = vpack.c.bf16 %v3220, %v3219
        %v3230 = vpack.c.bf16 %v3222, %v3221
        %s3231 = scalar_lea.vmem [#allocation9], 16
        %v3232 = vld [vmem:[%s3231] sm:$0xf]
        %v3234 = vsel %vm2533, %v3223, 0
        %v3237 = vsel %vm2533, %v3224, 0
        %v3240 = vsel %vm2533, %v3225, 0
        %v3243 = vsel %vm2533, %v3226, 0
        %v3246 = vsel %vm2533, %v3227, 0
        %v3249 = vsel %vm2533, %v3228, 0
        %v3252 = vsel %vm2533, %v3229, 0
        %v3255 = vsel %vm2533, %v3230, 0
        %v3258 = vsel %vm2648, %v3232, 0
        %3260 = vmatprep.subr.bf16.mxu0 0
        %3261 = vmatpush1.bf16.msra.mxu0 %v3258
        %3262 = vmatprep.subr.bf16.mxu0 0
        %3263 = vmatpush1.bf16.msra.mxu0 0
        %3264 = vmatprep.subr.bf16.mxu0 0
        %3265 = vmatpush1.bf16.msra.mxu0 0
        %3266 = vmatprep.subr.bf16.mxu0 0
        %3267 = vmatpush1.bf16.msra.mxu0 0
        %3268 = vmatprep.subr.bf16.mxu0 0
        %3269 = vmatpush1.bf16.msra.mxu0 0
        %3270 = vmatprep.subr.bf16.mxu0 0
        %3271 = vmatpush1.bf16.msra.mxu0 0
        %3272 = vmatprep.subr.bf16.mxu0 0
        %3273 = vmatpush1.bf16.msra.mxu0 0
        %3274 = vmatprep.subr.bf16.mxu0 0
        %3275 = vmatpush1.bf16.msra.mxu0 0
        %3276 = vmatprep.subr.bf16.mxu0 0
        %3277 = vmatpush1.bf16.msra.mxu0 0
        %3278 = vmatprep.subr.bf16.mxu0 0
        %3279 = vmatpush1.bf16.msra.mxu0 0
        %3280 = vmatprep.subr.bf16.mxu0 0
        %3281 = vmatpush1.bf16.msra.mxu0 0
        %3282 = vmatprep.subr.bf16.mxu0 0
        %3283 = vmatpush1.bf16.msra.mxu0 0
        %3284 = vmatprep.subr.bf16.mxu0 0
        %3285 = vmatpush1.bf16.msra.mxu0 0
        %3286 = vmatprep.subr.bf16.mxu0 0
        %3287 = vmatpush1.bf16.msra.mxu0 0
        %3288 = vmatprep.subr.bf16.mxu0 0
        %3289 = vmatpush1.bf16.msra.mxu0 0
        %3290 = vmatprep.subr.bf16.mxu0 0
        %3291 = vmatpush1.bf16.msra.mxu0 0
        %3292 = vmatprep.mubr.bf16.mxu0 0
        %3293 = vmatmul.mubr.bf16.gmra.mrb[0].mxu0 %v3234
        %v3294 = vpop.f32.mrb[0].mxu0
        %v3295 = vadd.f32 0.0, %v3294
        %v3296 = vpop.f32.mrb[0].mxu0
        %v3297 = vpop.f32.mrb[0].mxu0
        %v3298 = vadd.f32 0.0, %v3297
        %v3299 = vpop.f32.mrb[0].mxu0
        %3300 = vmatprep.mubr.bf16.mxu0 0
        %3301 = vmatmul.mubr.bf16.gmra.mrb[0].mxu0 %v3237
        %v3302 = vpop.f32.mrb[0].mxu0
        %v3303 = vadd.f32 0.0, %v3302
        %v3304 = vpop.f32.mrb[0].mxu0
        %v3305 = vpop.f32.mrb[0].mxu0
        %v3306 = vadd.f32 0.0, %v3305
        %v3307 = vpop.f32.mrb[0].mxu0
        %3308 = vmatprep.mubr.bf16.mxu0 0
        %3309 = vmatmul.mubr.bf16.gmra.mrb[0].mxu0 %v3240
        %v3310 = vpop.f32.mrb[0].mxu0
        %v3311 = vadd.f32 0.0, %v3310
        %v3312 = vpop.f32.mrb[0].mxu0
        %v3313 = vpop.f32.mrb[0].mxu0
        %v3314 = vadd.f32 0.0, %v3313
        %v3315 = vpop.f32.mrb[0].mxu0
        %3316 = vmatprep.mubr.bf16.mxu0 0
        %3317 = vmatmul.mubr.bf16.gmra.mrb[0].mxu0 %v3243
        %v3318 = vpop.f32.mrb[0].mxu0
        %v3319 = vadd.f32 0.0, %v3318
        %v3320 = vpop.f32.mrb[0].mxu0
        %v3321 = vpop.f32.mrb[0].mxu0
        %v3322 = vadd.f32 0.0, %v3321
        %v3323 = vpop.f32.mrb[0].mxu0
        %3324 = vmatprep.mubr.bf16.mxu0 0
        %3325 = vmatmul.mubr.bf16.gmra.mrb[0].mxu0 %v3246
        %v3326 = vpop.f32.mrb[0].mxu0
        %v3327 = vadd.f32 0.0, %v3326
        %v3328 = vpop.f32.mrb[0].mxu0
        %v3329 = vpop.f32.mrb[0].mxu0
        %v3330 = vadd.f32 0.0, %v3329
        %v3331 = vpop.f32.mrb[0].mxu0
        %3332 = vmatprep.mubr.bf16.mxu0 0
        %3333 = vmatmul.mubr.bf16.gmra.mrb[0].mxu0 %v3249
        %v3334 = vpop.f32.mrb[0].mxu0
        %v3335 = vadd.f32 0.0, %v3334
        %v3336 = vpop.f32.mrb[0].mxu0
        %v3337 = vpop.f32.mrb[0].mxu0
        %v3338 = vadd.f32 0.0, %v3337
        %v3339 = vpop.f32.mrb[0].mxu0
        %3340 = vmatprep.mubr.bf16.mxu0 0
        %3341 = vmatmul.mubr.bf16.gmra.mrb[0].mxu0 %v3252
        %v3342 = vpop.f32.mrb[0].mxu0
        %v3343 = vadd.f32 0.0, %v3342
        %v3344 = vpop.f32.mrb[0].mxu0
        %v3345 = vpop.f32.mrb[0].mxu0
        %v3346 = vadd.f32 0.0, %v3345
        %v3347 = vpop.f32.mrb[0].mxu0
        %3348 = vmatprep.mubr.bf16.mxu0 0
        %3349 = vmatmul.mubr.bf16.gmra.mrb[0].mxu0 %v3255
        %v3350 = vpop.f32.mrb[0].mxu0
        %v3351 = vadd.f32 0.0, %v3350
        %v3352 = vpop.f32.mrb[0].mxu0
        %v3353 = vpop.f32.mrb[0].mxu0
        %v3354 = vadd.f32 0.0, %v3353
        %v3355 = vpop.f32.mrb[0].mxu0
        %3356 = vdwg.mxu0
        %v3357 = vadd.f32 %v3190, %v3295
        %v3358 = vadd.f32 %v3191, %v3298
        %v3359 = vadd.f32 %v3192, %v3303
        %v3360 = vadd.f32 %v3193, %v3306
        %v3361 = vadd.f32 %v3194, %v3311
        %v3362 = vadd.f32 %v3195, %v3314
        %v3363 = vadd.f32 %v3196, %v3319
        %v3364 = vadd.f32 %v3197, %v3322
        %v3365 = vadd.f32 %v3198, %v3327
        %v3366 = vadd.f32 %v3199, %v3330
        %v3367 = vadd.f32 %v3200, %v3335
        %v3368 = vadd.f32 %v3201, %v3338
        %v3369 = vadd.f32 %v3202, %v3343
        %v3370 = vadd.f32 %v3203, %v3346
        %v3371 = vadd.f32 %v3204, %v3351
        %v3372 = vadd.f32 %v3205, %v3354
        %s3373 = scalar_lea.vmem [#allocation2], 64
        %v3374 = vld [vmem:[%s3373] sm:$0xff]
        %v3375 = vld [vmem:[%s3373 + $0x8] sm:$0xff]
        %v3376 = vld [vmem:[%s3373 + $0x10] sm:$0xff]
        %v3377 = vld [vmem:[%s3373 + $0x18] sm:$0xff]
        %v3378 = vld [vmem:[%s3373 + $0x30] sm:$0xff]
        %v3379 = vld [vmem:[%s3373 + $0x38] sm:$0xff]
        %v3380 = vld [vmem:[%s3373 + $0x40] sm:$0xff]
        %v3381 = vld [vmem:[%s3373 + $0x48] sm:$0xff]
        %v3382 = vld [vmem:[%s3373 + $0x60] sm:$0xff]
        %v3383 = vld [vmem:[%s3373 + $0x68] sm:$0xff]
        %v3384 = vld [vmem:[%s3373 + $0x70] sm:$0xff]
        %v3385 = vld [vmem:[%s3373 + $0x78] sm:$0xff]
        %v3386 = vld [vmem:[%s3373 + $0x90] sm:$0xff]
        %v3387 = vld [vmem:[%s3373 + $0x98] sm:$0xff]
        %v3388 = vld [vmem:[%s3373 + $0xa0] sm:$0xff]
        %v3389 = vld [vmem:[%s3373 + $0xa8] sm:$0xff]
        %v3390 = vpack.c.bf16 %v3375, %v3374
        %v3391 = vpack.c.bf16 %v3377, %v3376
        %v3392 = vpack.c.bf16 %v3379, %v3378
        %v3393 = vpack.c.bf16 %v3381, %v3380
        %v3394 = vpack.c.bf16 %v3383, %v3382
        %v3395 = vpack.c.bf16 %v3385, %v3384
        %v3396 = vpack.c.bf16 %v3387, %v3386
        %v3397 = vpack.c.bf16 %v3389, %v3388
        %s3398 = scalar_lea.vmem [#allocation9], 20
        %v3399 = vld [vmem:[%s3398] sm:$0xf]
        %v3401 = vsel %vm2533, %v3390, 0
        %v3404 = vsel %vm2533, %v3391, 0
        %v3407 = vsel %vm2533, %v3392, 0
        %v3410 = vsel %vm2533, %v3393, 0
        %v3413 = vsel %vm2533, %v3394, 0
        %v3416 = vsel %vm2533, %v3395, 0
        %v3419 = vsel %vm2533, %v3396, 0
        %v3422 = vsel %vm2533, %v3397, 0
        %v3425 = vsel %vm2648, %v3399, 0
        %3427 = vmatprep.subr.bf16.mxu0 0
        %3428 = vmatpush1.bf16.msra.mxu0 %v3425
        %3429 = vmatprep.subr.bf16.mxu0 0
        %3430 = vmatpush1.bf16.msra.mxu0 0
        %3431 = vmatprep.subr.bf16.mxu0 0
        %3432 = vmatpush1.bf16.msra.mxu0 0
        %3433 = vmatprep.subr.bf16.mxu0 0
        %3434 = vmatpush1.bf16.msra.mxu0 0
        %3435 = vmatprep.subr.bf16.mxu0 0
        %3436 = vmatpush1.bf16.msra.mxu0 0
        %3437 = vmatprep.subr.bf16.mxu0 0
        %3438 = vmatpush1.bf16.msra.mxu0 0
        %3439 = vmatprep.subr.bf16.mxu0 0
        %3440 = vmatpush1.bf16.msra.mxu0 0
        %3441 = vmatprep.subr.bf16.mxu0 0
        %3442 = vmatpush1.bf16.msra.mxu0 0
        %3443 = vmatprep.subr.bf16.mxu0 0
        %3444 = vmatpush1.bf16.msra.mxu0 0
        %3445 = vmatprep.subr.bf16.mxu0 0
        %3446 = vmatpush1.bf16.msra.mxu0 0
        %3447 = vmatprep.subr.bf16.mxu0 0
        %3448 = vmatpush1.bf16.msra.mxu0 0
        %3449 = vmatprep.subr.bf16.mxu0 0
        %3450 = vmatpush1.bf16.msra.mxu0 0
        %3451 = vmatprep.subr.bf16.mxu0 0
        %3452 = vmatpush1.bf16.msra.mxu0 0
        %3453 = vmatprep.subr.bf16.mxu0 0
        %3454 = vmatpush1.bf16.msra.mxu0 0
        %3455 = vmatprep.subr.bf16.mxu0 0
        %3456 = vmatpush1.bf16.msra.mxu0 0
        %3457 = vmatprep.subr.bf16.mxu0 0
        %3458 = vmatpush1.bf16.msra.mxu0 0
        %3459 = vmatprep.mubr.bf16.mxu0 0
        %3460 = vmatmul.mubr.bf16.gmra.mrb[0].mxu0 %v3401
        %v3461 = vpop.f32.mrb[0].mxu0
        %v3462 = vadd.f32 0.0, %v3461
        %v3463 = vpop.f32.mrb[0].mxu0
        %v3464 = vpop.f32.mrb[0].mxu0
        %v3465 = vadd.f32 0.0, %v3464
        %v3466 = vpop.f32.mrb[0].mxu0
        %3467 = vmatprep.mubr.bf16.mxu0 0
        %3468 = vmatmul.mubr.bf16.gmra.mrb[0].mxu0 %v3404
        %v3469 = vpop.f32.mrb[0].mxu0
        %v3470 = vadd.f32 0.0, %v3469
        %v3471 = vpop.f32.mrb[0].mxu0
        %v3472 = vpop.f32.mrb[0].mxu0
        %v3473 = vadd.f32 0.0, %v3472
        %v3474 = vpop.f32.mrb[0].mxu0
        %3475 = vmatprep.mubr.bf16.mxu0 0
        %3476 = vmatmul.mubr.bf16.gmra.mrb[0].mxu0 %v3407
        %v3477 = vpop.f32.mrb[0].mxu0
        %v3478 = vadd.f32 0.0, %v3477
        %v3479 = vpop.f32.mrb[0].mxu0
        %v3480 = vpop.f32.mrb[0].mxu0
        %v3481 = vadd.f32 0.0, %v3480
        %v3482 = vpop.f32.mrb[0].mxu0
        %3483 = vmatprep.mubr.bf16.mxu0 0
        %3484 = vmatmul.mubr.bf16.gmra.mrb[0].mxu0 %v3410
        %v3485 = vpop.f32.mrb[0].mxu0
        %v3486 = vadd.f32 0.0, %v3485
        %v3487 = vpop.f32.mrb[0].mxu0
        %v3488 = vpop.f32.mrb[0].mxu0
        %v3489 = vadd.f32 0.0, %v3488
        %v3490 = vpop.f32.mrb[0].mxu0
        %3491 = vmatprep.mubr.bf16.mxu0 0
        %3492 = vmatmul.mubr.bf16.gmra.mrb[0].mxu0 %v3413
        %v3493 = vpop.f32.mrb[0].mxu0
        %v3494 = vadd.f32 0.0, %v3493
        %v3495 = vpop.f32.mrb[0].mxu0
        %v3496 = vpop.f32.mrb[0].mxu0
        %v3497 = vadd.f32 0.0, %v3496
        %v3498 = vpop.f32.mrb[0].mxu0
        %3499 = vmatprep.mubr.bf16.mxu0 0
        %3500 = vmatmul.mubr.bf16.gmra.mrb[0].mxu0 %v3416
        %v3501 = vpop.f32.mrb[0].mxu0
        %v3502 = vadd.f32 0.0, %v3501
        %v3503 = vpop.f32.mrb[0].mxu0
        %v3504 = vpop.f32.mrb[0].mxu0
        %v3505 = vadd.f32 0.0, %v3504
        %v3506 = vpop.f32.mrb[0].mxu0
        %3507 = vmatprep.mubr.bf16.mxu0 0
        %3508 = vmatmul.mubr.bf16.gmra.mrb[0].mxu0 %v3419
        %v3509 = vpop.f32.mrb[0].mxu0
        %v3510 = vadd.f32 0.0, %v3509
        %v3511 = vpop.f32.mrb[0].mxu0
        %v3512 = vpop.f32.mrb[0].mxu0
        %v3513 = vadd.f32 0.0, %v3512
        %v3514 = vpop.f32.mrb[0].mxu0
        %3515 = vmatprep.mubr.bf16.mxu0 0
        %3516 = vmatmul.mubr.bf16.gmra.mrb[0].mxu0 %v3422
        %v3517 = vpop.f32.mrb[0].mxu0
        %v3518 = vadd.f32 0.0, %v3517
        %v3519 = vpop.f32.mrb[0].mxu0
        %v3520 = vpop.f32.mrb[0].mxu0
        %v3521 = vadd.f32 0.0, %v3520
        %v3522 = vpop.f32.mrb[0].mxu0
        %3523 = vdwg.mxu0
        %v3524 = vadd.f32 %v3357, %v3462
        %v3525 = vadd.f32 %v3358, %v3465
        %v3526 = vadd.f32 %v3359, %v3470
        %v3527 = vadd.f32 %v3360, %v3473
        %v3528 = vadd.f32 %v3361, %v3478
        %v3529 = vadd.f32 %v3362, %v3481
        %v3530 = vadd.f32 %v3363, %v3486
        %v3531 = vadd.f32 %v3364, %v3489
        %v3532 = vadd.f32 %v3365, %v3494
        %v3533 = vadd.f32 %v3366, %v3497
        %v3534 = vadd.f32 %v3367, %v3502
        %v3535 = vadd.f32 %v3368, %v3505
        %v3536 = vadd.f32 %v3369, %v3510
        %v3537 = vadd.f32 %v3370, %v3513
        %v3538 = vadd.f32 %v3371, %v3518
        %v3539 = vadd.f32 %v3372, %v3521
        %s3540 = scalar_lea.vmem [#allocation2], 96
        %v3541 = vld [vmem:[%s3540] sm:$0xff]
        %v3542 = vld [vmem:[%s3540 + $0x8] sm:$0xff]
        %v3543 = vld [vmem:[%s3540 + $0x10] sm:$0xff]
        %v3544 = vld [vmem:[%s3540 + $0x18] sm:$0xff]
        %v3545 = vld [vmem:[%s3540 + $0x30] sm:$0xff]
        %v3546 = vld [vmem:[%s3540 + $0x38] sm:$0xff]
        %v3547 = vld [vmem:[%s3540 + $0x40] sm:$0xff]
        %v3548 = vld [vmem:[%s3540 + $0x48] sm:$0xff]
        %v3549 = vld [vmem:[%s3540 + $0x60] sm:$0xff]
        %v3550 = vld [vmem:[%s3540 + $0x68] sm:$0xff]
        %v3551 = vld [vmem:[%s3540 + $0x70] sm:$0xff]
        %v3552 = vld [vmem:[%s3540 + $0x78] sm:$0xff]
        %v3553 = vld [vmem:[%s3540 + $0x90] sm:$0xff]
        %v3554 = vld [vmem:[%s3540 + $0x98] sm:$0xff]
        %v3555 = vld [vmem:[%s3540 + $0xa0] sm:$0xff]
        %v3556 = vld [vmem:[%s3540 + $0xa8] sm:$0xff]
        %v3557 = vpack.c.bf16 %v3542, %v3541
        %v3558 = vpack.c.bf16 %v3544, %v3543
        %v3559 = vpack.c.bf16 %v3546, %v3545
        %v3560 = vpack.c.bf16 %v3548, %v3547
        %v3561 = vpack.c.bf16 %v3550, %v3549
        %v3562 = vpack.c.bf16 %v3552, %v3551
        %v3563 = vpack.c.bf16 %v3554, %v3553
        %v3564 = vpack.c.bf16 %v3556, %v3555
        %s3565 = scalar_lea.vmem [#allocation9], 24
        %v3566 = vld [vmem:[%s3565] sm:$0xf]
        %v3568 = vsel %vm2533, %v3557, 0
        %v3571 = vsel %vm2533, %v3558, 0
        %v3574 = vsel %vm2533, %v3559, 0
        %v3577 = vsel %vm2533, %v3560, 0
        %v3580 = vsel %vm2533, %v3561, 0
        %v3583 = vsel %vm2533, %v3562, 0
        %v3586 = vsel %vm2533, %v3563, 0
        %v3589 = vsel %vm2533, %v3564, 0
        %v3592 = vsel %vm2648, %v3566, 0
        %3594 = vmatprep.subr.bf16.mxu0 0
        %3595 = vmatpush1.bf16.msra.mxu0 %v3592
        %3596 = vmatprep.subr.bf16.mxu0 0
        %3597 = vmatpush1.bf16.msra.mxu0 0
        %3598 = vmatprep.subr.bf16.mxu0 0
        %3599 = vmatpush1.bf16.msra.mxu0 0
        %3600 = vmatprep.subr.bf16.mxu0 0
        %3601 = vmatpush1.bf16.msra.mxu0 0
        %3602 = vmatprep.subr.bf16.mxu0 0
        %3603 = vmatpush1.bf16.msra.mxu0 0
        %3604 = vmatprep.subr.bf16.mxu0 0
        %3605 = vmatpush1.bf16.msra.mxu0 0
        %3606 = vmatprep.subr.bf16.mxu0 0
        %3607 = vmatpush1.bf16.msra.mxu0 0
        %3608 = vmatprep.subr.bf16.mxu0 0
        %3609 = vmatpush1.bf16.msra.mxu0 0
        %3610 = vmatprep.subr.bf16.mxu0 0
        %3611 = vmatpush1.bf16.msra.mxu0 0
        %3612 = vmatprep.subr.bf16.mxu0 0
        %3613 = vmatpush1.bf16.msra.mxu0 0
        %3614 = vmatprep.subr.bf16.mxu0 0
        %3615 = vmatpush1.bf16.msra.mxu0 0
        %3616 = vmatprep.subr.bf16.mxu0 0
        %3617 = vmatpush1.bf16.msra.mxu0 0
        %3618 = vmatprep.subr.bf16.mxu0 0
        %3619 = vmatpush1.bf16.msra.mxu0 0
        %3620 = vmatprep.subr.bf16.mxu0 0
        %3621 = vmatpush1.bf16.msra.mxu0 0
        %3622 = vmatprep.subr.bf16.mxu0 0
        %3623 = vmatpush1.bf16.msra.mxu0 0
        %3624 = vmatprep.subr.bf16.mxu0 0
        %3625 = vmatpush1.bf16.msra.mxu0 0
        %3626 = vmatprep.mubr.bf16.mxu0 0
        %3627 = vmatmul.mubr.bf16.gmra.mrb[0].mxu0 %v3568
        %v3628 = vpop.f32.mrb[0].mxu0
        %v3629 = vadd.f32 0.0, %v3628
        %v3630 = vpop.f32.mrb[0].mxu0
        %v3631 = vpop.f32.mrb[0].mxu0
        %v3632 = vadd.f32 0.0, %v3631
        %v3633 = vpop.f32.mrb[0].mxu0
        %3634 = vmatprep.mubr.bf16.mxu0 0
        %3635 = vmatmul.mubr.bf16.gmra.mrb[0].mxu0 %v3571
        %v3636 = vpop.f32.mrb[0].mxu0
        %v3637 = vadd.f32 0.0, %v3636
        %v3638 = vpop.f32.mrb[0].mxu0
        %v3639 = vpop.f32.mrb[0].mxu0
        %v3640 = vadd.f32 0.0, %v3639
        %v3641 = vpop.f32.mrb[0].mxu0
        %3642 = vmatprep.mubr.bf16.mxu0 0
        %3643 = vmatmul.mubr.bf16.gmra.mrb[0].mxu0 %v3574
        %v3644 = vpop.f32.mrb[0].mxu0
        %v3645 = vadd.f32 0.0, %v3644
        %v3646 = vpop.f32.mrb[0].mxu0
        %v3647 = vpop.f32.mrb[0].mxu0
        %v3648 = vadd.f32 0.0, %v3647
        %v3649 = vpop.f32.mrb[0].mxu0
        %3650 = vmatprep.mubr.bf16.mxu0 0
        %3651 = vmatmul.mubr.bf16.gmra.mrb[0].mxu0 %v3577
        %v3652 = vpop.f32.mrb[0].mxu0
        %v3653 = vadd.f32 0.0, %v3652
        %v3654 = vpop.f32.mrb[0].mxu0
        %v3655 = vpop.f32.mrb[0].mxu0
        %v3656 = vadd.f32 0.0, %v3655
        %v3657 = vpop.f32.mrb[0].mxu0
        %3658 = vmatprep.mubr.bf16.mxu0 0
        %3659 = vmatmul.mubr.bf16.gmra.mrb[0].mxu0 %v3580
        %v3660 = vpop.f32.mrb[0].mxu0
        %v3661 = vadd.f32 0.0, %v3660
        %v3662 = vpop.f32.mrb[0].mxu0
        %v3663 = vpop.f32.mrb[0].mxu0
        %v3664 = vadd.f32 0.0, %v3663
        %v3665 = vpop.f32.mrb[0].mxu0
        %3666 = vmatprep.mubr.bf16.mxu0 0
        %3667 = vmatmul.mubr.bf16.gmra.mrb[0].mxu0 %v3583
        %v3668 = vpop.f32.mrb[0].mxu0
        %v3669 = vadd.f32 0.0, %v3668
        %v3670 = vpop.f32.mrb[0].mxu0
        %v3671 = vpop.f32.mrb[0].mxu0
        %v3672 = vadd.f32 0.0, %v3671
        %v3673 = vpop.f32.mrb[0].mxu0
        %3674 = vmatprep.mubr.bf16.mxu0 0
        %3675 = vmatmul.mubr.bf16.gmra.mrb[0].mxu0 %v3586
        %v3676 = vpop.f32.mrb[0].mxu0
        %v3677 = vadd.f32 0.0, %v3676
        %v3678 = vpop.f32.mrb[0].mxu0
        %v3679 = vpop.f32.mrb[0].mxu0
        %v3680 = vadd.f32 0.0, %v3679
        %v3681 = vpop.f32.mrb[0].mxu0
        %3682 = vmatprep.mubr.bf16.mxu0 0
        %3683 = vmatmul.mubr.bf16.gmra.mrb[0].mxu0 %v3589
        %v3684 = vpop.f32.mrb[0].mxu0
        %v3685 = vadd.f32 0.0, %v3684
        %v3686 = vpop.f32.mrb[0].mxu0
        %v3687 = vpop.f32.mrb[0].mxu0
        %v3688 = vadd.f32 0.0, %v3687
        %v3689 = vpop.f32.mrb[0].mxu0
        %3690 = vdwg.mxu0
        %v3691 = vadd.f32 %v3524, %v3629
        %v3692 = vadd.f32 %v3525, %v3632
        %v3693 = vadd.f32 %v3526, %v3637
        %v3694 = vadd.f32 %v3527, %v3640
        %v3695 = vadd.f32 %v3528, %v3645
        %v3696 = vadd.f32 %v3529, %v3648
        %v3697 = vadd.f32 %v3530, %v3653
        %v3698 = vadd.f32 %v3531, %v3656
        %v3699 = vadd.f32 %v3532, %v3661
        %v3700 = vadd.f32 %v3533, %v3664
        %v3701 = vadd.f32 %v3534, %v3669
        %v3702 = vadd.f32 %v3535, %v3672
        %v3703 = vadd.f32 %v3536, %v3677
        %v3704 = vadd.f32 %v3537, %v3680
        %v3705 = vadd.f32 %v3538, %v3685
        %v3706 = vadd.f32 %v3539, %v3688
        %s3707 = scalar_lea.vmem [#allocation2], 104
        %v3708 = vld [vmem:[%s3707] sm:$0xff]
        %v3709 = vld [vmem:[%s3707 + $0x8] sm:$0xff]
        %v3710 = vld [vmem:[%s3707 + $0x10] sm:$0xff]
        %v3711 = vld [vmem:[%s3707 + $0x18] sm:$0xff]
        %v3712 = vld [vmem:[%s3707 + $0x30] sm:$0xff]
        %v3713 = vld [vmem:[%s3707 + $0x38] sm:$0xff]
        %v3714 = vld [vmem:[%s3707 + $0x40] sm:$0xff]
        %v3715 = vld [vmem:[%s3707 + $0x48] sm:$0xff]
        %v3716 = vld [vmem:[%s3707 + $0x60] sm:$0xff]
        %v3717 = vld [vmem:[%s3707 + $0x68] sm:$0xff]
        %v3718 = vld [vmem:[%s3707 + $0x70] sm:$0xff]
        %v3719 = vld [vmem:[%s3707 + $0x78] sm:$0xff]
        %v3720 = vld [vmem:[%s3707 + $0x90] sm:$0xff]
        %v3721 = vld [vmem:[%s3707 + $0x98] sm:$0xff]
        %v3722 = vld [vmem:[%s3707 + $0xa0] sm:$0xff]
        %v3723 = vld [vmem:[%s3707 + $0xa8] sm:$0xff]
        %v3724 = vpack.c.bf16 %v3709, %v3708
        %v3725 = vpack.c.bf16 %v3711, %v3710
        %v3726 = vpack.c.bf16 %v3713, %v3712
        %v3727 = vpack.c.bf16 %v3715, %v3714
        %v3728 = vpack.c.bf16 %v3717, %v3716
        %v3729 = vpack.c.bf16 %v3719, %v3718
        %v3730 = vpack.c.bf16 %v3721, %v3720
        %v3731 = vpack.c.bf16 %v3723, %v3722
        %s3732 = scalar_lea.vmem [#allocation9], 28
        %v3733 = vld [vmem:[%s3732] sm:$0xf]
        %v3735 = vsel %vm2533, %v3724, 0
        %v3738 = vsel %vm2533, %v3725, 0
        %v3741 = vsel %vm2533, %v3726, 0
        %v3744 = vsel %vm2533, %v3727, 0
        %v3747 = vsel %vm2533, %v3728, 0
        %v3750 = vsel %vm2533, %v3729, 0
        %v3753 = vsel %vm2533, %v3730, 0
        %v3756 = vsel %vm2533, %v3731, 0
        %v3759 = vsel %vm2648, %v3733, 0
        %3761 = vmatprep.subr.bf16.mxu0 0
        %3762 = vmatpush1.bf16.msra.mxu0 %v3759
        %3763 = vmatprep.subr.bf16.mxu0 0
        %3764 = vmatpush1.bf16.msra.mxu0 0
        %3765 = vmatprep.subr.bf16.mxu0 0
        %3766 = vmatpush1.bf16.msra.mxu0 0
        %3767 = vmatprep.subr.bf16.mxu0 0
        %3768 = vmatpush1.bf16.msra.mxu0 0
        %3769 = vmatprep.subr.bf16.mxu0 0
        %3770 = vmatpush1.bf16.msra.mxu0 0
        %3771 = vmatprep.subr.bf16.mxu0 0
        %3772 = vmatpush1.bf16.msra.mxu0 0
        %3773 = vmatprep.subr.bf16.mxu0 0
        %3774 = vmatpush1.bf16.msra.mxu0 0
        %3775 = vmatprep.subr.bf16.mxu0 0
        %3776 = vmatpush1.bf16.msra.mxu0 0
        %3777 = vmatprep.subr.bf16.mxu0 0
        %3778 = vmatpush1.bf16.msra.mxu0 0
        %3779 = vmatprep.subr.bf16.mxu0 0
        %3780 = vmatpush1.bf16.msra.mxu0 0
        %3781 = vmatprep.subr.bf16.mxu0 0
        %3782 = vmatpush1.bf16.msra.mxu0 0
        %3783 = vmatprep.subr.bf16.mxu0 0
        %3784 = vmatpush1.bf16.msra.mxu0 0
        %3785 = vmatprep.subr.bf16.mxu0 0
        %3786 = vmatpush1.bf16.msra.mxu0 0
        %3787 = vmatprep.subr.bf16.mxu0 0
        %3788 = vmatpush1.bf16.msra.mxu0 0
        %3789 = vmatprep.subr.bf16.mxu0 0
        %3790 = vmatpush1.bf16.msra.mxu0 0
        %3791 = vmatprep.subr.bf16.mxu0 0
        %3792 = vmatpush1.bf16.msra.mxu0 0
        %3793 = vmatprep.mubr.bf16.mxu0 0
        %3794 = vmatmul.mubr.bf16.gmra.mrb[0].mxu0 %v3735
        %v3795 = vpop.f32.mrb[0].mxu0
        %v3796 = vadd.f32 0.0, %v3795
        %v3797 = vpop.f32.mrb[0].mxu0
        %v3798 = vpop.f32.mrb[0].mxu0
        %v3799 = vadd.f32 0.0, %v3798
        %v3800 = vpop.f32.mrb[0].mxu0
        %3801 = vmatprep.mubr.bf16.mxu0 0
        %3802 = vmatmul.mubr.bf16.gmra.mrb[0].mxu0 %v3738
        %v3803 = vpop.f32.mrb[0].mxu0
        %v3804 = vadd.f32 0.0, %v3803
        %v3805 = vpop.f32.mrb[0].mxu0
        %v3806 = vpop.f32.mrb[0].mxu0
        %v3807 = vadd.f32 0.0, %v3806
        %v3808 = vpop.f32.mrb[0].mxu0
        %3809 = vmatprep.mubr.bf16.mxu0 0
        %3810 = vmatmul.mubr.bf16.gmra.mrb[0].mxu0 %v3741
        %v3811 = vpop.f32.mrb[0].mxu0
        %v3812 = vadd.f32 0.0, %v3811
        %v3813 = vpop.f32.mrb[0].mxu0
        %v3814 = vpop.f32.mrb[0].mxu0
        %v3815 = vadd.f32 0.0, %v3814
        %v3816 = vpop.f32.mrb[0].mxu0
        %3817 = vmatprep.mubr.bf16.mxu0 0
        %3818 = vmatmul.mubr.bf16.gmra.mrb[0].mxu0 %v3744
        %v3819 = vpop.f32.mrb[0].mxu0
        %v3820 = vadd.f32 0.0, %v3819
        %v3821 = vpop.f32.mrb[0].mxu0
        %v3822 = vpop.f32.mrb[0].mxu0
        %v3823 = vadd.f32 0.0, %v3822
        %v3824 = vpop.f32.mrb[0].mxu0
        %3825 = vmatprep.mubr.bf16.mxu0 0
        %3826 = vmatmul.mubr.bf16.gmra.mrb[0].mxu0 %v3747
        %v3827 = vpop.f32.mrb[0].mxu0
        %v3828 = vadd.f32 0.0, %v3827
        %v3829 = vpop.f32.mrb[0].mxu0
        %v3830 = vpop.f32.mrb[0].mxu0
        %v3831 = vadd.f32 0.0, %v3830
        %v3832 = vpop.f32.mrb[0].mxu0
        %3833 = vmatprep.mubr.bf16.mxu0 0
        %3834 = vmatmul.mubr.bf16.gmra.mrb[0].mxu0 %v3750
        %v3835 = vpop.f32.mrb[0].mxu0
        %v3836 = vadd.f32 0.0, %v3835
        %v3837 = vpop.f32.mrb[0].mxu0
        %v3838 = vpop.f32.mrb[0].mxu0
        %v3839 = vadd.f32 0.0, %v3838
        %v3840 = vpop.f32.mrb[0].mxu0
        %3841 = vmatprep.mubr.bf16.mxu0 0
        %3842 = vmatmul.mubr.bf16.gmra.mrb[0].mxu0 %v3753
        %v3843 = vpop.f32.mrb[0].mxu0
        %v3844 = vadd.f32 0.0, %v3843
        %v3845 = vpop.f32.mrb[0].mxu0
        %v3846 = vpop.f32.mrb[0].mxu0
        %v3847 = vadd.f32 0.0, %v3846
        %v3848 = vpop.f32.mrb[0].mxu0
        %3849 = vmatprep.mubr.bf16.mxu0 0
        %3850 = vmatmul.mubr.bf16.gmra.mrb[0].mxu0 %v3756
        %v3851 = vpop.f32.mrb[0].mxu0
        %v3852 = vadd.f32 0.0, %v3851
        %v3853 = vpop.f32.mrb[0].mxu0
        %v3854 = vpop.f32.mrb[0].mxu0
        %v3855 = vadd.f32 0.0, %v3854
        %v3856 = vpop.f32.mrb[0].mxu0
        %3857 = vdwg.mxu0
        %v3858 = vadd.f32 %v3691, %v3796
        %v3859 = vadd.f32 %v3692, %v3799
        %v3860 = vadd.f32 %v3693, %v3804
        %v3861 = vadd.f32 %v3694, %v3807
        %v3862 = vadd.f32 %v3695, %v3812
        %v3863 = vadd.f32 %v3696, %v3815
        %v3864 = vadd.f32 %v3697, %v3820
        %v3865 = vadd.f32 %v3698, %v3823
        %v3866 = vadd.f32 %v3699, %v3828
        %v3867 = vadd.f32 %v3700, %v3831
        %v3868 = vadd.f32 %v3701, %v3836
        %v3869 = vadd.f32 %v3702, %v3839
        %v3870 = vadd.f32 %v3703, %v3844
        %v3871 = vadd.f32 %v3704, %v3847
        %v3872 = vadd.f32 %v3705, %v3852
        %v3873 = vadd.f32 %v3706, %v3855
        %s3874 = scalar_lea.vmem [#allocation2], 112
        %v3875 = vld [vmem:[%s3874] sm:$0xff]
        %v3876 = vld [vmem:[%s3874 + $0x8] sm:$0xff]
        %v3877 = vld [vmem:[%s3874 + $0x10] sm:$0xff]
        %v3878 = vld [vmem:[%s3874 + $0x18] sm:$0xff]
        %v3879 = vld [vmem:[%s3874 + $0x30] sm:$0xff]
        %v3880 = vld [vmem:[%s3874 + $0x38] sm:$0xff]
        %v3881 = vld [vmem:[%s3874 + $0x40] sm:$0xff]
        %v3882 = vld [vmem:[%s3874 + $0x48] sm:$0xff]
        %v3883 = vld [vmem:[%s3874 + $0x60] sm:$0xff]
        %v3884 = vld [vmem:[%s3874 + $0x68] sm:$0xff]
        %v3885 = vld [vmem:[%s3874 + $0x70] sm:$0xff]
        %v3886 = vld [vmem:[%s3874 + $0x78] sm:$0xff]
        %v3887 = vld [vmem:[%s3874 + $0x90] sm:$0xff]
        %v3888 = vld [vmem:[%s3874 + $0x98] sm:$0xff]
        %v3889 = vld [vmem:[%s3874 + $0xa0] sm:$0xff]
        %v3890 = vld [vmem:[%s3874 + $0xa8] sm:$0xff]
        %v3891 = vpack.c.bf16 %v3876, %v3875
        %v3892 = vpack.c.bf16 %v3878, %v3877
        %v3893 = vpack.c.bf16 %v3880, %v3879
        %v3894 = vpack.c.bf16 %v3882, %v3881
        %v3895 = vpack.c.bf16 %v3884, %v3883
        %v3896 = vpack.c.bf16 %v3886, %v3885
        %v3897 = vpack.c.bf16 %v3888, %v3887
        %v3898 = vpack.c.bf16 %v3890, %v3889
        %s3899 = scalar_lea.vmem [#allocation9], 32
        %v3900 = vld [vmem:[%s3899] sm:$0xf]
        %v3902 = vsel %vm2533, %v3891, 0
        %v3905 = vsel %vm2533, %v3892, 0
        %v3908 = vsel %vm2533, %v3893, 0
        %v3911 = vsel %vm2533, %v3894, 0
        %v3914 = vsel %vm2533, %v3895, 0
        %v3917 = vsel %vm2533, %v3896, 0
        %v3920 = vsel %vm2533, %v3897, 0
        %v3923 = vsel %vm2533, %v3898, 0
        %v3926 = vsel %vm2648, %v3900, 0
        %3928 = vmatprep.subr.bf16.mxu0 0
        %3929 = vmatpush1.bf16.msra.mxu0 %v3926
        %3930 = vmatprep.subr.bf16.mxu0 0
        %3931 = vmatpush1.bf16.msra.mxu0 0
        %3932 = vmatprep.subr.bf16.mxu0 0
        %3933 = vmatpush1.bf16.msra.mxu0 0
        %3934 = vmatprep.subr.bf16.mxu0 0
        %3935 = vmatpush1.bf16.msra.mxu0 0
        %3936 = vmatprep.subr.bf16.mxu0 0
        %3937 = vmatpush1.bf16.msra.mxu0 0
        %3938 = vmatprep.subr.bf16.mxu0 0
        %3939 = vmatpush1.bf16.msra.mxu0 0
        %3940 = vmatprep.subr.bf16.mxu0 0
        %3941 = vmatpush1.bf16.msra.mxu0 0
        %3942 = vmatprep.subr.bf16.mxu0 0
        %3943 = vmatpush1.bf16.msra.mxu0 0
        %3944 = vmatprep.subr.bf16.mxu0 0
        %3945 = vmatpush1.bf16.msra.mxu0 0
        %3946 = vmatprep.subr.bf16.mxu0 0
        %3947 = vmatpush1.bf16.msra.mxu0 0
        %3948 = vmatprep.subr.bf16.mxu0 0
        %3949 = vmatpush1.bf16.msra.mxu0 0
        %3950 = vmatprep.subr.bf16.mxu0 0
        %3951 = vmatpush1.bf16.msra.mxu0 0
        %3952 = vmatprep.subr.bf16.mxu0 0
        %3953 = vmatpush1.bf16.msra.mxu0 0
        %3954 = vmatprep.subr.bf16.mxu0 0
        %3955 = vmatpush1.bf16.msra.mxu0 0
        %3956 = vmatprep.subr.bf16.mxu0 0
        %3957 = vmatpush1.bf16.msra.mxu0 0
        %3958 = vmatprep.subr.bf16.mxu0 0
        %3959 = vmatpush1.bf16.msra.mxu0 0
        %3960 = vmatprep.mubr.bf16.mxu0 0
        %3961 = vmatmul.mubr.bf16.gmra.mrb[0].mxu0 %v3902
        %v3962 = vpop.f32.mrb[0].mxu0
        %v3963 = vadd.f32 0.0, %v3962
        %v3964 = vpop.f32.mrb[0].mxu0
        %v3965 = vpop.f32.mrb[0].mxu0
        %v3966 = vadd.f32 0.0, %v3965
        %v3967 = vpop.f32.mrb[0].mxu0
        %3968 = vmatprep.mubr.bf16.mxu0 0
        %3969 = vmatmul.mubr.bf16.gmra.mrb[0].mxu0 %v3905
        %v3970 = vpop.f32.mrb[0].mxu0
        %v3971 = vadd.f32 0.0, %v3970
        %v3972 = vpop.f32.mrb[0].mxu0
        %v3973 = vpop.f32.mrb[0].mxu0
        %v3974 = vadd.f32 0.0, %v3973
        %v3975 = vpop.f32.mrb[0].mxu0
        %3976 = vmatprep.mubr.bf16.mxu0 0
        %3977 = vmatmul.mubr.bf16.gmra.mrb[0].mxu0 %v3908
        %v3978 = vpop.f32.mrb[0].mxu0
        %v3979 = vadd.f32 0.0, %v3978
        %v3980 = vpop.f32.mrb[0].mxu0
        %v3981 = vpop.f32.mrb[0].mxu0
        %v3982 = vadd.f32 0.0, %v3981
        %v3983 = vpop.f32.mrb[0].mxu0
        %3984 = vmatprep.mubr.bf16.mxu0 0
        %3985 = vmatmul.mubr.bf16.gmra.mrb[0].mxu0 %v3911
        %v3986 = vpop.f32.mrb[0].mxu0
        %v3987 = vadd.f32 0.0, %v3986
        %v3988 = vpop.f32.mrb[0].mxu0
        %v3989 = vpop.f32.mrb[0].mxu0
        %v3990 = vadd.f32 0.0, %v3989
        %v3991 = vpop.f32.mrb[0].mxu0
        %3992 = vmatprep.mubr.bf16.mxu0 0
        %3993 = vmatmul.mubr.bf16.gmra.mrb[0].mxu0 %v3914
        %v3994 = vpop.f32.mrb[0].mxu0
        %v3995 = vadd.f32 0.0, %v3994
        %v3996 = vpop.f32.mrb[0].mxu0
        %v3997 = vpop.f32.mrb[0].mxu0
        %v3998 = vadd.f32 0.0, %v3997
        %v3999 = vpop.f32.mrb[0].mxu0
        %4000 = vmatprep.mubr.bf16.mxu0 0
        %4001 = vmatmul.mubr.bf16.gmra.mrb[0].mxu0 %v3917
        %v4002 = vpop.f32.mrb[0].mxu0
        %v4003 = vadd.f32 0.0, %v4002
        %v4004 = vpop.f32.mrb[0].mxu0
        %v4005 = vpop.f32.mrb[0].mxu0
        %v4006 = vadd.f32 0.0, %v4005
        %v4007 = vpop.f32.mrb[0].mxu0
        %4008 = vmatprep.mubr.bf16.mxu0 0
        %4009 = vmatmul.mubr.bf16.gmra.mrb[0].mxu0 %v3920
        %v4010 = vpop.f32.mrb[0].mxu0
        %v4011 = vadd.f32 0.0, %v4010
        %v4012 = vpop.f32.mrb[0].mxu0
        %v4013 = vpop.f32.mrb[0].mxu0
        %v4014 = vadd.f32 0.0, %v4013
        %v4015 = vpop.f32.mrb[0].mxu0
        %4016 = vmatprep.mubr.bf16.mxu0 0
        %4017 = vmatmul.mubr.bf16.gmra.mrb[0].mxu0 %v3923
        %v4018 = vpop.f32.mrb[0].mxu0
        %v4019 = vadd.f32 0.0, %v4018
        %v4020 = vpop.f32.mrb[0].mxu0
        %v4021 = vpop.f32.mrb[0].mxu0
        %v4022 = vadd.f32 0.0, %v4021
        %v4023 = vpop.f32.mrb[0].mxu0
        %4024 = vdwg.mxu0
        %v4025 = vadd.f32 %v3858, %v3963
        %v4026 = vadd.f32 %v3859, %v3966
        %v4027 = vadd.f32 %v3860, %v3971
        %v4028 = vadd.f32 %v3861, %v3974
        %v4029 = vadd.f32 %v3862, %v3979
        %v4030 = vadd.f32 %v3863, %v3982
        %v4031 = vadd.f32 %v3864, %v3987
        %v4032 = vadd.f32 %v3865, %v3990
        %v4033 = vadd.f32 %v3866, %v3995
        %v4034 = vadd.f32 %v3867, %v3998
        %v4035 = vadd.f32 %v3868, %v4003
        %v4036 = vadd.f32 %v3869, %v4006
        %v4037 = vadd.f32 %v3870, %v4011
        %v4038 = vadd.f32 %v3871, %v4014
        %v4039 = vadd.f32 %v3872, %v4019
        %v4040 = vadd.f32 %v3873, %v4022
        %v4041 = vld [vmem:[#allocation11] sm:$0x1]
        %v4043 = vlaneseq
        %v4044 = vshrl.u32 %v4043, 7
        %v4045 = vsub.s32 0, %v4044
        %v4046 = vrot.slane %v4041, %v4045
        %v4048 = vadd.f32 %v4025, %v4046
        %v4049 = vadd.f32 %v4026, %v4046
        %v4050 = vadd.f32 %v4027, %v4046
        %v4051 = vadd.f32 %v4028, %v4046
        %v4052 = vadd.f32 %v4029, %v4046
        %v4053 = vadd.f32 %v4030, %v4046
        %v4054 = vadd.f32 %v4031, %v4046
        %v4055 = vadd.f32 %v4032, %v4046
        %v4056 = vadd.f32 %v4033, %v4046
        %v4057 = vadd.f32 %v4034, %v4046
        %v4058 = vadd.f32 %v4035, %v4046
        %v4059 = vadd.f32 %v4036, %v4046
        %v4060 = vadd.f32 %v4037, %v4046
        %v4061 = vadd.f32 %v4038, %v4046
        %v4062 = vadd.f32 %v4039, %v4046
        %v4063 = vadd.f32 %v4040, %v4046
        %v4064 = vmax.f32 %v4048, 0.0
        %v4065 = vmax.f32 %v4049, 0.0
        %v4066 = vmax.f32 %v4050, 0.0
        %v4067 = vmax.f32 %v4051, 0.0
        %v4068 = vmax.f32 %v4052, 0.0
        %v4069 = vmax.f32 %v4053, 0.0
        %v4070 = vmax.f32 %v4054, 0.0
        %v4071 = vmax.f32 %v4055, 0.0
        %v4072 = vmax.f32 %v4056, 0.0
        %v4073 = vmax.f32 %v4057, 0.0
        %v4074 = vmax.f32 %v4058, 0.0
        %v4075 = vmax.f32 %v4059, 0.0
        %v4076 = vmax.f32 %v4060, 0.0
        %v4077 = vmax.f32 %v4061, 0.0
        %v4078 = vmax.f32 %v4062, 0.0
        %v4079 = vmax.f32 %v4063, 0.0
        %v4096 = vrot.slane %v4064, 7
        %v4097 = vrot.slane %v4065, 7
        %v4098 = vrot.slane %v4066, 7
        %v4099 = vrot.slane %v4067, 7
        %v4100 = vrot.slane %v4068, 7
        %v4101 = vrot.slane %v4069, 7
        %v4102 = vrot.slane %v4070, 7
        %v4103 = vrot.slane %v4071, 7
        %v4104 = vrot.slane %v4072, 7
        %v4105 = vrot.slane %v4073, 7
        %v4106 = vrot.slane %v4074, 7
        %v4107 = vrot.slane %v4075, 7
        %v4108 = vrot.slane %v4076, 7
        %v4109 = vrot.slane %v4077, 7
        %v4110 = vrot.slane %v4078, 7
        %v4111 = vrot.slane %v4079, 7
        %vm4128 = vcmask 1040384
        %v4129 = vsel %vm4128, 0.0, %v4096
        %v4130 = vsel %vm4128, 0.0, %v4097
        %v4131 = vsel %vm4128, 0.0, %v4098
        %v4132 = vsel %vm4128, 0.0, %v4099
        %v4133 = vsel %vm4128, 0.0, %v4100
        %v4134 = vsel %vm4128, 0.0, %v4101
        %v4135 = vsel %vm4128, 0.0, %v4102
        %v4136 = vsel %vm4128, 0.0, %v4103
        %v4137 = vsel %vm4128, 0.0, %v4104
        %v4138 = vsel %vm4128, 0.0, %v4105
        %v4139 = vsel %vm4128, 0.0, %v4106
        %v4140 = vsel %vm4128, 0.0, %v4107
        %v4141 = vsel %vm4128, 0.0, %v4108
        %v4142 = vsel %vm4128, 0.0, %v4109
        %v4143 = vsel %vm4128, 0.0, %v4110
        %v4144 = vsel %vm4128, 0.0, %v4111
        %v4145 = vrot.slane %v4064, 1
        %v4146 = vrot.slane %v4065, 1
        %v4147 = vrot.slane %v4066, 1
        %v4148 = vrot.slane %v4067, 1
        %v4149 = vrot.slane %v4068, 1
        %v4150 = vrot.slane %v4069, 1
        %v4151 = vrot.slane %v4070, 1
        %v4152 = vrot.slane %v4071, 1
        %v4153 = vrot.slane %v4072, 1
        %v4154 = vrot.slane %v4073, 1
        %v4155 = vrot.slane %v4074, 1
        %v4156 = vrot.slane %v4075, 1
        %v4157 = vrot.slane %v4076, 1
        %v4158 = vrot.slane %v4077, 1
        %v4159 = vrot.slane %v4078, 1
        %v4160 = vrot.slane %v4079, 1
        %vm4177 = vcmask 1046528
        %v4178 = vsel %vm4177, %v4145, 0.0
        %v4179 = vsel %vm4177, %v4146, 0.0
        %v4180 = vsel %vm4177, %v4147, 0.0
        %v4181 = vsel %vm4177, %v4148, 0.0
        %v4182 = vsel %vm4177, %v4149, 0.0
        %v4183 = vsel %vm4177, %v4150, 0.0
        %v4184 = vsel %vm4177, %v4151, 0.0
        %v4185 = vsel %vm4177, %v4152, 0.0
        %v4186 = vsel %vm4177, %v4153, 0.0
        %v4187 = vsel %vm4177, %v4154, 0.0
        %v4188 = vsel %vm4177, %v4155, 0.0
        %v4189 = vsel %vm4177, %v4156, 0.0
        %v4190 = vsel %vm4177, %v4157, 0.0
        %v4191 = vsel %vm4177, %v4158, 0.0
        %v4192 = vsel %vm4177, %v4159, 0.0
        %v4193 = vsel %vm4177, %v4160, 0.0
        %v4194 = vpack.c.bf16 %v4130, %v4129
        %v4195 = vpack.c.bf16 %v4132, %v4131
        %v4196 = vpack.c.bf16 %v4134, %v4133
        %v4197 = vpack.c.bf16 %v4136, %v4135
        %v4198 = vpack.c.bf16 %v4138, %v4137
        %v4199 = vpack.c.bf16 %v4140, %v4139
        %v4200 = vpack.c.bf16 %v4142, %v4141
        %v4201 = vpack.c.bf16 %v4144, %v4143
        %v4202 = vld [vmem:[#allocation12] sm:$0xf]
        %v4203 = vpack.c.bf16 %v4065, %v4064
        %v4204 = vpack.c.bf16 %v4067, %v4066
        %v4205 = vpack.c.bf16 %v4069, %v4068
        %v4206 = vpack.c.bf16 %v4071, %v4070
        %v4207 = vpack.c.bf16 %v4073, %v4072
        %v4208 = vpack.c.bf16 %v4075, %v4074
        %v4209 = vpack.c.bf16 %v4077, %v4076
        %v4210 = vpack.c.bf16 %v4079, %v4078
        %s4211 = scalar_lea.vmem [#allocation12], 4
        %v4212 = vld [vmem:[%s4211] sm:$0xf]
        %v4214 = vsel %vm2533, %v4203, 0
        %v4217 = vsel %vm2533, %v4204, 0
        %v4220 = vsel %vm2533, %v4205, 0
        %v4223 = vsel %vm2533, %v4206, 0
        %v4226 = vsel %vm2533, %v4207, 0
        %v4229 = vsel %vm2533, %v4208, 0
        %v4232 = vsel %vm2533, %v4209, 0
        %v4235 = vsel %vm2533, %v4210, 0
        %v4238 = vsel %vm2648, %v4212, 0
        %4240 = vmatprep.subr.bf16.mxu0 0
        %4241 = vmatpush1.bf16.msra.mxu0 %v4238
        %4242 = vmatprep.subr.bf16.mxu0 0
        %4243 = vmatpush1.bf16.msra.mxu0 0
        %4244 = vmatprep.subr.bf16.mxu0 0
        %4245 = vmatpush1.bf16.msra.mxu0 0
        %4246 = vmatprep.subr.bf16.mxu0 0
        %4247 = vmatpush1.bf16.msra.mxu0 0
        %4248 = vmatprep.subr.bf16.mxu0 0
        %4249 = vmatpush1.bf16.msra.mxu0 0
        %4250 = vmatprep.subr.bf16.mxu0 0
        %4251 = vmatpush1.bf16.msra.mxu0 0
        %4252 = vmatprep.subr.bf16.mxu0 0
        %4253 = vmatpush1.bf16.msra.mxu0 0
        %4254 = vmatprep.subr.bf16.mxu0 0
        %4255 = vmatpush1.bf16.msra.mxu0 0
        %4256 = vmatprep.subr.bf16.mxu0 0
        %4257 = vmatpush1.bf16.msra.mxu0 0
        %4258 = vmatprep.subr.bf16.mxu0 0
        %4259 = vmatpush1.bf16.msra.mxu0 0
        %4260 = vmatprep.subr.bf16.mxu0 0
        %4261 = vmatpush1.bf16.msra.mxu0 0
        %4262 = vmatprep.subr.bf16.mxu0 0
        %4263 = vmatpush1.bf16.msra.mxu0 0
        %4264 = vmatprep.subr.bf16.mxu0 0
        %4265 = vmatpush1.bf16.msra.mxu0 0
        %4266 = vmatprep.subr.bf16.mxu0 0
        %4267 = vmatpush1.bf16.msra.mxu0 0
        %4268 = vmatprep.subr.bf16.mxu0 0
        %4269 = vmatpush1.bf16.msra.mxu0 0
        %4270 = vmatprep.subr.bf16.mxu0 0
        %4271 = vmatpush1.bf16.msra.mxu0 0
        %4272 = vmatprep.mubr.bf16.mxu0 0
        %4273 = vmatmul.mubr.bf16.gmra.mrb[0].mxu0 %v4214
        %v4274 = vpop.f32.mrb[0].mxu0
        %v4275 = vadd.f32 0.0, %v4274
        %v4276 = vpop.f32.mrb[0].mxu0
        %v4277 = vpop.f32.mrb[0].mxu0
        %v4278 = vadd.f32 0.0, %v4277
        %v4279 = vpop.f32.mrb[0].mxu0
        %4280 = vmatprep.mubr.bf16.mxu0 0
        %4281 = vmatmul.mubr.bf16.gmra.mrb[0].mxu0 %v4217
        %v4282 = vpop.f32.mrb[0].mxu0
        %v4283 = vadd.f32 0.0, %v4282
        %v4284 = vpop.f32.mrb[0].mxu0
        %v4285 = vpop.f32.mrb[0].mxu0
        %v4286 = vadd.f32 0.0, %v4285
        %v4287 = vpop.f32.mrb[0].mxu0
        %4288 = vmatprep.mubr.bf16.mxu0 0
        %4289 = vmatmul.mubr.bf16.gmra.mrb[0].mxu0 %v4220
        %v4290 = vpop.f32.mrb[0].mxu0
        %v4291 = vpop.f32.mrb[0].mxu0
        %v4292 = vpop.f32.mrb[0].mxu0
        %v4293 = vpop.f32.mrb[0].mxu0
        %4294 = vmatprep.mubr.bf16.mxu0 0
        %4295 = vmatmul.mubr.bf16.gmra.mrb[0].mxu0 %v4223
        %v4296 = vpop.f32.mrb[0].mxu0
        %v4297 = vpop.f32.mrb[0].mxu0
        %v4298 = vpop.f32.mrb[0].mxu0
        %v4299 = vpop.f32.mrb[0].mxu0
        %4300 = vmatprep.mubr.bf16.mxu0 0
        %4301 = vmatmul.mubr.bf16.gmra.mrb[0].mxu0 %v4226
        %v4302 = vpop.f32.mrb[0].mxu0
        %v4303 = vadd.f32 0.0, %v4302
        %v4304 = vpop.f32.mrb[0].mxu0
        %v4305 = vpop.f32.mrb[0].mxu0
        %v4306 = vadd.f32 0.0, %v4305
        %v4307 = vpop.f32.mrb[0].mxu0
        %4308 = vmatprep.mubr.bf16.mxu0 0
        %4309 = vmatmul.mubr.bf16.gmra.mrb[0].mxu0 %v4229
        %v4310 = vpop.f32.mrb[0].mxu0
        %v4311 = vadd.f32 0.0, %v4310
        %v4312 = vpop.f32.mrb[0].mxu0
        %v4313 = vpop.f32.mrb[0].mxu0
        %v4314 = vadd.f32 0.0, %v4313
        %v4315 = vpop.f32.mrb[0].mxu0
        %4316 = vmatprep.mubr.bf16.mxu0 0
        %4317 = vmatmul.mubr.bf16.gmra.mrb[0].mxu0 %v4232
        %v4318 = vpop.f32.mrb[0].mxu0
        %v4319 = vpop.f32.mrb[0].mxu0
        %v4320 = vpop.f32.mrb[0].mxu0
        %v4321 = vpop.f32.mrb[0].mxu0
        %4322 = vmatprep.mubr.bf16.mxu0 0
        %4323 = vmatmul.mubr.bf16.gmra.mrb[0].mxu0 %v4235
        %v4324 = vpop.f32.mrb[0].mxu0
        %v4325 = vpop.f32.mrb[0].mxu0
        %v4326 = vpop.f32.mrb[0].mxu0
        %v4327 = vpop.f32.mrb[0].mxu0
        %4328 = vdwg.mxu0
        %v4330 = vsel %vm2533, %v4194, 0
        %v4333 = vsel %vm2533, %v4195, 0
        %v4336 = vsel %vm2533, %v4196, 0
        %v4339 = vsel %vm2533, %v4197, 0
        %v4342 = vsel %vm2533, %v4198, 0
        %v4345 = vsel %vm2533, %v4199, 0
        %v4348 = vsel %vm2533, %v4200, 0
        %v4351 = vsel %vm2533, %v4201, 0
        %v4354 = vsel %vm2648, %v4202, 0
        %4356 = vmatprep.subr.bf16.mxu0 0
        %4357 = vmatpush1.bf16.msra.mxu0 %v4354
        %4358 = vmatprep.subr.bf16.mxu0 0
        %4359 = vmatpush1.bf16.msra.mxu0 0
        %4360 = vmatprep.subr.bf16.mxu0 0
        %4361 = vmatpush1.bf16.msra.mxu0 0
        %4362 = vmatprep.subr.bf16.mxu0 0
        %4363 = vmatpush1.bf16.msra.mxu0 0
        %4364 = vmatprep.subr.bf16.mxu0 0
        %4365 = vmatpush1.bf16.msra.mxu0 0
        %4366 = vmatprep.subr.bf16.mxu0 0
        %4367 = vmatpush1.bf16.msra.mxu0 0
        %4368 = vmatprep.subr.bf16.mxu0 0
        %4369 = vmatpush1.bf16.msra.mxu0 0
        %4370 = vmatprep.subr.bf16.mxu0 0
        %4371 = vmatpush1.bf16.msra.mxu0 0
        %4372 = vmatprep.subr.bf16.mxu0 0
        %4373 = vmatpush1.bf16.msra.mxu0 0
        %4374 = vmatprep.subr.bf16.mxu0 0
        %4375 = vmatpush1.bf16.msra.mxu0 0
        %4376 = vmatprep.subr.bf16.mxu0 0
        %4377 = vmatpush1.bf16.msra.mxu0 0
        %4378 = vmatprep.subr.bf16.mxu0 0
        %4379 = vmatpush1.bf16.msra.mxu0 0
        %4380 = vmatprep.subr.bf16.mxu0 0
        %4381 = vmatpush1.bf16.msra.mxu0 0
        %4382 = vmatprep.subr.bf16.mxu0 0
        %4383 = vmatpush1.bf16.msra.mxu0 0
        %4384 = vmatprep.subr.bf16.mxu0 0
        %4385 = vmatpush1.bf16.msra.mxu0 0
        %4386 = vmatprep.subr.bf16.mxu0 0
        %4387 = vmatpush1.bf16.msra.mxu0 0
        %4388 = vmatprep.mubr.bf16.mxu0 0
        %4389 = vmatmul.mubr.bf16.gmra.mrb[0].mxu0 %v4330
        %v4390 = vpop.f32.mrb[0].mxu0
        %v4391 = vadd.f32 %v4275, %v4390
        %v4392 = vpop.f32.mrb[0].mxu0
        %v4393 = vpop.f32.mrb[0].mxu0
        %v4394 = vadd.f32 %v4278, %v4393
        %v4395 = vpop.f32.mrb[0].mxu0
        %4396 = vmatprep.mubr.bf16.mxu0 0
        %4397 = vmatmul.mubr.bf16.gmra.mrb[0].mxu0 %v4333
        %v4398 = vpop.f32.mrb[0].mxu0
        %v4399 = vadd.f32 %v4283, %v4398
        %v4400 = vpop.f32.mrb[0].mxu0
        %v4401 = vpop.f32.mrb[0].mxu0
        %v4402 = vadd.f32 %v4286, %v4401
        %v4403 = vpop.f32.mrb[0].mxu0
        %4404 = vmatprep.mubr.bf16.mxu0 0
        %4405 = vmatmul.mubr.bf16.gmra.mrb[0].mxu0 %v4336
        %v4406 = vpop.f32.mrb[0].mxu0
        %v4407 = vpop.f32.mrb[0].mxu0
        %v4408 = vpop.f32.mrb[0].mxu0
        %v4409 = vpop.f32.mrb[0].mxu0
        %4410 = vmatprep.mubr.bf16.mxu0 0
        %4411 = vmatmul.mubr.bf16.gmra.mrb[0].mxu0 %v4339
        %v4412 = vpop.f32.mrb[0].mxu0
        %v4413 = vpop.f32.mrb[0].mxu0
        %v4414 = vpop.f32.mrb[0].mxu0
        %v4415 = vpop.f32.mrb[0].mxu0
        %4416 = vmatprep.mubr.bf16.mxu0 0
        %4417 = vmatmul.mubr.bf16.gmra.mrb[0].mxu0 %v4342
        %v4418 = vpop.f32.mrb[0].mxu0
        %v4419 = vadd.f32 %v4303, %v4418
        %v4420 = vpop.f32.mrb[0].mxu0
        %v4421 = vpop.f32.mrb[0].mxu0
        %v4422 = vadd.f32 %v4306, %v4421
        %v4423 = vpop.f32.mrb[0].mxu0
        %4424 = vmatprep.mubr.bf16.mxu0 0
        %4425 = vmatmul.mubr.bf16.gmra.mrb[0].mxu0 %v4345
        %v4426 = vpop.f32.mrb[0].mxu0
        %v4427 = vadd.f32 %v4311, %v4426
        %v4428 = vpop.f32.mrb[0].mxu0
        %v4429 = vpop.f32.mrb[0].mxu0
        %v4430 = vadd.f32 %v4314, %v4429
        %v4431 = vpop.f32.mrb[0].mxu0
        %4432 = vmatprep.mubr.bf16.mxu0 0
        %4433 = vmatmul.mubr.bf16.gmra.mrb[0].mxu0 %v4348
        %v4434 = vpop.f32.mrb[0].mxu0
        %v4435 = vpop.f32.mrb[0].mxu0
        %v4436 = vpop.f32.mrb[0].mxu0
        %v4437 = vpop.f32.mrb[0].mxu0
        %4438 = vmatprep.mubr.bf16.mxu0 0
        %4439 = vmatmul.mubr.bf16.gmra.mrb[0].mxu0 %v4351
        %v4440 = vpop.f32.mrb[0].mxu0
        %v4441 = vpop.f32.mrb[0].mxu0
        %v4442 = vpop.f32.mrb[0].mxu0
        %v4443 = vpop.f32.mrb[0].mxu0
        %4444 = vdwg.mxu0
        %v4445 = vpack.c.bf16 %v4179, %v4178
        %v4446 = vpack.c.bf16 %v4181, %v4180
        %v4447 = vpack.c.bf16 %v4183, %v4182
        %v4448 = vpack.c.bf16 %v4185, %v4184
        %v4449 = vpack.c.bf16 %v4187, %v4186
        %v4450 = vpack.c.bf16 %v4189, %v4188
        %v4451 = vpack.c.bf16 %v4191, %v4190
        %v4452 = vpack.c.bf16 %v4193, %v4192
        %s4453 = scalar_lea.vmem [#allocation12], 8
        %v4454 = vld [vmem:[%s4453] sm:$0xf]
        %v4456 = vsel %vm2533, %v4445, 0
        %v4459 = vsel %vm2533, %v4446, 0
        %v4462 = vsel %vm2533, %v4447, 0
        %v4465 = vsel %vm2533, %v4448, 0
        %v4468 = vsel %vm2533, %v4449, 0
        %v4471 = vsel %vm2533, %v4450, 0
        %v4474 = vsel %vm2533, %v4451, 0
        %v4477 = vsel %vm2533, %v4452, 0
        %v4480 = vsel %vm2648, %v4454, 0
        %4482 = vmatprep.subr.bf16.mxu0 0
        %4483 = vmatpush1.bf16.msra.mxu0 %v4480
        %4484 = vmatprep.subr.bf16.mxu0 0
        %4485 = vmatpush1.bf16.msra.mxu0 0
        %4486 = vmatprep.subr.bf16.mxu0 0
        %4487 = vmatpush1.bf16.msra.mxu0 0
        %4488 = vmatprep.subr.bf16.mxu0 0
        %4489 = vmatpush1.bf16.msra.mxu0 0
        %4490 = vmatprep.subr.bf16.mxu0 0
        %4491 = vmatpush1.bf16.msra.mxu0 0
        %4492 = vmatprep.subr.bf16.mxu0 0
        %4493 = vmatpush1.bf16.msra.mxu0 0
        %4494 = vmatprep.subr.bf16.mxu0 0
        %4495 = vmatpush1.bf16.msra.mxu0 0
        %4496 = vmatprep.subr.bf16.mxu0 0
        %4497 = vmatpush1.bf16.msra.mxu0 0
        %4498 = vmatprep.subr.bf16.mxu0 0
        %4499 = vmatpush1.bf16.msra.mxu0 0
        %4500 = vmatprep.subr.bf16.mxu0 0
        %4501 = vmatpush1.bf16.msra.mxu0 0
        %4502 = vmatprep.subr.bf16.mxu0 0
        %4503 = vmatpush1.bf16.msra.mxu0 0
        %4504 = vmatprep.subr.bf16.mxu0 0
        %4505 = vmatpush1.bf16.msra.mxu0 0
        %4506 = vmatprep.subr.bf16.mxu0 0
        %4507 = vmatpush1.bf16.msra.mxu0 0
        %4508 = vmatprep.subr.bf16.mxu0 0
        %4509 = vmatpush1.bf16.msra.mxu0 0
        %4510 = vmatprep.subr.bf16.mxu0 0
        %4511 = vmatpush1.bf16.msra.mxu0 0
        %4512 = vmatprep.subr.bf16.mxu0 0
        %4513 = vmatpush1.bf16.msra.mxu0 0
        %4514 = vmatprep.mubr.bf16.mxu0 0
        %4515 = vmatmul.mubr.bf16.gmra.mrb[0].mxu0 %v4456
        %v4516 = vpop.f32.mrb[0].mxu0
        %v4517 = vadd.f32 0.0, %v4516
        %v4518 = vpop.f32.mrb[0].mxu0
        %v4519 = vpop.f32.mrb[0].mxu0
        %v4520 = vadd.f32 0.0, %v4519
        %v4521 = vpop.f32.mrb[0].mxu0
        %4522 = vmatprep.mubr.bf16.mxu0 0
        %4523 = vmatmul.mubr.bf16.gmra.mrb[0].mxu0 %v4459
        %v4524 = vpop.f32.mrb[0].mxu0
        %v4525 = vadd.f32 0.0, %v4524
        %v4526 = vpop.f32.mrb[0].mxu0
        %v4527 = vpop.f32.mrb[0].mxu0
        %v4528 = vadd.f32 0.0, %v4527
        %v4529 = vpop.f32.mrb[0].mxu0
        %4530 = vmatprep.mubr.bf16.mxu0 0
        %4531 = vmatmul.mubr.bf16.gmra.mrb[0].mxu0 %v4462
        %v4532 = vpop.f32.mrb[0].mxu0
        %v4533 = vpop.f32.mrb[0].mxu0
        %v4534 = vpop.f32.mrb[0].mxu0
        %v4535 = vpop.f32.mrb[0].mxu0
        %4536 = vmatprep.mubr.bf16.mxu0 0
        %4537 = vmatmul.mubr.bf16.gmra.mrb[0].mxu0 %v4465
        %v4538 = vpop.f32.mrb[0].mxu0
        %v4539 = vpop.f32.mrb[0].mxu0
        %v4540 = vpop.f32.mrb[0].mxu0
        %v4541 = vpop.f32.mrb[0].mxu0
        %4542 = vmatprep.mubr.bf16.mxu0 0
        %4543 = vmatmul.mubr.bf16.gmra.mrb[0].mxu0 %v4468
        %v4544 = vpop.f32.mrb[0].mxu0
        %v4545 = vadd.f32 0.0, %v4544
        %v4546 = vpop.f32.mrb[0].mxu0
        %v4547 = vpop.f32.mrb[0].mxu0
        %v4548 = vadd.f32 0.0, %v4547
        %v4549 = vpop.f32.mrb[0].mxu0
        %4550 = vmatprep.mubr.bf16.mxu0 0
        %4551 = vmatmul.mubr.bf16.gmra.mrb[0].mxu0 %v4471
        %v4552 = vpop.f32.mrb[0].mxu0
        %v4553 = vadd.f32 0.0, %v4552
        %v4554 = vpop.f32.mrb[0].mxu0
        %v4555 = vpop.f32.mrb[0].mxu0
        %v4556 = vadd.f32 0.0, %v4555
        %v4557 = vpop.f32.mrb[0].mxu0
        %4558 = vmatprep.mubr.bf16.mxu0 0
        %4559 = vmatmul.mubr.bf16.gmra.mrb[0].mxu0 %v4474
        %v4560 = vpop.f32.mrb[0].mxu0
        %v4561 = vpop.f32.mrb[0].mxu0
        %v4562 = vpop.f32.mrb[0].mxu0
        %v4563 = vpop.f32.mrb[0].mxu0
        %4564 = vmatprep.mubr.bf16.mxu0 0
        %4565 = vmatmul.mubr.bf16.gmra.mrb[0].mxu0 %v4477
        %v4566 = vpop.f32.mrb[0].mxu0
        %v4567 = vpop.f32.mrb[0].mxu0
        %v4568 = vpop.f32.mrb[0].mxu0
        %v4569 = vpop.f32.mrb[0].mxu0
        %4570 = vdwg.mxu0
        %v4571 = vadd.f32 %v4391, %v4517
        %v4572 = vadd.f32 %v4394, %v4520
        %v4573 = vadd.f32 %v4399, %v4525
        %v4574 = vadd.f32 %v4402, %v4528
        %v4575 = vadd.f32 %v4419, %v4545
        %v4576 = vadd.f32 %v4422, %v4548
        %v4577 = vadd.f32 %v4427, %v4553
        %v4578 = vadd.f32 %v4430, %v4556
        %v4579 = vld [vmem:[#allocation14] sm:$0x1]
        %v4581 = vlaneseq
        %v4582 = vshrl.u32 %v4581, 7
        %v4583 = vsub.s32 0, %v4582
        %v4584 = vrot.slane %v4579, %v4583
        %v4586 = vadd.f32 %v4571, %v4584
        %v4587 = vadd.f32 %v4572, %v4584
        %v4588 = vadd.f32 %v4573, %v4584
        %v4589 = vadd.f32 %v4574, %v4584
        %v4590 = vadd.f32 %v4575, %v4584
        %v4591 = vadd.f32 %v4576, %v4584
        %v4592 = vadd.f32 %v4577, %v4584
        %v4593 = vadd.f32 %v4578, %v4584
        %v4594 = vmax.f32 %v4586, 0.0
        %v4595 = vmax.f32 %v4587, 0.0
        %v4596 = vmax.f32 %v4588, 0.0
        %v4597 = vmax.f32 %v4589, 0.0
        %v4598 = vmax.f32 %v4590, 0.0
        %v4599 = vmax.f32 %v4591, 0.0
        %v4600 = vmax.f32 %v4592, 0.0
        %v4601 = vmax.f32 %v4593, 0.0
        %v4610 = vcombine.high %v4594, %v4594
        %v4612 = vunpack.c.l.s4 1983009808
        %v4613 = vunpack.c.0.s8 %v4612
        %v4614 = vlaneseq
        %v4615 = vshrl.u32 %v4614, 7
        %v4616 = vsub.s32 %v4613, %v4615
        %v4617 = vrot.slane %v4594, %v4616
        %v4619 = vunpack.c.l.s4 1983009808
        %v4620 = vunpack.c.0.s8 %v4619
        %v4621 = vlaneseq
        %v4622 = vshrl.u32 %v4621, 7
        %v4623 = vsub.s32 %v4620, %v4622
        %v4624 = vrot.slane %v4610, %v4623
        %v4625 = vcombine.high %v4617, %v4617
        %v4626 = vcombine.high %v4624, %v4624
        %v4627 = vcombine.high %v4595, %v4595
        %v4629 = vunpack.c.l.s4 1983009808
        %v4630 = vunpack.c.0.s8 %v4629
        %v4631 = vlaneseq
        %v4632 = vshrl.u32 %v4631, 7
        %v4633 = vsub.s32 %v4630, %v4632
        %v4634 = vrot.slane %v4595, %v4633
        %v4636 = vunpack.c.l.s4 1983009808
        %v4637 = vunpack.c.0.s8 %v4636
        %v4638 = vlaneseq
        %v4639 = vshrl.u32 %v4638, 7
        %v4640 = vsub.s32 %v4637, %v4639
        %v4641 = vrot.slane %v4627, %v4640
        %v4642 = vcombine.high %v4634, %v4634
        %v4643 = vcombine.high %v4641, %v4641
        %v4644 = vcombine.high %v4596, %v4596
        %v4646 = vunpack.c.l.s4 1983009808
        %v4647 = vunpack.c.0.s8 %v4646
        %v4648 = vlaneseq
        %v4649 = vshrl.u32 %v4648, 7
        %v4650 = vsub.s32 %v4647, %v4649
        %v4651 = vrot.slane %v4596, %v4650
        %v4653 = vunpack.c.l.s4 1983009808
        %v4654 = vunpack.c.0.s8 %v4653
        %v4655 = vlaneseq
        %v4656 = vshrl.u32 %v4655, 7
        %v4657 = vsub.s32 %v4654, %v4656
        %v4658 = vrot.slane %v4644, %v4657
        %v4659 = vcombine.high %v4651, %v4651
        %v4660 = vcombine.high %v4658, %v4658
        %v4661 = vcombine.high %v4597, %v4597
        %v4663 = vunpack.c.l.s4 1983009808
        %v4664 = vunpack.c.0.s8 %v4663
        %v4665 = vlaneseq
        %v4666 = vshrl.u32 %v4665, 7
        %v4667 = vsub.s32 %v4664, %v4666
        %v4668 = vrot.slane %v4597, %v4667
        %v4670 = vunpack.c.l.s4 1983009808
        %v4671 = vunpack.c.0.s8 %v4670
        %v4672 = vlaneseq
        %v4673 = vshrl.u32 %v4672, 7
        %v4674 = vsub.s32 %v4671, %v4673
        %v4675 = vrot.slane %v4661, %v4674
        %v4676 = vcombine.high %v4668, %v4668
        %v4677 = vcombine.high %v4675, %v4675
        %v4678 = vcombine.high %v4598, %v4598
        %v4680 = vunpack.c.l.s4 1983009808
        %v4681 = vunpack.c.0.s8 %v4680
        %v4682 = vlaneseq
        %v4683 = vshrl.u32 %v4682, 7
        %v4684 = vsub.s32 %v4681, %v4683
        %v4685 = vrot.slane %v4598, %v4684
        %v4687 = vunpack.c.l.s4 1983009808
        %v4688 = vunpack.c.0.s8 %v4687
        %v4689 = vlaneseq
        %v4690 = vshrl.u32 %v4689, 7
        %v4691 = vsub.s32 %v4688, %v4690
        %v4692 = vrot.slane %v4678, %v4691
        %v4693 = vcombine.high %v4685, %v4685
        %v4694 = vcombine.high %v4692, %v4692
        %v4695 = vcombine.high %v4599, %v4599
        %v4697 = vunpack.c.l.s4 1983009808
        %v4698 = vunpack.c.0.s8 %v4697
        %v4699 = vlaneseq
        %v4700 = vshrl.u32 %v4699, 7
        %v4701 = vsub.s32 %v4698, %v4700
        %v4702 = vrot.slane %v4599, %v4701
        %v4704 = vunpack.c.l.s4 1983009808
        %v4705 = vunpack.c.0.s8 %v4704
        %v4706 = vlaneseq
        %v4707 = vshrl.u32 %v4706, 7
        %v4708 = vsub.s32 %v4705, %v4707
        %v4709 = vrot.slane %v4695, %v4708
        %v4710 = vcombine.high %v4702, %v4702
        %v4711 = vcombine.high %v4709, %v4709
        %v4712 = vcombine.high %v4600, %v4600
        %v4714 = vunpack.c.l.s4 1983009808
        %v4715 = vunpack.c.0.s8 %v4714
        %v4716 = vlaneseq
        %v4717 = vshrl.u32 %v4716, 7
        %v4718 = vsub.s32 %v4715, %v4717
        %v4719 = vrot.slane %v4600, %v4718
        %v4721 = vunpack.c.l.s4 1983009808
        %v4722 = vunpack.c.0.s8 %v4721
        %v4723 = vlaneseq
        %v4724 = vshrl.u32 %v4723, 7
        %v4725 = vsub.s32 %v4722, %v4724
        %v4726 = vrot.slane %v4712, %v4725
        %v4727 = vcombine.high %v4719, %v4719
        %v4728 = vcombine.high %v4726, %v4726
        %v4729 = vcombine.high %v4601, %v4601
        %v4731 = vunpack.c.l.s4 1983009808
        %v4732 = vunpack.c.0.s8 %v4731
        %v4733 = vlaneseq
        %v4734 = vshrl.u32 %v4733, 7
        %v4735 = vsub.s32 %v4732, %v4734
        %v4736 = vrot.slane %v4601, %v4735
        %v4738 = vunpack.c.l.s4 1983009808
        %v4739 = vunpack.c.0.s8 %v4738
        %v4740 = vlaneseq
        %v4741 = vshrl.u32 %v4740, 7
        %v4742 = vsub.s32 %v4739, %v4741
        %v4743 = vrot.slane %v4729, %v4742
        %v4744 = vcombine.high %v4736, %v4736
        %v4745 = vcombine.high %v4743, %v4743
        %vm4778 = vcmask 58368
        %v4779 = vsel %vm4778, %v4617, -inf
        %v4780 = vrot.slane %v4779, 4
        %v4781 = vmax.f32 %v4779, %v4780
        %v4782 = vrot.slane %v4781, 2
        %v4783 = vmax.f32 %v4781, %v4782
        %v4784 = vrot.slane %v4783, 1
        %v4785 = vmax.f32 %v4783, %v4784
        %v4786 = vsel %vm4778, %v4625, -inf
        %v4787 = vrot.slane %v4786, 4
        %v4788 = vmax.f32 %v4786, %v4787
        %v4789 = vrot.slane %v4788, 2
        %v4790 = vmax.f32 %v4788, %v4789
        %v4791 = vrot.slane %v4790, 1
        %v4792 = vmax.f32 %v4790, %v4791
        %v4793 = vsel %vm4778, %v4624, -inf
        %v4794 = vrot.slane %v4793, 4
        %v4795 = vmax.f32 %v4793, %v4794
        %v4796 = vrot.slane %v4795, 2
        %v4797 = vmax.f32 %v4795, %v4796
        %v4798 = vrot.slane %v4797, 1
        %v4799 = vmax.f32 %v4797, %v4798
        %v4800 = vsel %vm4778, %v4626, -inf
        %v4801 = vrot.slane %v4800, 4
        %v4802 = vmax.f32 %v4800, %v4801
        %v4803 = vrot.slane %v4802, 2
        %v4804 = vmax.f32 %v4802, %v4803
        %v4805 = vrot.slane %v4804, 1
        %v4806 = vmax.f32 %v4804, %v4805
        %v4807 = vsel %vm4778, %v4634, -inf
        %v4808 = vrot.slane %v4807, 4
        %v4809 = vmax.f32 %v4807, %v4808
        %v4810 = vrot.slane %v4809, 2
        %v4811 = vmax.f32 %v4809, %v4810
        %v4812 = vrot.slane %v4811, 1
        %v4813 = vmax.f32 %v4811, %v4812
        %v4814 = vsel %vm4778, %v4642, -inf
        %v4815 = vrot.slane %v4814, 4
        %v4816 = vmax.f32 %v4814, %v4815
        %v4817 = vrot.slane %v4816, 2
        %v4818 = vmax.f32 %v4816, %v4817
        %v4819 = vrot.slane %v4818, 1
        %v4820 = vmax.f32 %v4818, %v4819
        %v4821 = vsel %vm4778, %v4641, -inf
        %v4822 = vrot.slane %v4821, 4
        %v4823 = vmax.f32 %v4821, %v4822
        %v4824 = vrot.slane %v4823, 2
        %v4825 = vmax.f32 %v4823, %v4824
        %v4826 = vrot.slane %v4825, 1
        %v4827 = vmax.f32 %v4825, %v4826
        %v4828 = vsel %vm4778, %v4643, -inf
        %v4829 = vrot.slane %v4828, 4
        %v4830 = vmax.f32 %v4828, %v4829
        %v4831 = vrot.slane %v4830, 2
        %v4832 = vmax.f32 %v4830, %v4831
        %v4833 = vrot.slane %v4832, 1
        %v4834 = vmax.f32 %v4832, %v4833
        %v4835 = vsel %vm4778, %v4651, -inf
        %v4836 = vrot.slane %v4835, 4
        %v4837 = vmax.f32 %v4835, %v4836
        %v4838 = vrot.slane %v4837, 2
        %v4839 = vmax.f32 %v4837, %v4838
        %v4840 = vrot.slane %v4839, 1
        %v4841 = vmax.f32 %v4839, %v4840
        %v4842 = vsel %vm4778, %v4659, -inf
        %v4843 = vrot.slane %v4842, 4
        %v4844 = vmax.f32 %v4842, %v4843
        %v4845 = vrot.slane %v4844, 2
        %v4846 = vmax.f32 %v4844, %v4845
        %v4847 = vrot.slane %v4846, 1
        %v4848 = vmax.f32 %v4846, %v4847
        %v4849 = vsel %vm4778, %v4658, -inf
        %v4850 = vrot.slane %v4849, 4
        %v4851 = vmax.f32 %v4849, %v4850
        %v4852 = vrot.slane %v4851, 2
        %v4853 = vmax.f32 %v4851, %v4852
        %v4854 = vrot.slane %v4853, 1
        %v4855 = vmax.f32 %v4853, %v4854
        %v4856 = vsel %vm4778, %v4660, -inf
        %v4857 = vrot.slane %v4856, 4
        %v4858 = vmax.f32 %v4856, %v4857
        %v4859 = vrot.slane %v4858, 2
        %v4860 = vmax.f32 %v4858, %v4859
        %v4861 = vrot.slane %v4860, 1
        %v4862 = vmax.f32 %v4860, %v4861
        %v4863 = vsel %vm4778, %v4668, -inf
        %v4864 = vrot.slane %v4863, 4
        %v4865 = vmax.f32 %v4863, %v4864
        %v4866 = vrot.slane %v4865, 2
        %v4867 = vmax.f32 %v4865, %v4866
        %v4868 = vrot.slane %v4867, 1
        %v4869 = vmax.f32 %v4867, %v4868
        %v4870 = vsel %vm4778, %v4676, -inf
        %v4871 = vrot.slane %v4870, 4
        %v4872 = vmax.f32 %v4870, %v4871
        %v4873 = vrot.slane %v4872, 2
        %v4874 = vmax.f32 %v4872, %v4873
        %v4875 = vrot.slane %v4874, 1
        %v4876 = vmax.f32 %v4874, %v4875
        %v4877 = vsel %vm4778, %v4675, -inf
        %v4878 = vrot.slane %v4877, 4
        %v4879 = vmax.f32 %v4877, %v4878
        %v4880 = vrot.slane %v4879, 2
        %v4881 = vmax.f32 %v4879, %v4880
        %v4882 = vrot.slane %v4881, 1
        %v4883 = vmax.f32 %v4881, %v4882
        %v4884 = vsel %vm4778, %v4677, -inf
        %v4885 = vrot.slane %v4884, 4
        %v4886 = vmax.f32 %v4884, %v4885
        %v4887 = vrot.slane %v4886, 2
        %v4888 = vmax.f32 %v4886, %v4887
        %v4889 = vrot.slane %v4888, 1
        %v4890 = vmax.f32 %v4888, %v4889
        %v4891 = vsel %vm4778, %v4685, -inf
        %v4892 = vrot.slane %v4891, 4
        %v4893 = vmax.f32 %v4891, %v4892
        %v4894 = vrot.slane %v4893, 2
        %v4895 = vmax.f32 %v4893, %v4894
        %v4896 = vrot.slane %v4895, 1
        %v4897 = vmax.f32 %v4895, %v4896
        %v4898 = vsel %vm4778, %v4693, -inf
        %v4899 = vrot.slane %v4898, 4
        %v4900 = vmax.f32 %v4898, %v4899
        %v4901 = vrot.slane %v4900, 2
        %v4902 = vmax.f32 %v4900, %v4901
        %v4903 = vrot.slane %v4902, 1
        %v4904 = vmax.f32 %v4902, %v4903
        %v4905 = vsel %vm4778, %v4692, -inf
        %v4906 = vrot.slane %v4905, 4
        %v4907 = vmax.f32 %v4905, %v4906
        %v4908 = vrot.slane %v4907, 2
        %v4909 = vmax.f32 %v4907, %v4908
        %v4910 = vrot.slane %v4909, 1
        %v4911 = vmax.f32 %v4909, %v4910
        %v4912 = vsel %vm4778, %v4694, -inf
        %v4913 = vrot.slane %v4912, 4
        %v4914 = vmax.f32 %v4912, %v4913
        %v4915 = vrot.slane %v4914, 2
        %v4916 = vmax.f32 %v4914, %v4915
        %v4917 = vrot.slane %v4916, 1
        %v4918 = vmax.f32 %v4916, %v4917
        %v4919 = vsel %vm4778, %v4702, -inf
        %v4920 = vrot.slane %v4919, 4
        %v4921 = vmax.f32 %v4919, %v4920
        %v4922 = vrot.slane %v4921, 2
        %v4923 = vmax.f32 %v4921, %v4922
        %v4924 = vrot.slane %v4923, 1
        %v4925 = vmax.f32 %v4923, %v4924
        %v4926 = vsel %vm4778, %v4710, -inf
        %v4927 = vrot.slane %v4926, 4
        %v4928 = vmax.f32 %v4926, %v4927
        %v4929 = vrot.slane %v4928, 2
        %v4930 = vmax.f32 %v4928, %v4929
        %v4931 = vrot.slane %v4930, 1
        %v4932 = vmax.f32 %v4930, %v4931
        %v4933 = vsel %vm4778, %v4709, -inf
        %v4934 = vrot.slane %v4933, 4
        %v4935 = vmax.f32 %v4933, %v4934
        %v4936 = vrot.slane %v4935, 2
        %v4937 = vmax.f32 %v4935, %v4936
        %v4938 = vrot.slane %v4937, 1
        %v4939 = vmax.f32 %v4937, %v4938
        %v4940 = vsel %vm4778, %v4711, -inf
        %v4941 = vrot.slane %v4940, 4
        %v4942 = vmax.f32 %v4940, %v4941
        %v4943 = vrot.slane %v4942, 2
        %v4944 = vmax.f32 %v4942, %v4943
        %v4945 = vrot.slane %v4944, 1
        %v4946 = vmax.f32 %v4944, %v4945
        %v4947 = vsel %vm4778, %v4719, -inf
        %v4948 = vrot.slane %v4947, 4
        %v4949 = vmax.f32 %v4947, %v4948
        %v4950 = vrot.slane %v4949, 2
        %v4951 = vmax.f32 %v4949, %v4950
        %v4952 = vrot.slane %v4951, 1
        %v4953 = vmax.f32 %v4951, %v4952
        %v4954 = vsel %vm4778, %v4727, -inf
        %v4955 = vrot.slane %v4954, 4
        %v4956 = vmax.f32 %v4954, %v4955
        %v4957 = vrot.slane %v4956, 2
        %v4958 = vmax.f32 %v4956, %v4957
        %v4959 = vrot.slane %v4958, 1
        %v4960 = vmax.f32 %v4958, %v4959
        %v4961 = vsel %vm4778, %v4726, -inf
        %v4962 = vrot.slane %v4961, 4
        %v4963 = vmax.f32 %v4961, %v4962
        %v4964 = vrot.slane %v4963, 2
        %v4965 = vmax.f32 %v4963, %v4964
        %v4966 = vrot.slane %v4965, 1
        %v4967 = vmax.f32 %v4965, %v4966
        %v4968 = vsel %vm4778, %v4728, -inf
        %v4969 = vrot.slane %v4968, 4
        %v4970 = vmax.f32 %v4968, %v4969
        %v4971 = vrot.slane %v4970, 2
        %v4972 = vmax.f32 %v4970, %v4971
        %v4973 = vrot.slane %v4972, 1
        %v4974 = vmax.f32 %v4972, %v4973
        %v4975 = vsel %vm4778, %v4736, -inf
        %v4976 = vrot.slane %v4975, 4
        %v4977 = vmax.f32 %v4975, %v4976
        %v4978 = vrot.slane %v4977, 2
        %v4979 = vmax.f32 %v4977, %v4978
        %v4980 = vrot.slane %v4979, 1
        %v4981 = vmax.f32 %v4979, %v4980
        %v4982 = vsel %vm4778, %v4744, -inf
        %v4983 = vrot.slane %v4982, 4
        %v4984 = vmax.f32 %v4982, %v4983
        %v4985 = vrot.slane %v4984, 2
        %v4986 = vmax.f32 %v4984, %v4985
        %v4987 = vrot.slane %v4986, 1
        %v4988 = vmax.f32 %v4986, %v4987
        %v4989 = vsel %vm4778, %v4743, -inf
        %v4990 = vrot.slane %v4989, 4
        %v4991 = vmax.f32 %v4989, %v4990
        %v4992 = vrot.slane %v4991, 2
        %v4993 = vmax.f32 %v4991, %v4992
        %v4994 = vrot.slane %v4993, 1
        %v4995 = vmax.f32 %v4993, %v4994
        %v4996 = vsel %vm4778, %v4745, -inf
        %v4997 = vrot.slane %v4996, 4
        %v4998 = vmax.f32 %v4996, %v4997
        %v4999 = vrot.slane %v4998, 2
        %v5000 = vmax.f32 %v4998, %v4999
        %v5001 = vrot.slane %v5000, 1
        %v5002 = vmax.f32 %v5000, %v5001
        %v5003 = vsel %vm2533, %v4785, -inf
        %v5004 = vsel %vm2533, %v4813, -inf
        %v5005 = vmax.f32 %v5003, %v5004
        %v5006 = vsel %vm2533, %v4792, -inf
        %v5007 = vsel %vm2533, %v4820, -inf
        %v5008 = vmax.f32 %v5006, %v5007
        %v5009 = vsel %vm2533, %v4799, -inf
        %v5010 = vsel %vm2533, %v4827, -inf
        %v5011 = vmax.f32 %v5009, %v5010
        %v5012 = vsel %vm2533, %v4806, -inf
        %v5013 = vsel %vm2533, %v4834, -inf
        %v5014 = vmax.f32 %v5012, %v5013
        %v5015 = vsel %vm2533, %v4841, -inf
        %v5016 = vsel %vm2533, %v4869, -inf
        %v5017 = vmax.f32 %v5015, %v5016
        %v5018 = vsel %vm2533, %v4848, -inf
        %v5019 = vsel %vm2533, %v4876, -inf
        %v5020 = vmax.f32 %v5018, %v5019
        %v5021 = vsel %vm2533, %v4855, -inf
        %v5022 = vsel %vm2533, %v4883, -inf
        %v5023 = vmax.f32 %v5021, %v5022
        %v5024 = vsel %vm2533, %v4862, -inf
        %v5025 = vsel %vm2533, %v4890, -inf
        %v5026 = vmax.f32 %v5024, %v5025
        %v5027 = vsel %vm2533, %v4897, -inf
        %v5028 = vsel %vm2533, %v4925, -inf
        %v5029 = vmax.f32 %v5027, %v5028
        %v5030 = vsel %vm2533, %v4904, -inf
        %v5031 = vsel %vm2533, %v4932, -inf
        %v5032 = vmax.f32 %v5030, %v5031
        %v5033 = vsel %vm2533, %v4911, -inf
        %v5034 = vsel %vm2533, %v4939, -inf
        %v5035 = vmax.f32 %v5033, %v5034
        %v5036 = vsel %vm2533, %v4918, -inf
        %v5037 = vsel %vm2533, %v4946, -inf
        %v5038 = vmax.f32 %v5036, %v5037
        %v5039 = vsel %vm2533, %v4953, -inf
        %v5040 = vsel %vm2533, %v4981, -inf
        %v5041 = vmax.f32 %v5039, %v5040
        %v5042 = vsel %vm2533, %v4960, -inf
        %v5043 = vsel %vm2533, %v4988, -inf
        %v5044 = vmax.f32 %v5042, %v5043
        %v5045 = vsel %vm2533, %v4967, -inf
        %v5046 = vsel %vm2533, %v4995, -inf
        %v5047 = vmax.f32 %v5045, %v5046
        %v5048 = vsel %vm2533, %v4974, -inf
        %v5049 = vsel %vm2533, %v5002, -inf
        %v5050 = vmax.f32 %v5048, %v5049
        %vm5055 = vcmask 1041409
        %v5056 = vsel %vm5055, %v5017, %v5005
        %v5057 = vsel %vm5055, %v5041, %v5029
        %v5064 = vsel %vm5055, %v5020, %v5008
        %v5065 = vsel %vm5055, %v5044, %v5032
        %5066 = vrot.lane.b32.xlu0 %v5064, 8
        %v5067 = vpop.permute.xlu0 %5066
        %5068 = vrot.lane.b32.xlu0 %v5065, 8
        %v5069 = vpop.permute.xlu0 %5068
        %v5076 = vsel %vm5055, %v5023, %v5011
        %v5077 = vsel %vm5055, %v5047, %v5035
        %5078 = vrot.lane.b32.xlu0 %v5076, 16
        %v5079 = vpop.permute.xlu0 %5078
        %5080 = vrot.lane.b32.xlu0 %v5077, 16
        %v5081 = vpop.permute.xlu0 %5080
        %v5088 = vsel %vm5055, %v5026, %v5014
        %v5089 = vsel %vm5055, %v5050, %v5038
        %5090 = vrot.lane.b32.xlu0 %v5088, 24
        %v5091 = vpop.permute.xlu0 %5090
        %5092 = vrot.lane.b32.xlu0 %v5089, 24
        %v5093 = vpop.permute.xlu0 %5092
        %v5096 = vsel %vm2533, %v5056, %v5067
        %v5097 = vsel %vm2533, %v5057, %v5069
        %vm5098 = vcmask 130048
        %v5099 = vsel %vm5098, %v5096, %v5079
        %v5100 = vsel %vm5098, %v5097, %v5081
        %vm5101 = vcmask 195584
        %v5102 = vsel %vm5101, %v5099, %v5091
        %v5103 = vsel %vm5101, %v5100, %v5093
        %vm5104 = vcmask 254976
        %5105 = vst.msk [vmem:[%s395] sm:$0x3] %vm5104, %v5102
        %5106 = vst.msk [vmem:[%s395 + $0x2] sm:$0x3] %vm5104, %v5103
        %s5107 = sand.u32 %s203, 1
        %s5108 = scalar_lea.sflag [#allocation5], %s5107
        %s5109 = sand.u32 %s203, 1
        %s5110 = smul.addr %s5109, 4
        %s5111 = scalar_lea.vmem [#allocation15], %s5110
        // Predicated region
        $region77: #{tpu_custom_call.1} parent=47 // pred_check
          %p5112 = pneg %p213
        $region78: #{tpu_custom_call.1} parent=47 // pred_check_branch
          %5114 = sbr.rel (%p5112) target = $region80
        $region79: #{tpu_custom_call.1} parent=47 // pred_region
          %s5116 = ssub.s32 64, 64
          %5117 = vsyncadd %s5108, %s5116
          %s5118 = smul.addr %s32, 2
          %s5119 = smul.addr %s31, 4
          %s5120 = sadd.s32 %s5118, %s5119
          %s5121 = smul.addr %s5120, 32
          %s5122 = scalar_lea.hbm %s7, %s5121
          %s5123 = sshll.u32 %s5111, 4
          %s5124 = int_to_ptr.vmem [resolvable:$true] %s5123
          %5129 = dma.vmem_to_hbm [thread:$0]  %s5124, 64, %s5122, %s5108, 32, 32, 2
        $region80: #{tpu_custom_call.1} parent=47 // pred_fallthru
          _
      $region48: #{tpu_custom_call.1} parent=5 // pred_fallthru
        _
      %p5130 = scmp.le.s32.totalorder 2, %s22
      // Predicated region
      $region81: #{tpu_custom_call.1} parent=5 // pred_check
        %p5131 = pneg %p5130
      $region82: #{tpu_custom_call.1} parent=5 // pred_check_branch
        %5133 = sbr.rel (%p5131) target = $region84
      $region83: #{tpu_custom_call.1} parent=5 // pred_region
        %s5134 = ssub.s32 %s22, 2
        // Predicated region
        $region85: #{tpu_custom_call.1} parent=83 // pred_check
          %p5135 = pneg %p219
        $region86: #{tpu_custom_call.1} parent=83 // pred_check_branch
          %5137 = sbr.rel (%p5135) target = $region88
        $region87: #{tpu_custom_call.1} parent=83 // pred_region
          %s5138 = sand.u32 %s204, 1
          %s5139 = scalar_lea.sflag [#allocation5], %s5138
          %s5140 = sand.u32 %s204, 1
          %s5141 = smul.addr %s5140, 4
          %s5142 = scalar_lea.vmem [#allocation15], %s5141
          %5143 = dma.done %s5139, 64
        $region88: #{tpu_custom_call.1} parent=83 // pred_fallthru
          _
      $region84: #{tpu_custom_call.1} parent=5 // pred_fallthru
        _
    $region6: #{tpu_custom_call.1} parent=1 // loop_footer
      %s26 = sadd.s32 1, %s22
    $region7: #{tpu_custom_call.1} parent=1 // loop_footer_branch
      %21 = sbr.rel target = $region3
    $region8: #{tpu_custom_call.1} parent=1 // loop_exit
      _
    %5144 = vsyncpa [#allocation4], 1
    %s5145 = scalar_lea.sflag [#allocation4], 1
    %5146 = vsyncpa %s5145, 1
    %5147 = vsyncpa [#allocation7], 1
    %5148 = vsyncpa [#allocation10], 1
    %5149 = vsyncpa [#allocation13], 1
    %5150 = vsyncpa [#allocation5], 1
    %s5151 = scalar_lea.sflag [#allocation5], 1
    %5152 = vsyncpa %s5151, 1

</llo_original>
